<compile_context>
chip_gen: v6e
topology: v6e:2x2x1
jax: 0.10.0
libtpu: 0.0.40
codegen_flags: <defaults>
</compile_context>

<pallas_src>
import math
import functools

import jax
import jax.numpy as jnp
from jax.experimental import pallas as pl
from jax.experimental.pallas import tpu as pltpu


# ---------------------------------------------------------------------------
# Fused kernel: grid = (batch_shards, layer); weights indexed only by layer.
# ---------------------------------------------------------------------------
def _perceiver_kernel(is_cross_ref,            # SMEM [L]     cross/self flags
                      tok_ref,                 # (Bg*T, D)    f32  initial latent
                      x_ref,                   # (Bg*S, dkv)  bf16 flattened context
                      wkv_ref,                 # (dkv, 2D)    bf16 fused [Wk | Wv]
                      w4_ref,                  # (4, D, D)    bf16 Wq, Wo, W1, W2
                      vec_ref,                 # (6, D)       f32  g1,b1,bm1,bm2,g2,b2
                      o_ref,                   # (Bg*T, D)    f32  output
                      lat_ref, ah_ref,         # VMEM scratch
                      *, heads, batch):
    layer = pl.program_id(1)
    n_layers = pl.num_programs(1)

    BT, D = lat_ref.shape
    T = BT // batch
    BS, dkv = x_ref.shape
    S = BS // batch
    hd = D // heads

    # --- first layer of this batch shard: latent <- (host-tiled) tokens.
    @pl.when(layer == 0)
    def _():
        lat_ref[...] = tok_ref[...]

    is_cross = is_cross_ref[layer] != 0

    lat = lat_ref[...]                        # f32 [Bg*T, D], resident in VMEM
    wkv = wkv_ref[...]                        # bf16 [dkv, 2D]

    # --- Q projection once for all batch rows (Wq already scaled by 1/sqrt(hd)).
    q = jnp.dot(lat.astype(jnp.bfloat16), w4_ref[0],
                preferred_element_type=jnp.float32)           # [Bg*T, D]

    def attend(kv, ctx_rows):
        """kv: [Bg*ctx_rows, 2D] f32 -> per-(head, batch) attention -> [Bg*T, D]."""
        qb = q.astype(jnp.bfloat16)
        kb = kv[:, :D].astype(jnp.bfloat16)                   # aligned 128-lane split
        vb = kv[:, D:].astype(jnp.bfloat16)
        # Static slice + stack head/batch split (Mosaic-safe); copies are tiny.
        qs, ks, vs = [], [], []
        for h in range(heads):
            for b in range(batch):
                qs.append(qb[b * T:(b + 1) * T, h * hd:(h + 1) * hd])
                ks.append(kb[b * ctx_rows:(b + 1) * ctx_rows, h * hd:(h + 1) * hd])
                vs.append(vb[b * ctx_rows:(b + 1) * ctx_rows, h * hd:(h + 1) * hd])
        qh = jnp.stack(qs, axis=0)                            # [H*Bg, T, hd]
        kh = jnp.stack(ks, axis=0)                            # [H*Bg, ctx, hd]
        vh = jnp.stack(vs, axis=0)
        # ONE batched matmul for QK^T and one for PV (leading batch dim).
        s = jnp.einsum('gtd,gsd->gts', qh, kh,
                       preferred_element_type=jnp.float32)    # [H*Bg, T, ctx]
        m = jnp.max(s, axis=-1, keepdims=True)
        p = jnp.exp(s - m)
        p = p * pl.reciprocal(jnp.sum(p, axis=-1, keepdims=True), approx=True)
        o = jnp.einsum('gts,gsd->gtd', p.astype(jnp.bfloat16), vh,
                       preferred_element_type=jnp.float32)    # [H*Bg, T, hd]
        # Back to rows (b, t), columns (h, hd).
        cols = []
        for h in range(heads):
            cols.append(jnp.concatenate(
                [o[h * batch + b] for b in range(batch)], axis=0))   # [Bg*T, hd]
        return jnp.concatenate(cols, axis=-1)                        # [Bg*T, D]

    # --- cross layers attend over x; self layers attend over the latent.
    #     No staging buffer, no padding, no score mask: each branch runs with
    #     its own static shapes.
    @pl.when(is_cross)
    def _():
        kv = jnp.dot(x_ref[...], wkv,
                     preferred_element_type=jnp.float32)      # [Bg*S, 2D]
        ah_ref[...] = attend(kv, S)

    @pl.when(jnp.logical_not(is_cross))
    def _():
        kv = jnp.dot(lat.astype(jnp.bfloat16), wkv[:D, :],
                     preferred_element_type=jnp.float32)      # [Bg*T, 2D]
        ah_ref[...] = attend(kv, T)

    vecs = vec_ref[...]                                       # f32 [6, D]
    g1, b1 = vecs[0:1], vecs[1:2]
    bm1, bm2 = vecs[2:3], vecs[3:4]
    g2, b2 = vecs[4:5], vecs[5:6]

    def layer_norm(z, g, b):                                  # single-pass stats, f32
        inv_n = 1.0 / z.shape[-1]
        mu = jnp.sum(z, axis=-1, keepdims=True) * inv_n
        ex2 = jnp.sum(z * z, axis=-1, keepdims=True) * inv_n
        var = ex2 - mu * mu
        return (z - mu) * jax.lax.rsqrt(var + 1e-5) * g + b

    attn = jnp.dot(ah_ref[...].astype(jnp.bfloat16), w4_ref[1],
                   preferred_element_type=jnp.float32)        # Wo
    a = layer_norm(attn, g1, b1) + lat                        # residual 1

    h1 = jnp.dot(a.astype(jnp.bfloat16), w4_ref[2],
                 preferred_element_type=jnp.float32) + bm1
    h1 = jax.nn.gelu(h1, approximate=True)                    # tanh GELU (EUP)
    h2 = jnp.dot(h1.astype(jnp.bfloat16), w4_ref[3],
                 preferred_element_type=jnp.float32) + bm2
    new_lat = layer_norm(h2, g2, b2) + a                      # residual 2

    lat_ref[...] = new_lat                                    # latent stays in VMEM

    @pl.when(layer == n_layers - 1)
    def _():
        o_ref[...] = new_lat.astype(o_ref.dtype)


# ---------------------------------------------------------------------------
# Host-side wrapper
# ---------------------------------------------------------------------------
def perceiver_forward(packed, x, *, batch_shards=1):
    """x: [B, S, dim] -> [B, tokens, v_dim].

    batch_shards=1 streams each layer's weights exactly once (best on v5e/v6e
    single-core).  batch_shards=2 adds a leading 'parallel' axis that splits
    the batch across both v7x TensorCores (weights still indexed only by l, so
    each core fetches them once per layer).
    """
    B, S, dim = x.shape
    T, D = packed["tokens"].shape
    L = int(packed["is_cross"].shape[0])
    heads = packed["heads"]
    dkv = packed["Wkv"].shape[1]
    G = batch_shards
    assert B % G == 0, "batch must divide evenly across batch_shards"
    Bg = B // G

    # Zero-pad context channels to the K/V fan-in; bf16 for MXU / half-size DMA;
    # flatten (batch, seq) on the host so the kernel does pure 2D matmuls.
    x_p = x if dkv == dim else jnp.pad(x, ((0, 0), (0, 0), (0, dkv - dim)))
    x_p = x_p.astype(jnp.bfloat16).reshape(G, Bg * S, dkv)

    # Host-tiled tokens: initial latent for every batch row.
    tok = jnp.tile(packed["tokens"], (B, 1)).reshape(G, Bg * T, D)

    grid_spec = pltpu.PrefetchScalarGridSpec(
        num_scalar_prefetch=1,
        grid=(G, L),                            # shards parallel, layers sequential
        in_specs=[
            pl.BlockSpec((None, Bg * T, D), lambda g, l, flag: (g, 0, 0)),     # tokens
            # TODO(synk): S-tile this block (online softmax) for S >> 10^3.
            pl.BlockSpec((None, Bg * S, dkv), lambda g, l, flag: (g, 0, 0)),   # x
            pl.BlockSpec((None, dkv, 2 * D), lambda g, l, flag: (l, 0, 0)),    # Wkv
            pl.BlockSpec((None, 4, D, D), lambda g, l, flag: (l, 0, 0, 0)),    # W4
            pl.BlockSpec((None, 6, D), lambda g, l, flag: (l, 0, 0)),          # Vecs
        ],
        out_specs=pl.BlockSpec((None, Bg * T, D), lambda g, l, flag: (g, 0, 0)),
        scratch_shapes=[
            pltpu.VMEM((Bg * T, D), jnp.float32),   # latent (resident across layers)
            pltpu.VMEM((Bg * T, D), jnp.float32),   # per-head attention output
        ],
    )

    out = pl.pallas_call(
        functools.partial(_perceiver_kernel, heads=heads, batch=Bg),
        grid_spec=grid_spec,
        out_shape=jax.ShapeDtypeStruct((G, Bg * T, D), jnp.float32),
        compiler_params=pltpu.CompilerParams(
            dimension_semantics=("parallel", "arbitrary"),
            vmem_limit_bytes=32 * 1024 * 1024,      # headroom even on v7x 64 MiB/core
        ),
    )(packed["is_cross"], tok, x_p,
      packed["Wkv"], packed["W4"], packed["Vecs"])

    return out.reshape(B, T, D)


# ---------------------------------------------------------------------------
# Parameter construction (PyTorch-Linear-style init) + host-side packing
# ---------------------------------------------------------------------------
def init_block_params(key, q_dim, ctx_dim, v_dim):
    ks = jax.random.split(key, 8)

    def lin(k, din, dout):
        bound = 1.0 / math.sqrt(din)
        return jax.random.uniform(k, (din, dout), jnp.float32, -bound, bound)

    def bias(k, din, dout):
        bound = 1.0 / math.sqrt(din)
        return jax.random.uniform(k, (1, dout), jnp.float32, -bound, bound)

    return dict(
        Wq=lin(ks[0], q_dim, v_dim),
        Wk=lin(ks[1], ctx_dim, v_dim),
        Wv=lin(ks[2], ctx_dim, v_dim),
        Wo=lin(ks[3], v_dim, v_dim),
        g1=jnp.ones((1, v_dim), jnp.float32),
        b1=jnp.zeros((1, v_dim), jnp.float32),
        W1=lin(ks[4], v_dim, v_dim),
        bm1=bias(ks[5], v_dim, v_dim),
        W2=lin(ks[6], v_dim, v_dim),
        bm2=bias(ks[7], v_dim, v_dim),
        g2=jnp.ones((1, v_dim), jnp.float32),
        b2=jnp.zeros((1, v_dim), jnp.float32),
    )


def init_perceiver(key, dim, heads, tokens=32, token_dim=None, v_dim=None,
                   depths=None, recursions=None):
    token_dim = dim if token_dim is None else token_dim
    v_dim = dim if v_dim is None else v_dim
    depths = [3] if depths is None else depths
    recursions = [1 for _ in depths] if recursions is None else recursions
    assert len(depths) == len(recursions), 'Recursion must be specified for each depth'
    assert token_dim == v_dim, 'fused kernel keeps the residual path: token_dim must equal v_dim'
    # TODO(synk): token_dim != v_dim (allowed by the reference when recursions[0]==1)
    # would need a residual-free / projected first block.

    key, tk = jax.random.split(key)
    token_embed = jax.random.normal(tk, (tokens, token_dim), jnp.float32)
    # TODO(synk): fix_token=False (kaiming re-init + trainable tokens) is a
    # training-time concern; forward semantics are identical.

    layers, flags = [], []
    for i, (recurs, inner_depth) in enumerate(zip(recursions, depths)):
        key, k1 = jax.random.split(key)
        cross_p = init_block_params(k1, token_dim if i == 0 else v_dim, dim, v_dim)
        self_ps = []
        for _ in range(inner_depth - 1):
            key, k2 = jax.random.split(key)
            self_ps.append(init_block_params(k2, v_dim, v_dim, v_dim))
        for _ in range(recurs):            # recursion shares params ([module]*recurs)
            layers.append(cross_p)
            flags.append(1)
            for sp in self_ps:
                layers.append(sp)
                flags.append(0)

    return dict(tokens=token_embed, layers=layers, flags=flags,
                heads=heads, dim=dim, v_dim=v_dim)


def pack_perceiver_params(params):
    """Pack per-layer params into three DMA-friendly stacks:
       Wkv  [L, dkv, 2*v_dim]  (bf16, K|V fused, rows zero-padded to dkv)
       W4   [L, 4, v_dim, v_dim] (bf16, Wq*1/sqrt(hd), Wo, W1, W2)
       Vecs [L, 6, v_dim]       (f32, g1, b1, bm1, bm2, g2, b2)"""
    heads = params["heads"]
    dim, v_dim = params["dim"], params["v_dim"]
    dkv = max(dim, v_dim)
    scale = 1.0 / math.sqrt(v_dim // heads)

    wkv_l, w4_l, vec_l = [], [], []
    for layer in params["layers"]:
        wkv = jnp.concatenate([layer["Wk"], layer["Wv"]], axis=1)   # [ctx, 2*v_dim]
        if wkv.shape[0] < dkv:
            wkv = jnp.pad(wkv, ((0, dkv - wkv.shape[0]), (0, 0)))
        wkv_l.append(wkv)
        w4_l.append(jnp.stack([layer["Wq"] * scale, layer["Wo"],
                               layer["W1"], layer["W2"]], axis=0))
        vec_l.append(jnp.stack([layer["g1"][0], layer["b1"][0],
                                layer["bm1"][0], layer["bm2"][0],
                                layer["g2"][0], layer["b2"][0]], axis=0))

    return dict(
        tokens=params["tokens"],
        is_cross=jnp.asarray(params["flags"], jnp.int32),
        heads=heads,
        Wkv=jnp.stack(wkv_l, axis=0).astype(jnp.bfloat16),
        W4=jnp.stack(w4_l, axis=0).astype(jnp.bfloat16),
        Vecs=jnp.stack(vec_l, axis=0).astype(jnp.float32),
    )


if __name__ == "__main__":
    key = jax.random.PRNGKey(0)
    k_x, k_p = jax.random.split(key)

    # Lane-dense demo sizes: D = 128 fills every vector lane / MXU column.
    B, S, dim = 2, 16, 128
    heads, n_tokens = 4, 8

    x = jax.random.normal(k_x, (B, S, dim), jnp.float32)
    raw = init_perceiver(k_p, dim, heads, tokens=n_tokens)   # depths=[3] -> 1 cross + 2 self
    packed = pack_perceiver_params(raw)

    out = perceiver_forward(packed, x)       # batch_shards=2 to feed both v7x cores
    out = jax.block_until_ready(out)

    assert out.shape == (B, n_tokens, dim), out.shape
    assert bool(jnp.all(jnp.isfinite(out)))
    print("KERNEL_OK")
</pallas_src>

<mosaic_0001>
module attributes {stable_mosaic.version = 11 : i64} {
  func.func @_perceiver_kernel(%arg0: i32, %arg1: i32, %arg2: memref<3xi32, #tpu.memory_space<smem>>, %arg3: memref<1x16x128xf32, #tpu.memory_space<vmem>>, %arg4: memref<1x32x128xbf16, #tpu.memory_space<vmem>>, %arg5: memref<1x128x256xbf16, #tpu.memory_space<vmem>>, %arg6: memref<1x4x128x128xbf16, #tpu.memory_space<vmem>>, %arg7: memref<1x6x128xf32, #tpu.memory_space<vmem>>, %arg8: memref<1x16x128xf32, #tpu.memory_space<vmem>>, %arg9: memref<16x128xf32, #tpu.memory_space<vmem>>, %arg10: memref<16x128xf32, #tpu.memory_space<vmem>>) attributes {dimension_semantics = [#tpu.dimension_semantics<parallel>, #tpu.dimension_semantics<arbitrary>], iteration_bounds = array<i64: 1, 3>, scalar_prefetch = 1 : i64, scratch_operands = 2 : i64, tpu.core_type = #tpu.core_type<tc>, window_params = [{transform_indices = @transform_0, window_bounds = array<i64: 1, 16, 128>}, {transform_indices = @transform_1, window_bounds = array<i64: 1, 32, 128>}, {transform_indices = @transform_2, window_bounds = array<i64: 1, 128, 256>}, {transform_indices = @transform_3, window_bounds = array<i64: 1, 4, 128, 128>}, {transform_indices = @transform_4, window_bounds = array<i64: 1, 6, 128>}, {transform_indices = @transform_5, window_bounds = array<i64: 1, 16, 128>}]} {
    %c0_i32 = arith.constant 0 : i32
    %0 = arith.cmpi eq, %arg1, %c0_i32 : i32
    %1 = arith.extui %0 : i1 to i32
    %c0_i32_0 = arith.constant 0 : i32
    %2 = arith.cmpi ne, %1, %c0_i32_0 : i32
    scf.if %2 {
      %c0_46 = arith.constant 0 : index
      %c0_47 = arith.constant 0 : index
      %c0_48 = arith.constant 0 : index
      %106 = vector.load %arg3[%c0_46, %c0_47, %c0_48] : memref<1x16x128xf32, #tpu.memory_space<vmem>>, vector<1x16x128xf32>
      %107 = vector.shape_cast %106 : vector<1x16x128xf32> to vector<16x128xf32>
      %c0_49 = arith.constant 0 : index
      %c0_50 = arith.constant 0 : index
      %108 = vector.load %arg9[%c0_49, %c0_50] : memref<16x128xf32, #tpu.memory_space<vmem>>, vector<16x128xf32>
      tpu.vector_store %arg9[%c0_49, %c0_50], %107 {strides = array<i32>} : memref<16x128xf32, #tpu.memory_space<vmem>>, vector<16x128xf32>,
    } else {
    }
    %3 = arith.index_cast %arg1 : i32 to index
    %4 = memref.load %arg2[%3] : memref<3xi32, #tpu.memory_space<smem>>
    %c0_i32_1 = arith.constant 0 : i32
    %5 = arith.cmpi ne, %4, %c0_i32_1 : i32
    %c0 = arith.constant 0 : index
    %c0_2 = arith.constant 0 : index
    %6 = vector.load %arg9[%c0, %c0_2] : memref<16x128xf32, #tpu.memory_space<vmem>>, vector<16x128xf32>
    %c0_3 = arith.constant 0 : index
    %c0_4 = arith.constant 0 : index
    %c0_5 = arith.constant 0 : index
    %7 = vector.load %arg5[%c0_3, %c0_4, %c0_5] : memref<1x128x256xbf16, #tpu.memory_space<vmem>>, vector<1x128x256xbf16>
    %8 = vector.shape_cast %7 : vector<1x128x256xbf16> to vector<128x256xbf16>
    %9 = arith.truncf %6 : vector<16x128xf32> to vector<16x128xbf16>
    %c0_6 = arith.constant 0 : index
    %c0_7 = arith.constant 0 : index
    %c0_8 = arith.constant 0 : index
    %c0_9 = arith.constant 0 : index
    %10 = vector.load %arg6[%c0_6, %c0_7, %c0_8, %c0_9] : memref<1x4x128x128xbf16, #tpu.memory_space<vmem>>, vector<1x1x128x128xbf16>
    %11 = vector.shape_cast %10 : vector<1x1x128x128xbf16> to vector<128x128xbf16>
    %cst = arith.constant dense<0.000000e+00> : vector<16x128xf32>
    %12 = tpu.matmul %9, %11, %cst {dimension_numbers = #tpu.dot_dimension_numbers<[1], [0], [0], [1], [0, 0, 1, 1], [], []>} : vector<16x128xbf16>, vector<128x128xbf16>, vector<16x128xf32> -> vector<16x128xf32>
    %13 = arith.extui %5 : i1 to i32
    %c0_i32_10 = arith.constant 0 : i32
    %14 = arith.cmpi ne, %13, %c0_i32_10 : i32
    scf.if %14 {
      %c0_46 = arith.constant 0 : index
      %c0_47 = arith.constant 0 : index
      %c0_48 = arith.constant 0 : index
      %106 = vector.load %arg4[%c0_46, %c0_47, %c0_48] : memref<1x32x128xbf16, #tpu.memory_space<vmem>>, vector<1x32x128xbf16>
      %107 = vector.shape_cast %106 : vector<1x32x128xbf16> to vector<32x128xbf16>
      %cst_49 = arith.constant dense<0.000000e+00> : vector<32x256xf32>
      %108 = tpu.matmul %107, %8, %cst_49 {dimension_numbers = #tpu.dot_dimension_numbers<[1], [0], [0], [1], [0, 0, 1, 1], [], []>} : vector<32x128xbf16>, vector<128x256xbf16>, vector<32x256xf32> -> vector<32x256xf32>
      %109 = arith.truncf %12 : vector<16x128xf32> to vector<16x128xbf16>
      %110 = vector.extract_strided_slice %108 {offsets = [0, 0], sizes = [32, 128], strides = [1, 1]} : vector<32x256xf32> to vector<32x128xf32>
      %111 = arith.truncf %110 : vector<32x128xf32> to vector<32x128xbf16>
      %112 = vector.extract_strided_slice %108 {offsets = [0, 128], sizes = [32, 128], strides = [1, 1]} : vector<32x256xf32> to vector<32x128xf32>
      %113 = arith.truncf %112 : vector<32x128xf32> to vector<32x128xbf16>
      %114 = vector.extract_strided_slice %109 {offsets = [0, 0], sizes = [8, 32], strides = [1, 1]} : vector<16x128xbf16> to vector<8x32xbf16>
      %115 = vector.extract_strided_slice %111 {offsets = [0, 0], sizes = [16, 32], strides = [1, 1]} : vector<32x128xbf16> to vector<16x32xbf16>
      %116 = vector.extract_strided_slice %113 {offsets = [0, 0], sizes = [16, 32], strides = [1, 1]} : vector<32x128xbf16> to vector<16x32xbf16>
      %117 = vector.extract_strided_slice %109 {offsets = [8, 0], sizes = [8, 32], strides = [1, 1]} : vector<16x128xbf16> to vector<8x32xbf16>
      %118 = vector.extract_strided_slice %111 {offsets = [16, 0], sizes = [16, 32], strides = [1, 1]} : vector<32x128xbf16> to vector<16x32xbf16>
      %119 = vector.extract_strided_slice %113 {offsets = [16, 0], sizes = [16, 32], strides = [1, 1]} : vector<32x128xbf16> to vector<16x32xbf16>
      %120 = vector.extract_strided_slice %109 {offsets = [0, 32], sizes = [8, 32], strides = [1, 1]} : vector<16x128xbf16> to vector<8x32xbf16>
      %121 = vector.extract_strided_slice %111 {offsets = [0, 32], sizes = [16, 32], strides = [1, 1]} : vector<32x128xbf16> to vector<16x32xbf16>
      %122 = vector.extract_strided_slice %113 {offsets = [0, 32], sizes = [16, 32], strides = [1, 1]} : vector<32x128xbf16> to vector<16x32xbf16>
      %123 = vector.extract_strided_slice %109 {offsets = [8, 32], sizes = [8, 32], strides = [1, 1]} : vector<16x128xbf16> to vector<8x32xbf16>
      %124 = vector.extract_strided_slice %111 {offsets = [16, 32], sizes = [16, 32], strides = [1, 1]} : vector<32x128xbf16> to vector<16x32xbf16>
      %125 = vector.extract_strided_slice %113 {offsets = [16, 32], sizes = [16, 32], strides = [1, 1]} : vector<32x128xbf16> to vector<16x32xbf16>
      %126 = vector.extract_strided_slice %109 {offsets = [0, 64], sizes = [8, 32], strides = [1, 1]} : vector<16x128xbf16> to vector<8x32xbf16>
      %127 = vector.extract_strided_slice %111 {offsets = [0, 64], sizes = [16, 32], strides = [1, 1]} : vector<32x128xbf16> to vector<16x32xbf16>
      %128 = vector.extract_strided_slice %113 {offsets = [0, 64], sizes = [16, 32], strides = [1, 1]} : vector<32x128xbf16> to vector<16x32xbf16>
      %129 = vector.extract_strided_slice %109 {offsets = [8, 64], sizes = [8, 32], strides = [1, 1]} : vector<16x128xbf16> to vector<8x32xbf16>
      %130 = vector.extract_strided_slice %111 {offsets = [16, 64], sizes = [16, 32], strides = [1, 1]} : vector<32x128xbf16> to vector<16x32xbf16>
      %131 = vector.extract_strided_slice %113 {offsets = [16, 64], sizes = [16, 32], strides = [1, 1]} : vector<32x128xbf16> to vector<16x32xbf16>
      %132 = vector.extract_strided_slice %109 {offsets = [0, 96], sizes = [8, 32], strides = [1, 1]} : vector<16x128xbf16> to vector<8x32xbf16>
      %133 = vector.extract_strided_slice %111 {offsets = [0, 96], sizes = [16, 32], strides = [1, 1]} : vector<32x128xbf16> to vector<16x32xbf16>
      %134 = vector.extract_strided_slice %113 {offsets = [0, 96], sizes = [16, 32], strides = [1, 1]} : vector<32x128xbf16> to vector<16x32xbf16>
      %135 = vector.extract_strided_slice %109 {offsets = [8, 96], sizes = [8, 32], strides = [1, 1]} : vector<16x128xbf16> to vector<8x32xbf16>
      %136 = vector.extract_strided_slice %111 {offsets = [16, 96], sizes = [16, 32], strides = [1, 1]} : vector<32x128xbf16> to vector<16x32xbf16>
      %137 = vector.extract_strided_slice %113 {offsets = [16, 96], sizes = [16, 32], strides = [1, 1]} : vector<32x128xbf16> to vector<16x32xbf16>
      %138 = vector.shape_cast %114 : vector<8x32xbf16> to vector<1x8x32xbf16>
      %139 = vector.shape_cast %117 : vector<8x32xbf16> to vector<1x8x32xbf16>
      %140 = vector.shape_cast %120 : vector<8x32xbf16> to vector<1x8x32xbf16>
      %141 = vector.shape_cast %123 : vector<8x32xbf16> to vector<1x8x32xbf16>
      %142 = vector.shape_cast %126 : vector<8x32xbf16> to vector<1x8x32xbf16>
      %143 = vector.shape_cast %129 : vector<8x32xbf16> to vector<1x8x32xbf16>
      %144 = vector.shape_cast %132 : vector<8x32xbf16> to vector<1x8x32xbf16>
      %145 = vector.shape_cast %135 : vector<8x32xbf16> to vector<1x8x32xbf16>
      %146 = tpu.concatenate %138, %139, %140, %141, %142, %143, %144, %145 in 0 : vector<1x8x32xbf16>, vector<1x8x32xbf16>, vector<1x8x32xbf16>, vector<1x8x32xbf16>, vector<1x8x32xbf16>, vector<1x8x32xbf16>, vector<1x8x32xbf16>, vector<1x8x32xbf16> -> vector<8x8x32xbf16>
      %147 = vector.shape_cast %115 : vector<16x32xbf16> to vector<1x16x32xbf16>
      %148 = vector.shape_cast %118 : vector<16x32xbf16> to vector<1x16x32xbf16>
      %149 = vector.shape_cast %121 : vector<16x32xbf16> to vector<1x16x32xbf16>
      %150 = vector.shape_cast %124 : vector<16x32xbf16> to vector<1x16x32xbf16>
      %151 = vector.shape_cast %127 : vector<16x32xbf16> to vector<1x16x32xbf16>
      %152 = vector.shape_cast %130 : vector<16x32xbf16> to vector<1x16x32xbf16>
      %153 = vector.shape_cast %133 : vector<16x32xbf16> to vector<1x16x32xbf16>
      %154 = vector.shape_cast %136 : vector<16x32xbf16> to vector<1x16x32xbf16>
      %155 = tpu.concatenate %147, %148, %149, %150, %151, %152, %153, %154 in 0 : vector<1x16x32xbf16>, vector<1x16x32xbf16>, vector<1x16x32xbf16>, vector<1x16x32xbf16>, vector<1x16x32xbf16>, vector<1x16x32xbf16>, vector<1x16x32xbf16>, vector<1x16x32xbf16> -> vector<8x16x32xbf16>
      %156 = vector.shape_cast %116 : vector<16x32xbf16> to vector<1x16x32xbf16>
      %157 = vector.shape_cast %119 : vector<16x32xbf16> to vector<1x16x32xbf16>
      %158 = vector.shape_cast %122 : vector<16x32xbf16> to vector<1x16x32xbf16>
      %159 = vector.shape_cast %125 : vector<16x32xbf16> to vector<1x16x32xbf16>
      %160 = vector.shape_cast %128 : vector<16x32xbf16> to vector<1x16x32xbf16>
      %161 = vector.shape_cast %131 : vector<16x32xbf16> to vector<1x16x32xbf16>
      %162 = vector.shape_cast %134 : vector<16x32xbf16> to vector<1x16x32xbf16>
      %163 = vector.shape_cast %137 : vector<16x32xbf16> to vector<1x16x32xbf16>
      %164 = tpu.concatenate %156, %157, %158, %159, %160, %161, %162, %163 in 0 : vector<1x16x32xbf16>, vector<1x16x32xbf16>, vector<1x16x32xbf16>, vector<1x16x32xbf16>, vector<1x16x32xbf16>, vector<1x16x32xbf16>, vector<1x16x32xbf16>, vector<1x16x32xbf16> -> vector<8x16x32xbf16>
      "tpu.trace_start"() <{level = 10 : i32, message = "gtd,gsd->gts"}> : () -> ()
      %cst_50 = arith.constant dense<0.000000e+00> : vector<8x8x16xf32>
      %165 = tpu.matmul %146, %155, %cst_50 {dimension_numbers = #tpu.dot_dimension_numbers<[2], [2], [1], [1], [0, 0, 0, 1, 1, 1], [0], [0]>} : vector<8x8x32xbf16>, vector<8x16x32xbf16>, vector<8x8x16xf32> -> vector<8x8x16xf32>
      "tpu.trace_stop"() : () -> ()
      %cst_51 = arith.constant dense<0xFF800000> : vector<8x8xf32>
      %166 = vector.multi_reduction <maximumf>, %165, %cst_51 [2] : vector<8x8x16xf32> to vector<8x8xf32>
      %167 = vector.shape_cast %166 : vector<8x8xf32> to vector<8x8x1xf32>
      %168 = vector.broadcast %167 : vector<8x8x1xf32> to vector<8x8x16xf32>
      %169 = arith.subf %165, %168 : vector<8x8x16xf32>
      %170 = math.exp %169 : vector<8x8x16xf32>
      %cst_52 = arith.constant dense<0.000000e+00> : vector<8x8xf32>
      %171 = vector.multi_reduction <add>, %170, %cst_52 [2] : vector<8x8x16xf32> to vector<8x8xf32>
      %172 = vector.shape_cast %171 : vector<8x8xf32> to vector<8x8x1xf32>
      %173 = tpu.reciprocal %172 {approx = true} : vector<8x8x1xf32> -> vector<8x8x1xf32>
      %174 = vector.broadcast %173 : vector<8x8x1xf32> to vector<8x8x16xf32>
      %175 = arith.mulf %170, %174 : vector<8x8x16xf32>
      %176 = arith.truncf %175 : vector<8x8x16xf32> to vector<8x8x16xbf16>
      "tpu.trace_start"() <{level = 10 : i32, message = "gts,gsd->gtd"}> : () -> ()
      %cst_53 = arith.constant dense<0.000000e+00> : vector<8x8x32xf32>
      %177 = tpu.matmul %176, %164, %cst_53 {dimension_numbers = #tpu.dot_dimension_numbers<[2], [1], [1], [2], [0, 0, 0, 1, 1, 2], [0], [0]>} : vector<8x8x16xbf16>, vector<8x16x32xbf16>, vector<8x8x32xf32> -> vector<8x8x32xf32>
      "tpu.trace_stop"() : () -> ()
      %178 = vector.extract_strided_slice %177 {offsets = [0, 0, 0], sizes = [1, 8, 32], strides = [1, 1, 1]} : vector<8x8x32xf32> to vector<1x8x32xf32>
      %179 = vector.shape_cast %178 : vector<1x8x32xf32> to vector<8x32xf32>
      %180 = vector.extract_strided_slice %177 {offsets = [1, 0, 0], sizes = [1, 8, 32], strides = [1, 1, 1]} : vector<8x8x32xf32> to vector<1x8x32xf32>
      %181 = vector.shape_cast %180 : vector<1x8x32xf32> to vector<8x32xf32>
      %182 = tpu.concatenate %179, %181 in 0 : vector<8x32xf32>, vector<8x32xf32> -> vector<16x32xf32>
      %183 = vector.extract_strided_slice %177 {offsets = [2, 0, 0], sizes = [1, 8, 32], strides = [1, 1, 1]} : vector<8x8x32xf32> to vector<1x8x32xf32>
      %184 = vector.shape_cast %183 : vector<1x8x32xf32> to vector<8x32xf32>
      %185 = vector.extract_strided_slice %177 {offsets = [3, 0, 0], sizes = [1, 8, 32], strides = [1, 1, 1]} : vector<8x8x32xf32> to vector<1x8x32xf32>
      %186 = vector.shape_cast %185 : vector<1x8x32xf32> to vector<8x32xf32>
      %187 = tpu.concatenate %184, %186 in 0 : vector<8x32xf32>, vector<8x32xf32> -> vector<16x32xf32>
      %188 = vector.extract_strided_slice %177 {offsets = [4, 0, 0], sizes = [1, 8, 32], strides = [1, 1, 1]} : vector<8x8x32xf32> to vector<1x8x32xf32>
      %189 = vector.shape_cast %188 : vector<1x8x32xf32> to vector<8x32xf32>
      %190 = vector.extract_strided_slice %177 {offsets = [5, 0, 0], sizes = [1, 8, 32], strides = [1, 1, 1]} : vector<8x8x32xf32> to vector<1x8x32xf32>
      %191 = vector.shape_cast %190 : vector<1x8x32xf32> to vector<8x32xf32>
      %192 = tpu.concatenate %189, %191 in 0 : vector<8x32xf32>, vector<8x32xf32> -> vector<16x32xf32>
      %193 = vector.extract_strided_slice %177 {offsets = [6, 0, 0], sizes = [1, 8, 32], strides = [1, 1, 1]} : vector<8x8x32xf32> to vector<1x8x32xf32>
      %194 = vector.shape_cast %193 : vector<1x8x32xf32> to vector<8x32xf32>
      %195 = vector.extract_strided_slice %177 {offsets = [7, 0, 0], sizes = [1, 8, 32], strides = [1, 1, 1]} : vector<8x8x32xf32> to vector<1x8x32xf32>
      %196 = vector.shape_cast %195 : vector<1x8x32xf32> to vector<8x32xf32>
      %197 = tpu.concatenate %194, %196 in 0 : vector<8x32xf32>, vector<8x32xf32> -> vector<16x32xf32>
      %198 = tpu.concatenate %182, %187, %192, %197 in 1 : vector<16x32xf32>, vector<16x32xf32>, vector<16x32xf32>, vector<16x32xf32> -> vector<16x128xf32>
      %c0_54 = arith.constant 0 : index
      %c0_55 = arith.constant 0 : index
      %199 = vector.load %arg10[%c0_54, %c0_55] : memref<16x128xf32, #tpu.memory_space<vmem>>, vector<16x128xf32>
      tpu.vector_store %arg10[%c0_54, %c0_55], %198 {strides = array<i32>} : memref<16x128xf32, #tpu.memory_space<vmem>>, vector<16x128xf32>,
    } else {
    }
    %true = arith.constant true
    %15 = arith.xori %5, %true : i1
    %16 = arith.extui %15 : i1 to i32
    %c0_i32_11 = arith.constant 0 : i32
    %17 = arith.cmpi ne, %16, %c0_i32_11 : i32
    scf.if %17 {
      %106 = arith.truncf %6 : vector<16x128xf32> to vector<16x128xbf16>
      %cst_46 = arith.constant dense<0.000000e+00> : vector<16x256xf32>
      %107 = tpu.matmul %106, %8, %cst_46 {dimension_numbers = #tpu.dot_dimension_numbers<[1], [0], [0], [1], [0, 0, 1, 1], [], []>} : vector<16x128xbf16>, vector<128x256xbf16>, vector<16x256xf32> -> vector<16x256xf32>
      %108 = arith.truncf %12 : vector<16x128xf32> to vector<16x128xbf16>
      %109 = vector.extract_strided_slice %107 {offsets = [0, 0], sizes = [16, 128], strides = [1, 1]} : vector<16x256xf32> to vector<16x128xf32>
      %110 = arith.truncf %109 : vector<16x128xf32> to vector<16x128xbf16>
      %111 = vector.extract_strided_slice %107 {offsets = [0, 128], sizes = [16, 128], strides = [1, 1]} : vector<16x256xf32> to vector<16x128xf32>
      %112 = arith.truncf %111 : vector<16x128xf32> to vector<16x128xbf16>
      %113 = vector.extract_strided_slice %108 {offsets = [0, 0], sizes = [8, 32], strides = [1, 1]} : vector<16x128xbf16> to vector<8x32xbf16>
      %114 = vector.extract_strided_slice %110 {offsets = [0, 0], sizes = [8, 32], strides = [1, 1]} : vector<16x128xbf16> to vector<8x32xbf16>
      %115 = vector.extract_strided_slice %112 {offsets = [0, 0], sizes = [8, 32], strides = [1, 1]} : vector<16x128xbf16> to vector<8x32xbf16>
      %116 = vector.extract_strided_slice %108 {offsets = [8, 0], sizes = [8, 32], strides = [1, 1]} : vector<16x128xbf16> to vector<8x32xbf16>
      %117 = vector.extract_strided_slice %110 {offsets = [8, 0], sizes = [8, 32], strides = [1, 1]} : vector<16x128xbf16> to vector<8x32xbf16>
      %118 = vector.extract_strided_slice %112 {offsets = [8, 0], sizes = [8, 32], strides = [1, 1]} : vector<16x128xbf16> to vector<8x32xbf16>
      %119 = vector.extract_strided_slice %108 {offsets = [0, 32], sizes = [8, 32], strides = [1, 1]} : vector<16x128xbf16> to vector<8x32xbf16>
      %120 = vector.extract_strided_slice %110 {offsets = [0, 32], sizes = [8, 32], strides = [1, 1]} : vector<16x128xbf16> to vector<8x32xbf16>
      %121 = vector.extract_strided_slice %112 {offsets = [0, 32], sizes = [8, 32], strides = [1, 1]} : vector<16x128xbf16> to vector<8x32xbf16>
      %122 = vector.extract_strided_slice %108 {offsets = [8, 32], sizes = [8, 32], strides = [1, 1]} : vector<16x128xbf16> to vector<8x32xbf16>
      %123 = vector.extract_strided_slice %110 {offsets = [8, 32], sizes = [8, 32], strides = [1, 1]} : vector<16x128xbf16> to vector<8x32xbf16>
      %124 = vector.extract_strided_slice %112 {offsets = [8, 32], sizes = [8, 32], strides = [1, 1]} : vector<16x128xbf16> to vector<8x32xbf16>
      %125 = vector.extract_strided_slice %108 {offsets = [0, 64], sizes = [8, 32], strides = [1, 1]} : vector<16x128xbf16> to vector<8x32xbf16>
      %126 = vector.extract_strided_slice %110 {offsets = [0, 64], sizes = [8, 32], strides = [1, 1]} : vector<16x128xbf16> to vector<8x32xbf16>
      %127 = vector.extract_strided_slice %112 {offsets = [0, 64], sizes = [8, 32], strides = [1, 1]} : vector<16x128xbf16> to vector<8x32xbf16>
      %128 = vector.extract_strided_slice %108 {offsets = [8, 64], sizes = [8, 32], strides = [1, 1]} : vector<16x128xbf16> to vector<8x32xbf16>
      %129 = vector.extract_strided_slice %110 {offsets = [8, 64], sizes = [8, 32], strides = [1, 1]} : vector<16x128xbf16> to vector<8x32xbf16>
      %130 = vector.extract_strided_slice %112 {offsets = [8, 64], sizes = [8, 32], strides = [1, 1]} : vector<16x128xbf16> to vector<8x32xbf16>
      %131 = vector.extract_strided_slice %108 {offsets = [0, 96], sizes = [8, 32], strides = [1, 1]} : vector<16x128xbf16> to vector<8x32xbf16>
      %132 = vector.extract_strided_slice %110 {offsets = [0, 96], sizes = [8, 32], strides = [1, 1]} : vector<16x128xbf16> to vector<8x32xbf16>
      %133 = vector.extract_strided_slice %112 {offsets = [0, 96], sizes = [8, 32], strides = [1, 1]} : vector<16x128xbf16> to vector<8x32xbf16>
      %134 = vector.extract_strided_slice %108 {offsets = [8, 96], sizes = [8, 32], strides = [1, 1]} : vector<16x128xbf16> to vector<8x32xbf16>
      %135 = vector.extract_strided_slice %110 {offsets = [8, 96], sizes = [8, 32], strides = [1, 1]} : vector<16x128xbf16> to vector<8x32xbf16>
      %136 = vector.extract_strided_slice %112 {offsets = [8, 96], sizes = [8, 32], strides = [1, 1]} : vector<16x128xbf16> to vector<8x32xbf16>
      %137 = vector.shape_cast %113 : vector<8x32xbf16> to vector<1x8x32xbf16>
      %138 = vector.shape_cast %116 : vector<8x32xbf16> to vector<1x8x32xbf16>
      %139 = vector.shape_cast %119 : vector<8x32xbf16> to vector<1x8x32xbf16>
      %140 = vector.shape_cast %122 : vector<8x32xbf16> to vector<1x8x32xbf16>
      %141 = vector.shape_cast %125 : vector<8x32xbf16> to vector<1x8x32xbf16>
      %142 = vector.shape_cast %128 : vector<8x32xbf16> to vector<1x8x32xbf16>
      %143 = vector.shape_cast %131 : vector<8x32xbf16> to vector<1x8x32xbf16>
      %144 = vector.shape_cast %134 : vector<8x32xbf16> to vector<1x8x32xbf16>
      %145 = tpu.concatenate %137, %138, %139, %140, %141, %142, %143, %144 in 0 : vector<1x8x32xbf16>, vector<1x8x32xbf16>, vector<1x8x32xbf16>, vector<1x8x32xbf16>, vector<1x8x32xbf16>, vector<1x8x32xbf16>, vector<1x8x32xbf16>, vector<1x8x32xbf16> -> vector<8x8x32xbf16>
      %146 = vector.shape_cast %114 : vector<8x32xbf16> to vector<1x8x32xbf16>
      %147 = vector.shape_cast %117 : vector<8x32xbf16> to vector<1x8x32xbf16>
      %148 = vector.shape_cast %120 : vector<8x32xbf16> to vector<1x8x32xbf16>
      %149 = vector.shape_cast %123 : vector<8x32xbf16> to vector<1x8x32xbf16>
      %150 = vector.shape_cast %126 : vector<8x32xbf16> to vector<1x8x32xbf16>
      %151 = vector.shape_cast %129 : vector<8x32xbf16> to vector<1x8x32xbf16>
      %152 = vector.shape_cast %132 : vector<8x32xbf16> to vector<1x8x32xbf16>
      %153 = vector.shape_cast %135 : vector<8x32xbf16> to vector<1x8x32xbf16>
      %154 = tpu.concatenate %146, %147, %148, %149, %150, %151, %152, %153 in 0 : vector<1x8x32xbf16>, vector<1x8x32xbf16>, vector<1x8x32xbf16>, vector<1x8x32xbf16>, vector<1x8x32xbf16>, vector<1x8x32xbf16>, vector<1x8x32xbf16>, vector<1x8x32xbf16> -> vector<8x8x32xbf16>
      %155 = vector.shape_cast %115 : vector<8x32xbf16> to vector<1x8x32xbf16>
      %156 = vector.shape_cast %118 : vector<8x32xbf16> to vector<1x8x32xbf16>
      %157 = vector.shape_cast %121 : vector<8x32xbf16> to vector<1x8x32xbf16>
      %158 = vector.shape_cast %124 : vector<8x32xbf16> to vector<1x8x32xbf16>
      %159 = vector.shape_cast %127 : vector<8x32xbf16> to vector<1x8x32xbf16>
      %160 = vector.shape_cast %130 : vector<8x32xbf16> to vector<1x8x32xbf16>
      %161 = vector.shape_cast %133 : vector<8x32xbf16> to vector<1x8x32xbf16>
      %162 = vector.shape_cast %136 : vector<8x32xbf16> to vector<1x8x32xbf16>
      %163 = tpu.concatenate %155, %156, %157, %158, %159, %160, %161, %162 in 0 : vector<1x8x32xbf16>, vector<1x8x32xbf16>, vector<1x8x32xbf16>, vector<1x8x32xbf16>, vector<1x8x32xbf16>, vector<1x8x32xbf16>, vector<1x8x32xbf16>, vector<1x8x32xbf16> -> vector<8x8x32xbf16>
      "tpu.trace_start"() <{level = 10 : i32, message = "gtd,gsd->gts"}> : () -> ()
      %cst_47 = arith.constant dense<0.000000e+00> : vector<8x8x8xf32>
      %164 = tpu.matmul %145, %154, %cst_47 {dimension_numbers = #tpu.dot_dimension_numbers<[2], [2], [1], [1], [0, 0, 0, 1, 1, 1], [0], [0]>} : vector<8x8x32xbf16>, vector<8x8x32xbf16>, vector<8x8x8xf32> -> vector<8x8x8xf32>
      "tpu.trace_stop"() : () -> ()
      %cst_48 = arith.constant dense<0xFF800000> : vector<8x8xf32>
      %165 = vector.multi_reduction <maximumf>, %164, %cst_48 [2] : vector<8x8x8xf32> to vector<8x8xf32>
      %166 = vector.shape_cast %165 : vector<8x8xf32> to vector<8x8x1xf32>
      %167 = vector.broadcast %166 : vector<8x8x1xf32> to vector<8x8x8xf32>
      %168 = arith.subf %164, %167 : vector<8x8x8xf32>
      %169 = math.exp %168 : vector<8x8x8xf32>
      %cst_49 = arith.constant dense<0.000000e+00> : vector<8x8xf32>
      %170 = vector.multi_reduction <add>, %169, %cst_49 [2] : vector<8x8x8xf32> to vector<8x8xf32>
      %171 = vector.shape_cast %170 : vector<8x8xf32> to vector<8x8x1xf32>
      %172 = tpu.reciprocal %171 {approx = true} : vector<8x8x1xf32> -> vector<8x8x1xf32>
      %173 = vector.broadcast %172 : vector<8x8x1xf32> to vector<8x8x8xf32>
      %174 = arith.mulf %169, %173 : vector<8x8x8xf32>
      %175 = arith.truncf %174 : vector<8x8x8xf32> to vector<8x8x8xbf16>
      "tpu.trace_start"() <{level = 10 : i32, message = "gts,gsd->gtd"}> : () -> ()
      %cst_50 = arith.constant dense<0.000000e+00> : vector<8x8x32xf32>
      %176 = tpu.matmul %175, %163, %cst_50 {dimension_numbers = #tpu.dot_dimension_numbers<[2], [1], [1], [2], [0, 0, 0, 1, 1, 2], [0], [0]>} : vector<8x8x8xbf16>, vector<8x8x32xbf16>, vector<8x8x32xf32> -> vector<8x8x32xf32>
      "tpu.trace_stop"() : () -> ()
      %177 = vector.extract_strided_slice %176 {offsets = [0, 0, 0], sizes = [1, 8, 32], strides = [1, 1, 1]} : vector<8x8x32xf32> to vector<1x8x32xf32>
      %178 = vector.shape_cast %177 : vector<1x8x32xf32> to vector<8x32xf32>
      %179 = vector.extract_strided_slice %176 {offsets = [1, 0, 0], sizes = [1, 8, 32], strides = [1, 1, 1]} : vector<8x8x32xf32> to vector<1x8x32xf32>
      %180 = vector.shape_cast %179 : vector<1x8x32xf32> to vector<8x32xf32>
      %181 = tpu.concatenate %178, %180 in 0 : vector<8x32xf32>, vector<8x32xf32> -> vector<16x32xf32>
      %182 = vector.extract_strided_slice %176 {offsets = [2, 0, 0], sizes = [1, 8, 32], strides = [1, 1, 1]} : vector<8x8x32xf32> to vector<1x8x32xf32>
      %183 = vector.shape_cast %182 : vector<1x8x32xf32> to vector<8x32xf32>
      %184 = vector.extract_strided_slice %176 {offsets = [3, 0, 0], sizes = [1, 8, 32], strides = [1, 1, 1]} : vector<8x8x32xf32> to vector<1x8x32xf32>
      %185 = vector.shape_cast %184 : vector<1x8x32xf32> to vector<8x32xf32>
      %186 = tpu.concatenate %183, %185 in 0 : vector<8x32xf32>, vector<8x32xf32> -> vector<16x32xf32>
      %187 = vector.extract_strided_slice %176 {offsets = [4, 0, 0], sizes = [1, 8, 32], strides = [1, 1, 1]} : vector<8x8x32xf32> to vector<1x8x32xf32>
      %188 = vector.shape_cast %187 : vector<1x8x32xf32> to vector<8x32xf32>
      %189 = vector.extract_strided_slice %176 {offsets = [5, 0, 0], sizes = [1, 8, 32], strides = [1, 1, 1]} : vector<8x8x32xf32> to vector<1x8x32xf32>
      %190 = vector.shape_cast %189 : vector<1x8x32xf32> to vector<8x32xf32>
      %191 = tpu.concatenate %188, %190 in 0 : vector<8x32xf32>, vector<8x32xf32> -> vector<16x32xf32>
      %192 = vector.extract_strided_slice %176 {offsets = [6, 0, 0], sizes = [1, 8, 32], strides = [1, 1, 1]} : vector<8x8x32xf32> to vector<1x8x32xf32>
      %193 = vector.shape_cast %192 : vector<1x8x32xf32> to vector<8x32xf32>
      %194 = vector.extract_strided_slice %176 {offsets = [7, 0, 0], sizes = [1, 8, 32], strides = [1, 1, 1]} : vector<8x8x32xf32> to vector<1x8x32xf32>
      %195 = vector.shape_cast %194 : vector<1x8x32xf32> to vector<8x32xf32>
      %196 = tpu.concatenate %193, %195 in 0 : vector<8x32xf32>, vector<8x32xf32> -> vector<16x32xf32>
      %197 = tpu.concatenate %181, %186, %191, %196 in 1 : vector<16x32xf32>, vector<16x32xf32>, vector<16x32xf32>, vector<16x32xf32> -> vector<16x128xf32>
      %c0_51 = arith.constant 0 : index
      %c0_52 = arith.constant 0 : index
      %198 = vector.load %arg10[%c0_51, %c0_52] : memref<16x128xf32, #tpu.memory_space<vmem>>, vector<16x128xf32>
      tpu.vector_store %arg10[%c0_51, %c0_52], %197 {strides = array<i32>} : memref<16x128xf32, #tpu.memory_space<vmem>>, vector<16x128xf32>,
    } else {
    }
    %c0_12 = arith.constant 0 : index
    %c0_13 = arith.constant 0 : index
    %c0_14 = arith.constant 0 : index
    %18 = vector.load %arg7[%c0_12, %c0_13, %c0_14] : memref<1x6x128xf32, #tpu.memory_space<vmem>>, vector<1x6x128xf32>
    %19 = vector.shape_cast %18 : vector<1x6x128xf32> to vector<6x128xf32>
    %20 = vector.extract_strided_slice %19 {offsets = [0, 0], sizes = [1, 128], strides = [1, 1]} : vector<6x128xf32> to vector<1x128xf32>
    %21 = vector.extract_strided_slice %19 {offsets = [1, 0], sizes = [1, 128], strides = [1, 1]} : vector<6x128xf32> to vector<1x128xf32>
    %22 = vector.extract_strided_slice %19 {offsets = [2, 0], sizes = [1, 128], strides = [1, 1]} : vector<6x128xf32> to vector<1x128xf32>
    %23 = vector.extract_strided_slice %19 {offsets = [3, 0], sizes = [1, 128], strides = [1, 1]} : vector<6x128xf32> to vector<1x128xf32>
    %24 = vector.extract_strided_slice %19 {offsets = [4, 0], sizes = [1, 128], strides = [1, 1]} : vector<6x128xf32> to vector<1x128xf32>
    %25 = vector.extract_strided_slice %19 {offsets = [5, 0], sizes = [1, 128], strides = [1, 1]} : vector<6x128xf32> to vector<1x128xf32>
    %c0_15 = arith.constant 0 : index
    %c0_16 = arith.constant 0 : index
    %26 = vector.load %arg10[%c0_15, %c0_16] : memref<16x128xf32, #tpu.memory_space<vmem>>, vector<16x128xf32>
    %27 = arith.truncf %26 : vector<16x128xf32> to vector<16x128xbf16>
    %c0_17 = arith.constant 0 : index
    %c1 = arith.constant 1 : index
    %c0_18 = arith.constant 0 : index
    %c0_19 = arith.constant 0 : index
    %28 = vector.load %arg6[%c0_17, %c1, %c0_18, %c0_19] : memref<1x4x128x128xbf16, #tpu.memory_space<vmem>>, vector<1x1x128x128xbf16>
    %29 = vector.shape_cast %28 : vector<1x1x128x128xbf16> to vector<128x128xbf16>
    %cst_20 = arith.constant dense<0.000000e+00> : vector<16x128xf32>
    %30 = tpu.matmul %27, %29, %cst_20 {dimension_numbers = #tpu.dot_dimension_numbers<[1], [0], [0], [1], [0, 0, 1, 1], [], []>} : vector<16x128xbf16>, vector<128x128xbf16>, vector<16x128xf32> -> vector<16x128xf32>
    %cst_21 = arith.constant dense<0.000000e+00> : vector<16xf32>
    %31 = vector.multi_reduction <add>, %30, %cst_21 [1] : vector<16x128xf32> to vector<16xf32>
    %32 = vector.shape_cast %31 : vector<16xf32> to vector<16x1xf32>
    %cst_22 = arith.constant 7.812500e-03 : f32
    %33 = vector.broadcast %cst_22 : f32 to vector<16x1xf32>
    %34 = arith.mulf %32, %33 : vector<16x1xf32>
    %35 = arith.mulf %30, %30 : vector<16x128xf32>
    %cst_23 = arith.constant dense<0.000000e+00> : vector<16xf32>
    %36 = vector.multi_reduction <add>, %35, %cst_23 [1] : vector<16x128xf32> to vector<16xf32>
    %37 = vector.shape_cast %36 : vector<16xf32> to vector<16x1xf32>
    %cst_24 = arith.constant 7.812500e-03 : f32
    %38 = vector.broadcast %cst_24 : f32 to vector<16x1xf32>
    %39 = arith.mulf %37, %38 : vector<16x1xf32>
    %40 = arith.mulf %34, %34 : vector<16x1xf32>
    %41 = arith.subf %39, %40 : vector<16x1xf32>
    %42 = vector.broadcast %34 : vector<16x1xf32> to vector<16x128xf32>
    %43 = arith.subf %30, %42 : vector<16x128xf32>
    %cst_25 = arith.constant 9.99999974E-6 : f32
    %44 = vector.broadcast %cst_25 : f32 to vector<16x1xf32>
    %45 = arith.addf %41, %44 : vector<16x1xf32>
    %46 = math.rsqrt %45 : vector<16x1xf32>
    %47 = vector.broadcast %46 : vector<16x1xf32> to vector<16x128xf32>
    %48 = arith.mulf %43, %47 : vector<16x128xf32>
    %49 = vector.broadcast %20 : vector<1x128xf32> to vector<16x128xf32>
    %50 = arith.mulf %48, %49 : vector<16x128xf32>
    %51 = vector.broadcast %21 : vector<1x128xf32> to vector<16x128xf32>
    %52 = arith.addf %50, %51 : vector<16x128xf32>
    %53 = arith.addf %52, %6 : vector<16x128xf32>
    %54 = arith.truncf %53 : vector<16x128xf32> to vector<16x128xbf16>
    %c0_26 = arith.constant 0 : index
    %c2 = arith.constant 2 : index
    %c0_27 = arith.constant 0 : index
    %c0_28 = arith.constant 0 : index
    %55 = vector.load %arg6[%c0_26, %c2, %c0_27, %c0_28] : memref<1x4x128x128xbf16, #tpu.memory_space<vmem>>, vector<1x1x128x128xbf16>
    %56 = vector.shape_cast %55 : vector<1x1x128x128xbf16> to vector<128x128xbf16>
    %cst_29 = arith.constant dense<0.000000e+00> : vector<16x128xf32>
    %57 = tpu.matmul %54, %56, %cst_29 {dimension_numbers = #tpu.dot_dimension_numbers<[1], [0], [0], [1], [0, 0, 1, 1], [], []>} : vector<16x128xbf16>, vector<128x128xbf16>, vector<16x128xf32> -> vector<16x128xf32>
    %58 = vector.broadcast %22 : vector<1x128xf32> to vector<16x128xf32>
    %59 = arith.addf %57, %58 : vector<16x128xf32>
    %60 = arith.mulf %59, %59 : vector<16x128xf32>
    %61 = arith.mulf %59, %60 : vector<16x128xf32>
    %cst_30 = arith.constant 4.471500e-02 : f32
    %62 = vector.broadcast %cst_30 : f32 to vector<16x128xf32>
    %63 = arith.mulf %62, %61 : vector<16x128xf32>
    %64 = arith.addf %59, %63 : vector<16x128xf32>
    %cst_31 = arith.constant 0.797884583 : f32
    %65 = vector.broadcast %cst_31 : f32 to vector<16x128xf32>
    %66 = arith.mulf %65, %64 : vector<16x128xf32>
    %67 = math.tanh %66 : vector<16x128xf32>
    %cst_32 = arith.constant 1.000000e+00 : f32
    %68 = vector.broadcast %cst_32 : f32 to vector<16x128xf32>
    %69 = arith.addf %68, %67 : vector<16x128xf32>
    %cst_33 = arith.constant 5.000000e-01 : f32
    %70 = vector.broadcast %cst_33 : f32 to vector<16x128xf32>
    %71 = arith.mulf %70, %69 : vector<16x128xf32>
    %72 = arith.mulf %59, %71 : vector<16x128xf32>
    %73 = arith.truncf %72 : vector<16x128xf32> to vector<16x128xbf16>
    %c0_34 = arith.constant 0 : index
    %c3 = arith.constant 3 : index
    %c0_35 = arith.constant 0 : index
    %c0_36 = arith.constant 0 : index
    %74 = vector.load %arg6[%c0_34, %c3, %c0_35, %c0_36] : memref<1x4x128x128xbf16, #tpu.memory_space<vmem>>, vector<1x1x128x128xbf16>
    %75 = vector.shape_cast %74 : vector<1x1x128x128xbf16> to vector<128x128xbf16>
    %cst_37 = arith.constant dense<0.000000e+00> : vector<16x128xf32>
    %76 = tpu.matmul %73, %75, %cst_37 {dimension_numbers = #tpu.dot_dimension_numbers<[1], [0], [0], [1], [0, 0, 1, 1], [], []>} : vector<16x128xbf16>, vector<128x128xbf16>, vector<16x128xf32> -> vector<16x128xf32>
    %77 = vector.broadcast %23 : vector<1x128xf32> to vector<16x128xf32>
    %78 = arith.addf %76, %77 : vector<16x128xf32>
    %cst_38 = arith.constant dense<0.000000e+00> : vector<16xf32>
    %79 = vector.multi_reduction <add>, %78, %cst_38 [1] : vector<16x128xf32> to vector<16xf32>
    %80 = vector.shape_cast %79 : vector<16xf32> to vector<16x1xf32>
    %cst_39 = arith.constant 7.812500e-03 : f32
    %81 = vector.broadcast %cst_39 : f32 to vector<16x1xf32>
    %82 = arith.mulf %80, %81 : vector<16x1xf32>
    %83 = arith.mulf %78, %78 : vector<16x128xf32>
    %cst_40 = arith.constant dense<0.000000e+00> : vector<16xf32>
    %84 = vector.multi_reduction <add>, %83, %cst_40 [1] : vector<16x128xf32> to vector<16xf32>
    %85 = vector.shape_cast %84 : vector<16xf32> to vector<16x1xf32>
    %cst_41 = arith.constant 7.812500e-03 : f32
    %86 = vector.broadcast %cst_41 : f32 to vector<16x1xf32>
    %87 = arith.mulf %85, %86 : vector<16x1xf32>
    %88 = arith.mulf %82, %82 : vector<16x1xf32>
    %89 = arith.subf %87, %88 : vector<16x1xf32>
    %90 = vector.broadcast %82 : vector<16x1xf32> to vector<16x128xf32>
    %91 = arith.subf %78, %90 : vector<16x128xf32>
    %cst_42 = arith.constant 9.99999974E-6 : f32
    %92 = vector.broadcast %cst_42 : f32 to vector<16x1xf32>
    %93 = arith.addf %89, %92 : vector<16x1xf32>
    %94 = math.rsqrt %93 : vector<16x1xf32>
    %95 = vector.broadcast %94 : vector<16x1xf32> to vector<16x128xf32>
    %96 = arith.mulf %91, %95 : vector<16x128xf32>
    %97 = vector.broadcast %24 : vector<1x128xf32> to vector<16x128xf32>
    %98 = arith.mulf %96, %97 : vector<16x128xf32>
    %99 = vector.broadcast %25 : vector<1x128xf32> to vector<16x128xf32>
    %100 = arith.addf %98, %99 : vector<16x128xf32>
    %101 = arith.addf %100, %53 : vector<16x128xf32>
    %c0_43 = arith.constant 0 : index
    %c0_44 = arith.constant 0 : index
    %102 = vector.load %arg9[%c0_43, %c0_44] : memref<16x128xf32, #tpu.memory_space<vmem>>, vector<16x128xf32>
    tpu.vector_store %arg9[%c0_43, %c0_44], %101 {strides = array<i32>} : memref<16x128xf32, #tpu.memory_space<vmem>>, vector<16x128xf32>,
    %c2_i32 = arith.constant 2 : i32
    %103 = arith.cmpi eq, %arg1, %c2_i32 : i32
    %104 = arith.extui %103 : i1 to i32
    %c0_i32_45 = arith.constant 0 : i32
    %105 = arith.cmpi ne, %104, %c0_i32_45 : i32
    scf.if %105 {
      %c0_46 = arith.constant 0 : index
      %c0_47 = arith.constant 0 : index
      %c0_48 = arith.constant 0 : index
      %106 = vector.load %arg8[%c0_46, %c0_47, %c0_48] : memref<1x16x128xf32, #tpu.memory_space<vmem>>, vector<1x16x128xf32>
      %107 = vector.shape_cast %106 : vector<1x16x128xf32> to vector<16x128xf32>
      %108 = vector.shape_cast %101 : vector<16x128xf32> to vector<1x16x128xf32>
      tpu.vector_store %arg8[%c0_46, %c0_47, %c0_48], %108 {strides = array<i32>} : memref<1x16x128xf32, #tpu.memory_space<vmem>>, vector<1x16x128xf32>,
    } else {
    }
    return
  }
  func.func @transform_0(%arg0: i32, %arg1: i32, %arg2: memref<3xi32, #tpu.memory_space<smem>>) -> (i32, i32, i32) {
    %c0_i32 = arith.constant 0 : i32
    %c0_i32_0 = arith.constant 0 : i32
    %c0_i32_1 = arith.constant 0 : i32
    return %arg0, %c0_i32, %c0_i32_0 : i32, i32, i32
  }
  func.func @transform_1(%arg0: i32, %arg1: i32, %arg2: memref<3xi32, #tpu.memory_space<smem>>) -> (i32, i32, i32) {
    %c0_i32 = arith.constant 0 : i32
    %c0_i32_0 = arith.constant 0 : i32
    %c0_i32_1 = arith.constant 0 : i32
    return %arg0, %c0_i32, %c0_i32_0 : i32, i32, i32
  }
  func.func @transform_2(%arg0: i32, %arg1: i32, %arg2: memref<3xi32, #tpu.memory_space<smem>>) -> (i32, i32, i32) {
    %c0_i32 = arith.constant 0 : i32
    %c0_i32_0 = arith.constant 0 : i32
    %c0_i32_1 = arith.constant 0 : i32
    return %arg1, %c0_i32, %c0_i32_0 : i32, i32, i32
  }
  func.func @transform_3(%arg0: i32, %arg1: i32, %arg2: memref<3xi32, #tpu.memory_space<smem>>) -> (i32, i32, i32, i32) {
    %c0_i32 = arith.constant 0 : i32
    %c0_i32_0 = arith.constant 0 : i32
    %c0_i32_1 = arith.constant 0 : i32
    %c0_i32_2 = arith.constant 0 : i32
    return %arg1, %c0_i32, %c0_i32_0, %c0_i32_1 : i32, i32, i32, i32
  }
  func.func @transform_4(%arg0: i32, %arg1: i32, %arg2: memref<3xi32, #tpu.memory_space<smem>>) -> (i32, i32, i32) {
    %c0_i32 = arith.constant 0 : i32
    %c0_i32_0 = arith.constant 0 : i32
    %c0_i32_1 = arith.constant 0 : i32
    return %arg1, %c0_i32, %c0_i32_0 : i32, i32, i32
  }
  func.func @transform_5(%arg0: i32, %arg1: i32, %arg2: memref<3xi32, #tpu.memory_space<smem>>) -> (i32, i32, i32) {
    %c0_i32 = arith.constant 0 : i32
    %c0_i32_0 = arith.constant 0 : i32
    %c0_i32_1 = arith.constant 0 : i32
    return %arg0, %c0_i32, %c0_i32_0 : i32, i32, i32
  }
}

</mosaic_0001>

<llo_original>
// kernel: tpu_custom_call.1
$region0: #{tpu_custom_call.1}
  #allocation0 [shape = 'u32[]', space=smem, size = 0x4, offset = 0x4, fixed_abs, tag = 'smem constant byte address 0x4 - core index']
  #allocation1 [shape = 'u32[144,128]{1,0:T(1,128)}', space=vmem, size = 0x12000, scoped, tag = 'internal scratch']
  #allocation2 [shape = 'f32[16,128]{1,0:T(8,128)}', space=vmem, size = 0x2000, scoped, tag = 'scratch operand']
  #allocation3 [shape = 'f32[16,128]{1,0:T(8,128)}', space=vmem, size = 0x2000, scoped, tag = 'scratch operand']
  #allocation4 [shape = 's32[1]{0}', space=sflag, size = 0x4, scoped, tag = 'scoped memory for tpu_custom_call.1']
  #allocation5 [shape = 'u8[512]{0}', space=smem, size = 0x200, scoped, tag = 'prefetched SMEM operand 0']
  %s0 = inlined_call_operand.hbm [shape: s32[3], index: 0, kind: input, shape index: {}]
  %s1 = inlined_call_operand.hbm [shape: f32[1,16,128], index: 1, kind: input, shape index: {}]
  %s2 = inlined_call_operand.hbm [shape: bf16[1,32,128], index: 2, kind: input, shape index: {}]
  %s3 = inlined_call_operand.hbm [shape: bf16[3,128,256], index: 3, kind: input, shape index: {}]
  %s4 = inlined_call_operand.hbm [shape: bf16[3,4,128,128], index: 4, kind: input, shape index: {}]
  %s5 = inlined_call_operand.hbm [shape: f32[3,6,128], index: 5, kind: input, shape index: {}]
  %s6 = inlined_call_operand.hbm [shape: f32[1,16,128], index: 6, kind: output, shape index: {}]
  %s7 = sld [smem:[#allocation0]]
  $region89: #{tpu_custom_call.1} parent=0
    _
  %s9 = ssub.s32 1, %s7
  %s10 = scalar_select 0, %s9, %s7
  %12 = dma.hbm_to_smem %s0, 16, [#allocation5], [#allocation4]
  %13 = dma.done [#allocation4], 16
  %14 = sfence
  $region1: #{tpu_custom_call.1} parent=0
    #allocation6 [shape = 'u8[8192]{0}', space=vmem, size = 0x2000, scoped, tag = 'input window, operand 1, single buffered']
    #allocation7 [shape = 's32[2]{0}', space=sflag, size = 0x8, scoped, tag = 'scoped memory for tpu_custom_call.1']
    #allocation8 [shape = 's32[2]{0}', space=sflag, size = 0x8, scoped, tag = 'scoped memory for tpu_custom_call.1']
    #allocation9 [shape = 'u8[8192]{0}', space=vmem, size = 0x2000, scoped, tag = 'input window, operand 2, single buffered']
    #allocation10 [shape = 's32[1]{0}', space=sflag, size = 0x4, scoped, tag = 'scoped memory for tpu_custom_call.1']
    #allocation11 [shape = 'u8[131072]{0}', space=vmem, size = 0x20000, scoped, tag = 'input window, operand 3']
    #allocation12 [shape = 'u8[262144]{0}', space=vmem, size = 0x40000, scoped, tag = 'input window, operand 4']
    #allocation13 [shape = 'u8[8192]{0}', space=vmem, size = 0x2000, scoped, tag = 'input window, operand 5']
    #allocation14 [shape = 'u8[8192]{0}', space=vmem, size = 0x2000, scoped, tag = 'output window, operand 0, single buffered']
    %15 = vsyncpa [#allocation7], 0
    %16 = vsyncpa [#allocation10], 0
    %17 = vsyncpa [#allocation8], 0
    loop: start=0, step=1, limit=5
    $region2: #{tpu_custom_call.1} parent=1 // loop_pre_header
      _
    $region3: #{tpu_custom_call.1} parent=1 // loop_header
      %s19 = sphi 0, %s23
      %p20 = scmp.ge.s32.totalorder %s19, 5
      %s26 = sphi 0, %s38
      %s27 = sphi 0, %s34
      %s28 = sphi 0, %s26
      %s29 = sphi 0, %s27
      %s30 = sphi 0, %s28
      %s31 = sphi 0, %s29
      %s41 = sphi 0, %s43
      %s44 = sphi 0, %s41
      %s45 = sphi 0, %s44
      %s61 = sphi 0, %s45
      %s67 = sphi 0, %s69
      %s70 = sphi 0, %s67
      %s71 = sphi 0, %s70
      %s87 = sphi 0, %s71
      %s93 = sphi 0, %s95
      %s96 = sphi 0, %s93
      %s97 = sphi 0, %s96
      %s113 = sphi 0, %s97
      %s119 = sphi 0, %s121
      %s122 = sphi 0, %s119
      %s123 = sphi 0, %s122
      %s139 = sphi 0, %s123
      %s145 = sphi 0, %s147
      %s148 = sphi 0, %s145
      %s149 = sphi 0, %s148
      %s165 = sphi 0, %s149
      %s171 = sphi 0, %s173
      %s174 = sphi 0, %s171
      %s175 = sphi 0, %s174
      %s191 = sphi 0, %s175
    $region4: #{tpu_custom_call.1} parent=1 // loop_header_branch
      %22 = sbr.rel (%p20) target = $region8
    $region5: #{tpu_custom_call.1} parent=1 // loop_body
      %s24 = ssub.s32 %s19, 1
      %s25 = ssub.s32 %s19, 2
      %s32 = sadd.s32 1, %s27
      %p33 = scmp.ge.s32.totalorder %s32, 3
      %s34 = scalar_select %p33, 0, %s32
      %s35 = sadd.s32 1, %s26
      %s36 = scalar_select %p33, %s35, %s26
      %p37 = scmp.ge.s32.totalorder %s36, 1
      %s38 = scalar_select %p37, 0, %s36
      %s39 = ssub.s32 %s26, %s38
      %p40 = scmp.eq.s32.totalorder %s39, 0
      %s42 = sadd.s32 %s41, 1
      %s43 = scalar_select %p40, %s41, %s42
      %p46 = pneg %p40
      %p47 = scmp.eq.s32.totalorder %s19, 2
      %p48 = por %p46, %p47
      %p49 = scmp.ne.s32.totalorder %s41, %s44
      %p50 = scmp.eq.s32.totalorder %s19, 0
      %p51 = por %p49, %p50
      %p52 = scmp.ne.s32.totalorder %s41, %s44
      %p53 = scmp.eq.s32.totalorder %s24, 2
      %p54 = por %p52, %p53
      %p55 = scmp.ne.s32.totalorder %s44, %s45
      %p56 = scmp.eq.s32.totalorder %s24, 0
      %p57 = por %p55, %p56
      %p58 = scmp.ne.s32.totalorder %s44, %s45
      %p59 = scmp.eq.s32.totalorder %s25, 2
      %p60 = por %p58, %p59
      %p62 = scmp.ne.s32.totalorder %s45, %s61
      %p63 = scmp.eq.s32.totalorder %s25, 0
      %p64 = por %p62, %p63
      %s65 = ssub.s32 %s26, %s38
      %p66 = scmp.eq.s32.totalorder %s65, 0
      %s68 = sadd.s32 %s67, 1
      %s69 = scalar_select %p66, %s67, %s68
      %p72 = pneg %p66
      %p73 = scmp.eq.s32.totalorder %s19, 2
      %p74 = por %p72, %p73
      %p75 = scmp.ne.s32.totalorder %s67, %s70
      %p76 = scmp.eq.s32.totalorder %s19, 0
      %p77 = por %p75, %p76
      %p78 = scmp.ne.s32.totalorder %s67, %s70
      %p79 = scmp.eq.s32.totalorder %s24, 2
      %p80 = por %p78, %p79
      %p81 = scmp.ne.s32.totalorder %s70, %s71
      %p82 = scmp.eq.s32.totalorder %s24, 0
      %p83 = por %p81, %p82
      %p84 = scmp.ne.s32.totalorder %s70, %s71
      %p85 = scmp.eq.s32.totalorder %s25, 2
      %p86 = por %p84, %p85
      %p88 = scmp.ne.s32.totalorder %s71, %s87
      %p89 = scmp.eq.s32.totalorder %s25, 0
      %p90 = por %p88, %p89
      %s91 = ssub.s32 %s27, %s34
      %p92 = scmp.eq.s32.totalorder %s91, 0
      %s94 = sadd.s32 %s93, 1
      %s95 = scalar_select %p92, %s93, %s94
      %p98 = pneg %p92
      %p99 = scmp.eq.s32.totalorder %s19, 2
      %p100 = por %p98, %p99
      %p101 = scmp.ne.s32.totalorder %s93, %s96
      %p102 = scmp.eq.s32.totalorder %s19, 0
      %p103 = por %p101, %p102
      %p104 = scmp.ne.s32.totalorder %s93, %s96
      %p105 = scmp.eq.s32.totalorder %s24, 2
      %p106 = por %p104, %p105
      %p107 = scmp.ne.s32.totalorder %s96, %s97
      %p108 = scmp.eq.s32.totalorder %s24, 0
      %p109 = por %p107, %p108
      %p110 = scmp.ne.s32.totalorder %s96, %s97
      %p111 = scmp.eq.s32.totalorder %s25, 2
      %p112 = por %p110, %p111
      %p114 = scmp.ne.s32.totalorder %s97, %s113
      %p115 = scmp.eq.s32.totalorder %s25, 0
      %p116 = por %p114, %p115
      %s117 = ssub.s32 %s27, %s34
      %p118 = scmp.eq.s32.totalorder %s117, 0
      %s120 = sadd.s32 %s119, 1
      %s121 = scalar_select %p118, %s119, %s120
      %p124 = pneg %p118
      %p125 = scmp.eq.s32.totalorder %s19, 2
      %p126 = por %p124, %p125
      %p127 = scmp.ne.s32.totalorder %s119, %s122
      %p128 = scmp.eq.s32.totalorder %s19, 0
      %p129 = por %p127, %p128
      %p130 = scmp.ne.s32.totalorder %s119, %s122
      %p131 = scmp.eq.s32.totalorder %s24, 2
      %p132 = por %p130, %p131
      %p133 = scmp.ne.s32.totalorder %s122, %s123
      %p134 = scmp.eq.s32.totalorder %s24, 0
      %p135 = por %p133, %p134
      %p136 = scmp.ne.s32.totalorder %s122, %s123
      %p137 = scmp.eq.s32.totalorder %s25, 2
      %p138 = por %p136, %p137
      %p140 = scmp.ne.s32.totalorder %s123, %s139
      %p141 = scmp.eq.s32.totalorder %s25, 0
      %p142 = por %p140, %p141
      %s143 = ssub.s32 %s27, %s34
      %p144 = scmp.eq.s32.totalorder %s143, 0
      %s146 = sadd.s32 %s145, 1
      %s147 = scalar_select %p144, %s145, %s146
      %p150 = pneg %p144
      %p151 = scmp.eq.s32.totalorder %s19, 2
      %p152 = por %p150, %p151
      %p153 = scmp.ne.s32.totalorder %s145, %s148
      %p154 = scmp.eq.s32.totalorder %s19, 0
      %p155 = por %p153, %p154
      %p156 = scmp.ne.s32.totalorder %s145, %s148
      %p157 = scmp.eq.s32.totalorder %s24, 2
      %p158 = por %p156, %p157
      %p159 = scmp.ne.s32.totalorder %s148, %s149
      %p160 = scmp.eq.s32.totalorder %s24, 0
      %p161 = por %p159, %p160
      %p162 = scmp.ne.s32.totalorder %s148, %s149
      %p163 = scmp.eq.s32.totalorder %s25, 2
      %p164 = por %p162, %p163
      %p166 = scmp.ne.s32.totalorder %s149, %s165
      %p167 = scmp.eq.s32.totalorder %s25, 0
      %p168 = por %p166, %p167
      %s169 = ssub.s32 %s26, %s38
      %p170 = scmp.eq.s32.totalorder %s169, 0
      %s172 = sadd.s32 %s171, 1
      %s173 = scalar_select %p170, %s171, %s172
      %p176 = pneg %p170
      %p177 = scmp.eq.s32.totalorder %s19, 2
      %p178 = por %p176, %p177
      %p179 = scmp.ne.s32.totalorder %s171, %s174
      %p180 = scmp.eq.s32.totalorder %s19, 0
      %p181 = por %p179, %p180
      %p182 = scmp.ne.s32.totalorder %s171, %s174
      %p183 = scmp.eq.s32.totalorder %s24, 2
      %p184 = por %p182, %p183
      %p185 = scmp.ne.s32.totalorder %s174, %s175
      %p186 = scmp.eq.s32.totalorder %s24, 0
      %p187 = por %p185, %p186
      %p188 = scmp.ne.s32.totalorder %s174, %s175
      %p189 = scmp.eq.s32.totalorder %s25, 2
      %p190 = por %p188, %p189
      %p192 = scmp.ne.s32.totalorder %s175, %s191
      %p193 = scmp.eq.s32.totalorder %s25, 0
      %p194 = por %p192, %p193
      %p195 = scmp.le.s32.totalorder 1, %s19
      %p196 = scmp.lt.s32.totalorder %s19, 4
      %p197 = pnand %p195, %p196
      %p198 = pneg %p197
      // Predicated region
      $region9: #{tpu_custom_call.1} parent=5 // pred_check
        _
      $region10: #{tpu_custom_call.1} parent=5 // pred_check_branch
        %200 = sbr.rel (%p197) target = $region12
      $region11: #{tpu_custom_call.1} parent=5 // pred_region
        %s201 = ssub.s32 %s19, 1
        // Predicated region
        $region13: #{tpu_custom_call.1} parent=11 // pred_check
          %p202 = pneg %p57
        $region14: #{tpu_custom_call.1} parent=11 // pred_check_branch
          %204 = sbr.rel (%p202) target = $region16
        $region15: #{tpu_custom_call.1} parent=11 // pred_region
          %s206 = ssub.s32 256, 256
          %207 = vsyncadd [#allocation7], %s206
          %s208 = smul.addr %s28, 2
          %s209 = smul.addr %s208, 128
          %s210 = scalar_lea.hbm %s1, %s209
          %s211 = sshll.u32 [#allocation6], 4
          %s212 = int_to_ptr.vmem [resolvable:$true] %s211
          %217 = dma.hbm_to_vmem [thread:$0]  %s210, 256, %s212, [#allocation7], 128, 128, 8
        $region16: #{tpu_custom_call.1} parent=11 // pred_fallthru
          _
        // Predicated region
        $region17: #{tpu_custom_call.1} parent=11 // pred_check
          %p218 = pneg %p83
        $region18: #{tpu_custom_call.1} parent=11 // pred_check_branch
          %220 = sbr.rel (%p218) target = $region20
        $region19: #{tpu_custom_call.1} parent=11 // pred_region
          %s222 = ssub.s32 256, 256
          %223 = vsyncadd [#allocation10], %s222
          %s224 = smul.addr %s28, 4
          %s225 = smul.addr %s224, 64
          %s226 = scalar_lea.hbm %s2, %s225
          %s227 = sshll.u32 [#allocation9], 4
          %s228 = int_to_ptr.vmem [resolvable:$true] %s227
          %233 = dma.hbm_to_vmem [thread:$0]  %s226, 256, %s228, [#allocation10], 64, 64, 4
        $region20: #{tpu_custom_call.1} parent=11 // pred_fallthru
          _
      $region12: #{tpu_custom_call.1} parent=5 // pred_fallthru
        _
      %p234 = scmp.lt.s32.totalorder %s19, 3
      // Predicated region
      $region21: #{tpu_custom_call.1} parent=5 // pred_check
        %p235 = pneg %p234
      $region22: #{tpu_custom_call.1} parent=5 // pred_check_branch
        %237 = sbr.rel (%p235) target = $region24
      $region23: #{tpu_custom_call.1} parent=5 // pred_region
        // Predicated region
        $region25: #{tpu_custom_call.1} parent=23 // pred_check
          %p238 = pneg %p103
        $region26: #{tpu_custom_call.1} parent=23 // pred_check_branch
          %240 = sbr.rel (%p238) target = $region28
        $region27: #{tpu_custom_call.1} parent=23 // pred_region
          %s241 = sand.u32 %s19, 1
          %s242 = scalar_lea.sflag [#allocation7], %s241
          %s243 = sand.u32 %s93, 1
          %s244 = smul.addr %s243, 128
          %s245 = scalar_lea.vmem [#allocation11], %s244
          %s247 = ssub.s32 2048, 2048
          %248 = vsyncadd %s242, %s247
          %s249 = smul.addr %s27, 32
          %s250 = smul.addr %s249, 64
          %s251 = scalar_lea.hbm %s3, %s250
          %s252 = sshll.u32 %s245, 4
          %s253 = int_to_ptr.vmem [resolvable:$true] %s252
          %258 = dma.hbm_to_vmem [thread:$0]  %s251, 2048, %s253, %s242, 128, 128, 8
        $region28: #{tpu_custom_call.1} parent=23 // pred_fallthru
          _
        // Predicated region
        $region29: #{tpu_custom_call.1} parent=23 // pred_check
          %p259 = pneg %p129
        $region30: #{tpu_custom_call.1} parent=23 // pred_check_branch
          %261 = sbr.rel (%p259) target = $region32
        $region31: #{tpu_custom_call.1} parent=23 // pred_region
          %s262 = sand.u32 %s19, 1
          %s263 = scalar_lea.sflag [#allocation7], %s262
          %s264 = sand.u32 %s119, 1
          %s265 = smul.addr %s264, 256
          %s266 = scalar_lea.vmem [#allocation12], %s265
          %s268 = ssub.s32 4096, 4096
          %269 = vsyncadd %s263, %s268
          %s270 = smul.addr %s27, 64
          %s271 = smul.addr %s270, 64
          %s272 = scalar_lea.hbm %s4, %s271
          %s273 = sshll.u32 %s266, 4
          %s274 = int_to_ptr.vmem [resolvable:$true] %s273
          %279 = dma.hbm_to_vmem [thread:$0]  %s272, 4096, %s274, %s263, 64, 64, 4
        $region32: #{tpu_custom_call.1} parent=23 // pred_fallthru
          _
        // Predicated region
        $region33: #{tpu_custom_call.1} parent=23 // pred_check
          %p280 = pneg %p155
        $region34: #{tpu_custom_call.1} parent=23 // pred_check_branch
          %282 = sbr.rel (%p280) target = $region36
        $region35: #{tpu_custom_call.1} parent=23 // pred_region
          %s283 = sand.u32 %s19, 1
          %s284 = scalar_lea.sflag [#allocation7], %s283
          %s285 = sand.u32 %s145, 1
          %s286 = smul.addr %s285, 8
          %s287 = scalar_lea.vmem [#allocation13], %s286
          %s289 = ssub.s32 128, 128
          %290 = vsyncadd %s284, %s289
          %s291 = smul.addr %s27, 128
          %s292 = scalar_lea.hbm %s5, %s291
          %s294 = sshll.u32 %s287, 4
          %s295 = int_to_ptr.vmem [resolvable:$true] %s294
          %297 = dma.hbm_to_vmem [thread:$0]  %s292, 128, %s295, %s284
        $region36: #{tpu_custom_call.1} parent=23 // pred_fallthru
          _
      $region24: #{tpu_custom_call.1} parent=5 // pred_fallthru
        _
      %p298 = scmp.le.s32.totalorder 1, %s19
      %p299 = scmp.lt.s32.totalorder %s19, 4
      %p300 = pnand %p298, %p299
      %p301 = pneg %p300
      // Predicated region
      $region37: #{tpu_custom_call.1} parent=5 // pred_check
        _
      $region38: #{tpu_custom_call.1} parent=5 // pred_check_branch
        %303 = sbr.rel (%p300) target = $region40
      $region39: #{tpu_custom_call.1} parent=5 // pred_region
        %s304 = ssub.s32 %s19, 1
        // Predicated region
        $region41: #{tpu_custom_call.1} parent=39 // pred_check
          %p305 = pneg %p57
        $region42: #{tpu_custom_call.1} parent=39 // pred_check_branch
          %307 = sbr.rel (%p305) target = $region44
        $region43: #{tpu_custom_call.1} parent=39 // pred_region
          %308 = dma.done [#allocation7], 256
        $region44: #{tpu_custom_call.1} parent=39 // pred_fallthru
          _
        // Predicated region
        $region45: #{tpu_custom_call.1} parent=39 // pred_check
          %p309 = pneg %p83
        $region46: #{tpu_custom_call.1} parent=39 // pred_check_branch
          %311 = sbr.rel (%p309) target = $region48
        $region47: #{tpu_custom_call.1} parent=39 // pred_region
          %312 = dma.done [#allocation10], 256
        $region48: #{tpu_custom_call.1} parent=39 // pred_fallthru
          _
        %s313 = sand.u32 %s24, 1
        %s314 = scalar_lea.sflag [#allocation7], %s313
        %s315 = sand.u32 %s96, 1
        %s316 = smul.addr %s315, 128
        %s317 = scalar_lea.vmem [#allocation11], %s316
        // Predicated region
        $region49: #{tpu_custom_call.1} parent=39 // pred_check
          %p318 = pneg %p109
        $region50: #{tpu_custom_call.1} parent=39 // pred_check_branch
          %320 = sbr.rel (%p318) target = $region52
        $region51: #{tpu_custom_call.1} parent=39 // pred_region
          %321 = dma.done %s314, 2048
        $region52: #{tpu_custom_call.1} parent=39 // pred_fallthru
          _
        %s322 = sand.u32 %s24, 1
        %s323 = scalar_lea.sflag [#allocation7], %s322
        %s324 = sand.u32 %s122, 1
        %s325 = smul.addr %s324, 256
        %s326 = scalar_lea.vmem [#allocation12], %s325
        // Predicated region
        $region53: #{tpu_custom_call.1} parent=39 // pred_check
          %p327 = pneg %p135
        $region54: #{tpu_custom_call.1} parent=39 // pred_check_branch
          %329 = sbr.rel (%p327) target = $region56
        $region55: #{tpu_custom_call.1} parent=39 // pred_region
          %330 = dma.done %s323, 4096
        $region56: #{tpu_custom_call.1} parent=39 // pred_fallthru
          _
        %s331 = sand.u32 %s24, 1
        %s332 = scalar_lea.sflag [#allocation7], %s331
        %s333 = sand.u32 %s148, 1
        %s334 = smul.addr %s333, 8
        %s335 = scalar_lea.vmem [#allocation13], %s334
        // Predicated region
        $region57: #{tpu_custom_call.1} parent=39 // pred_check
          %p336 = pneg %p161
        $region58: #{tpu_custom_call.1} parent=39 // pred_check_branch
          %338 = sbr.rel (%p336) target = $region60
        $region59: #{tpu_custom_call.1} parent=39 // pred_region
          %339 = dma.done %s332, 128
        $region60: #{tpu_custom_call.1} parent=39 // pred_fallthru
          _
        %p340 = pneg %p57
        %p341 = pneg %p54
        %p342 = pneg %p83
        %p343 = pneg %p80
        %s344 = sand.u32 %s24, 1
        %s345 = scalar_lea.sflag [#allocation7], %s344
        %s346 = sand.u32 %s96, 1
        %s347 = smul.addr %s346, 128
        %s348 = scalar_lea.vmem [#allocation11], %s347
        %p349 = pneg %p109
        %p350 = pneg %p106
        %s351 = sand.u32 %s24, 1
        %s352 = scalar_lea.sflag [#allocation7], %s351
        %s353 = sand.u32 %s122, 1
        %s354 = smul.addr %s353, 256
        %s355 = scalar_lea.vmem [#allocation12], %s354
        %p356 = pneg %p135
        %p357 = pneg %p132
        %s358 = sand.u32 %s24, 1
        %s359 = scalar_lea.sflag [#allocation7], %s358
        %s360 = sand.u32 %s148, 1
        %s361 = smul.addr %s360, 8
        %s362 = scalar_lea.vmem [#allocation13], %s361
        %p363 = pneg %p161
        %p364 = pneg %p158
        %p365 = pneg %p187
        %p366 = pneg %p184
        %p368 = scmp.eq.s32.totalorder %s29, 0
        // Predicated region
        $region61: #{tpu_custom_call.1} parent=39 // pred_check
          %p369 = pneg %p368
        $region62: #{tpu_custom_call.1} parent=39 // pred_check_branch
          %371 = sbr.rel (%p369) target = $region64
        $region63: #{tpu_custom_call.1} parent=39 // pred_region
          %v372 = vld [vmem:[#allocation6] sm:$0xff]
          %v373 = vld [vmem:[#allocation6 + $0x8] sm:$0xff]
          %374 = vst [vmem:[#allocation2] sm:$0xff] %v372
          %375 = vst [vmem:[#allocation2 + $0x8] sm:$0xff] %v373
        $region64: #{tpu_custom_call.1} parent=39 // pred_fallthru
          _
        %s376 = sld [smem:[#allocation5 + %s29]]
        %p377 = scmp.ne.s32.totalorder %s376, 0
        %v378 = vld [vmem:[#allocation2] sm:$0xff]
        %v379 = vld [vmem:[#allocation2 + $0x8] sm:$0xff]
        %v380 = vld [vmem:[%s317] sm:$0xff]
        %v381 = vld [vmem:[%s317 + $0x8] sm:$0xff]
        %v382 = vld [vmem:[%s317 + $0x10] sm:$0xff]
        %v383 = vld [vmem:[%s317 + $0x18] sm:$0xff]
        %v384 = vld [vmem:[%s317 + $0x20] sm:$0xff]
        %v385 = vld [vmem:[%s317 + $0x28] sm:$0xff]
        %v386 = vld [vmem:[%s317 + $0x30] sm:$0xff]
        %v387 = vld [vmem:[%s317 + $0x38] sm:$0xff]
        %v388 = vld [vmem:[%s317 + $0x40] sm:$0xff]
        %v389 = vld [vmem:[%s317 + $0x48] sm:$0xff]
        %v390 = vld [vmem:[%s317 + $0x50] sm:$0xff]
        %v391 = vld [vmem:[%s317 + $0x58] sm:$0xff]
        %v392 = vld [vmem:[%s317 + $0x60] sm:$0xff]
        %v393 = vld [vmem:[%s317 + $0x68] sm:$0xff]
        %v394 = vld [vmem:[%s317 + $0x70] sm:$0xff]
        %v395 = vld [vmem:[%s317 + $0x78] sm:$0xff]
        %v396 = vpack.c.bf16 %v379, %v378
        %v397 = vld [vmem:[%s326] sm:$0xf]
        %v398 = vld [vmem:[%s326 + $0x4] sm:$0xf]
        %v399 = vld [vmem:[%s326 + $0x8] sm:$0xf]
        %v400 = vld [vmem:[%s326 + $0xc] sm:$0xf]
        %v401 = vld [vmem:[%s326 + $0x10] sm:$0xf]
        %v402 = vld [vmem:[%s326 + $0x14] sm:$0xf]
        %v403 = vld [vmem:[%s326 + $0x18] sm:$0xf]
        %v404 = vld [vmem:[%s326 + $0x1c] sm:$0xf]
        %v405 = vld [vmem:[%s326 + $0x20] sm:$0xf]
        %v406 = vld [vmem:[%s326 + $0x24] sm:$0xf]
        %v407 = vld [vmem:[%s326 + $0x28] sm:$0xf]
        %v408 = vld [vmem:[%s326 + $0x2c] sm:$0xf]
        %v409 = vld [vmem:[%s326 + $0x30] sm:$0xf]
        %v410 = vld [vmem:[%s326 + $0x34] sm:$0xf]
        %v411 = vld [vmem:[%s326 + $0x38] sm:$0xf]
        %v412 = vld [vmem:[%s326 + $0x3c] sm:$0xf]
        %v429 = vunpack.c.l.b16 %v397
        %v430 = vunpack.c.l.b16 %v398
        %v431 = vunpack.c.l.b16 %v399
        %v432 = vunpack.c.l.b16 %v400
        %v433 = vunpack.c.l.b16 %v401
        %v434 = vunpack.c.l.b16 %v402
        %v435 = vunpack.c.l.b16 %v403
        %v436 = vunpack.c.l.b16 %v404
        %v437 = vunpack.c.l.b16 %v405
        %v438 = vunpack.c.l.b16 %v406
        %v439 = vunpack.c.l.b16 %v407
        %v440 = vunpack.c.l.b16 %v408
        %v441 = vunpack.c.l.b16 %v409
        %v442 = vunpack.c.l.b16 %v410
        %v443 = vunpack.c.l.b16 %v411
        %v444 = vunpack.c.l.b16 %v412
        %v445 = vpack.c.b16 %v430, %v429
        %v446 = vpack.c.b16 %v432, %v431
        %v447 = vpack.c.b16 %v434, %v433
        %v448 = vpack.c.b16 %v436, %v435
        %v449 = vpack.c.b16 %v438, %v437
        %v450 = vpack.c.b16 %v440, %v439
        %v451 = vpack.c.b16 %v442, %v441
        %v452 = vpack.c.b16 %v444, %v443
        %461 = vmatprep.subr.bf16.mxu0 0
        %462 = vmatpush1.bf16.msra.mxu0 %v452
        %463 = vmatprep.subr.bf16.mxu0 0
        %464 = vmatpush1.bf16.msra.mxu0 %v451
        %465 = vmatprep.subr.bf16.mxu0 0
        %466 = vmatpush1.bf16.msra.mxu0 %v450
        %467 = vmatprep.subr.bf16.mxu0 0
        %468 = vmatpush1.bf16.msra.mxu0 %v449
        %469 = vmatprep.subr.bf16.mxu0 0
        %470 = vmatpush1.bf16.msra.mxu0 %v448
        %471 = vmatprep.subr.bf16.mxu0 0
        %472 = vmatpush1.bf16.msra.mxu0 %v447
        %473 = vmatprep.subr.bf16.mxu0 0
        %474 = vmatpush1.bf16.msra.mxu0 %v446
        %475 = vmatprep.subr.bf16.mxu0 0
        %476 = vmatpush1.bf16.msra.mxu0 %v445
        %477 = vmatprep.subr.bf16.mxu0 0
        %478 = vmatpush2.bf16.msra.mxu0 0
        %479 = vmatprep.subr.bf16.mxu0 0
        %480 = vmatpush2.bf16.msra.mxu0 0
        %481 = vmatprep.subr.bf16.mxu0 0
        %482 = vmatpush2.bf16.msra.mxu0 0
        %483 = vmatprep.subr.bf16.mxu0 0
        %484 = vmatpush2.bf16.msra.mxu0 0
        %485 = vmatprep.subr.bf16.mxu0 0
        %486 = vmatpush2.bf16.msra.mxu0 0
        %487 = vmatprep.subr.bf16.mxu0 0
        %488 = vmatpush2.bf16.msra.mxu0 0
        %489 = vmatprep.subr.bf16.mxu0 0
        %490 = vmatpush2.bf16.msra.mxu0 0
        %491 = vmatprep.subr.bf16.mxu0 0
        %492 = vmatpush2.bf16.msra.mxu0 0
        %493 = vmatprep.mubr.bf16.mxu0 0
        %494 = vmatmul.mubr.bf16.gmra.mxu0 %v396
        %v495 = vpop.f32.mrf.mxu0
        %v496 = vadd.f32 0.0, %v495
        %v497 = vpop.f32.mrf.mxu0
        %v498 = vpop.f32.mrf.mxu0
        %v499 = vadd.f32 0.0, %v498
        %v500 = vpop.f32.mrf.mxu0
        %501 = vdwg.mxu0
        // Predicated region
        $region65: #{tpu_custom_call.1} parent=39 // pred_check
          %p502 = pneg %p377
        $region66: #{tpu_custom_call.1} parent=39 // pred_check_branch
          %504 = sbr.rel (%p502) target = $region68
        $region67: #{tpu_custom_call.1} parent=39 // pred_region
          %v505 = vld [vmem:[#allocation9] sm:$0xf]
          %v506 = vld [vmem:[#allocation9 + $0x4] sm:$0xf]
          %v507 = vld [vmem:[#allocation9 + $0x8] sm:$0xf]
          %v508 = vld [vmem:[#allocation9 + $0xc] sm:$0xf]
          %v513 = vunpack.c.l.b16 %v505
          %v514 = vunpack.c.l.b16 %v506
          %v515 = vunpack.c.l.b16 %v507
          %v516 = vunpack.c.l.b16 %v508
          %v517 = vpack.c.b16 %v514, %v513
          %v518 = vpack.c.b16 %v516, %v515
          %v537 = vunpack.c.l.b16 %v380
          %v538 = vunpack.c.h.b16 %v380
          %v539 = vunpack.c.l.b16 %v381
          %v540 = vunpack.c.h.b16 %v381
          %v541 = vunpack.c.l.b16 %v382
          %v542 = vunpack.c.h.b16 %v382
          %v543 = vunpack.c.l.b16 %v383
          %v544 = vunpack.c.h.b16 %v383
          %v545 = vunpack.c.l.b16 %v384
          %v546 = vunpack.c.h.b16 %v384
          %v547 = vunpack.c.l.b16 %v385
          %v548 = vunpack.c.h.b16 %v385
          %v549 = vunpack.c.l.b16 %v386
          %v550 = vunpack.c.h.b16 %v386
          %v551 = vunpack.c.l.b16 %v387
          %v552 = vunpack.c.h.b16 %v387
          %v553 = vunpack.c.l.b16 %v388
          %v554 = vunpack.c.h.b16 %v388
          %v555 = vunpack.c.l.b16 %v389
          %v556 = vunpack.c.h.b16 %v389
          %v557 = vunpack.c.l.b16 %v390
          %v558 = vunpack.c.h.b16 %v390
          %v559 = vunpack.c.l.b16 %v391
          %v560 = vunpack.c.h.b16 %v391
          %v561 = vunpack.c.l.b16 %v392
          %v562 = vunpack.c.h.b16 %v392
          %v563 = vunpack.c.l.b16 %v393
          %v564 = vunpack.c.h.b16 %v393
          %v565 = vunpack.c.l.b16 %v394
          %v566 = vunpack.c.h.b16 %v394
          %v567 = vunpack.c.l.b16 %v395
          %v568 = vunpack.c.h.b16 %v395
          %v569 = vpack.c.b16 %v539, %v537
          %v570 = vpack.c.b16 %v540, %v538
          %v571 = vpack.c.b16 %v543, %v541
          %v572 = vpack.c.b16 %v544, %v542
          %v573 = vpack.c.b16 %v547, %v545
          %v574 = vpack.c.b16 %v548, %v546
          %v575 = vpack.c.b16 %v551, %v549
          %v576 = vpack.c.b16 %v552, %v550
          %v577 = vpack.c.b16 %v555, %v553
          %v578 = vpack.c.b16 %v556, %v554
          %v579 = vpack.c.b16 %v559, %v557
          %v580 = vpack.c.b16 %v560, %v558
          %v581 = vpack.c.b16 %v563, %v561
          %v582 = vpack.c.b16 %v564, %v562
          %v583 = vpack.c.b16 %v567, %v565
          %v584 = vpack.c.b16 %v568, %v566
          %601 = vmatprep.subr.bf16.mxu0 %v584
          %602 = vmatpush1.bf16.msra.mxu0 %v583
          %603 = vmatprep.subr.bf16.mxu0 %v582
          %604 = vmatpush1.bf16.msra.mxu0 %v581
          %605 = vmatprep.subr.bf16.mxu0 %v580
          %606 = vmatpush1.bf16.msra.mxu0 %v579
          %607 = vmatprep.subr.bf16.mxu0 %v578
          %608 = vmatpush1.bf16.msra.mxu0 %v577
          %609 = vmatprep.subr.bf16.mxu0 %v576
          %610 = vmatpush1.bf16.msra.mxu0 %v575
          %611 = vmatprep.subr.bf16.mxu0 %v574
          %612 = vmatpush1.bf16.msra.mxu0 %v573
          %613 = vmatprep.subr.bf16.mxu0 %v572
          %614 = vmatpush1.bf16.msra.mxu0 %v571
          %615 = vmatprep.subr.bf16.mxu0 %v570
          %616 = vmatpush1.bf16.msra.mxu0 %v569
          %617 = vmatprep.subr.bf16.mxu0 0
          %618 = vmatpush2.bf16.msra.mxu0 0
          %619 = vmatprep.subr.bf16.mxu0 0
          %620 = vmatpush2.bf16.msra.mxu0 0
          %621 = vmatprep.subr.bf16.mxu0 0
          %622 = vmatpush2.bf16.msra.mxu0 0
          %623 = vmatprep.subr.bf16.mxu0 0
          %624 = vmatpush2.bf16.msra.mxu0 0
          %625 = vmatprep.subr.bf16.mxu0 0
          %626 = vmatpush2.bf16.msra.mxu0 0
          %627 = vmatprep.subr.bf16.mxu0 0
          %628 = vmatpush2.bf16.msra.mxu0 0
          %629 = vmatprep.subr.bf16.mxu0 0
          %630 = vmatpush2.bf16.msra.mxu0 0
          %631 = vmatprep.subr.bf16.mxu0 0
          %632 = vmatpush2.bf16.msra.mxu0 0
          %633 = vmatprep.mubr.bf16.mxu0 0
          %634 = vmatmul.mubr.bf16.gmra.mxu0 %v517
          %v635 = vpop.f32.mrf.mxu0
          %v636 = vadd.f32 0.0, %v635
          %v637 = vpop.f32.mrf.mxu0
          %v638 = vadd.f32 0.0, %v637
          %v639 = vpop.f32.mrf.mxu0
          %v640 = vadd.f32 0.0, %v639
          %v641 = vpop.f32.mrf.mxu0
          %v642 = vadd.f32 0.0, %v641
          %643 = vmatprep.mubr.bf16.mxu0 0
          %644 = vmatmul.mubr.bf16.gmra.mxu0 %v518
          %v645 = vpop.f32.mrf.mxu0
          %v646 = vadd.f32 0.0, %v645
          %v647 = vpop.f32.mrf.mxu0
          %v648 = vadd.f32 0.0, %v647
          %v649 = vpop.f32.mrf.mxu0
          %v650 = vadd.f32 0.0, %v649
          %v651 = vpop.f32.mrf.mxu0
          %v652 = vadd.f32 0.0, %v651
          %653 = vdwg.mxu0
          %v654 = vpack.c.bf16 %v499, %v496
          %v655 = vpack.c.bf16 %v640, %v636
          %v656 = vpack.c.bf16 %v650, %v646
          %v657 = vpack.c.bf16 %v642, %v638
          %v658 = vpack.c.bf16 %v652, %v648
          %v660 = vrot.slane %v654, 4
          %661 = vrot.lane.b32.xlu0 %v654, 96
          %v662 = vpop.permute.xlu0 %661
          %663 = vrot.lane.b32.xlu0 %v660, 96
          %v664 = vpop.permute.xlu0 %663
          %665 = vrot.lane.b32.xlu0 %v654, 64
          %v666 = vpop.permute.xlu0 %665
          %667 = vrot.lane.b32.xlu0 %v660, 64
          %v668 = vpop.permute.xlu0 %667
          %669 = vrot.lane.b32.xlu0 %v654, 32
          %v670 = vpop.permute.xlu0 %669
          %671 = vrot.lane.b32.xlu0 %v660, 32
          %v672 = vpop.permute.xlu0 %671
          %674 = vrot.lane.b32.xlu0 %v655, 96
          %v675 = vpop.permute.xlu0 %674
          %677 = vrot.lane.b32.xlu0 %v656, 96
          %v678 = vpop.permute.xlu0 %677
          %679 = vrot.lane.b32.xlu0 %v655, 64
          %v680 = vpop.permute.xlu0 %679
          %681 = vrot.lane.b32.xlu0 %v656, 64
          %v682 = vpop.permute.xlu0 %681
          %683 = vrot.lane.b32.xlu0 %v655, 32
          %v684 = vpop.permute.xlu0 %683
          %685 = vrot.lane.b32.xlu0 %v656, 32
          %v686 = vpop.permute.xlu0 %685
          %688 = vrot.lane.b32.xlu0 %v657, 96
          %v689 = vpop.permute.xlu0 %688
          %692 = vrot.lane.b32.xlu0 %v658, 96
          %v693 = vpop.permute.xlu0 %692
          %695 = vrot.lane.b32.xlu0 %v657, 64
          %v696 = vpop.permute.xlu0 %695
          %698 = vrot.lane.b32.xlu0 %v658, 64
          %v699 = vpop.permute.xlu0 %698
          %701 = vrot.lane.b32.xlu0 %v657, 32
          %v702 = vpop.permute.xlu0 %701
          %704 = vrot.lane.b32.xlu0 %v658, 32
          %v705 = vpop.permute.xlu0 %704
          %vm707 = vcmask 261120
          %v709 = vsel %vm707, %v654, 0
          %v712 = vsel %vm707, %v655, 0
          %714 = vmatprep.subr.bf16.mxu0 0
          %715 = vmatpush1.bf16.xpose.msra.mxu0 0
          %716 = vmatprep.subr.bf16.mxu0 0
          %717 = vmatpush1.bf16.xpose.msra.mxu0 0
          %718 = vmatprep.subr.bf16.mxu0 0
          %719 = vmatpush1.bf16.xpose.msra.mxu0 0
          %720 = vmatprep.subr.bf16.mxu0 0
          %721 = vmatpush1.bf16.xpose.msra.mxu0 0
          %722 = vmatprep.subr.bf16.mxu0 0
          %723 = vmatpush1.bf16.xpose.msra.mxu0 0
          %724 = vmatprep.subr.bf16.mxu0 0
          %725 = vmatpush1.bf16.xpose.msra.mxu0 0
          %726 = vmatprep.subr.bf16.mxu0 0
          %727 = vmatpush1.bf16.xpose.msra.mxu0 0
          %728 = vmatprep.subr.bf16.mxu0 0
          %729 = vmatpush1.bf16.xpose.msra.mxu0 %v712
          %730 = vmatprep.subr.bf16.mxu0 0
          %731 = vmatpush2.bf16.xpose.msra.mxu0 0
          %732 = vmatprep.subr.bf16.mxu0 0
          %733 = vmatpush2.bf16.xpose.msra.mxu0 0
          %734 = vmatprep.subr.bf16.mxu0 0
          %735 = vmatpush2.bf16.xpose.msra.mxu0 0
          %736 = vmatprep.subr.bf16.mxu0 0
          %737 = vmatpush2.bf16.xpose.msra.mxu0 0
          %738 = vmatprep.subr.bf16.mxu0 0
          %739 = vmatpush2.bf16.xpose.msra.mxu0 0
          %740 = vmatprep.subr.bf16.mxu0 0
          %741 = vmatpush2.bf16.xpose.msra.mxu0 0
          %742 = vmatprep.subr.bf16.mxu0 0
          %743 = vmatpush2.bf16.xpose.msra.mxu0 0
          %744 = vmatprep.subr.bf16.mxu0 0
          %745 = vmatpush2.bf16.xpose.msra.mxu0 0
          %746 = vmatprep.mubr.bf16.mxu0 0
          %747 = vmatmul.mubr.bf16.gmra.mxu0 %v709
          %v748 = vpop.f32.mrf.mxu0
          %v749 = vadd.f32 0.0, %v748
          %v750 = vpop.f32.mrf.mxu0
          %v751 = vpop.f32.mrf.mxu0
          %v752 = vpop.f32.mrf.mxu0
          %753 = vdwg.mxu0
          %v755 = vsel %vm707, %v660, 0
          %v758 = vsel %vm707, %v656, 0
          %760 = vmatprep.subr.bf16.mxu0 0
          %761 = vmatpush1.bf16.xpose.msra.mxu0 0
          %762 = vmatprep.subr.bf16.mxu0 0
          %763 = vmatpush1.bf16.xpose.msra.mxu0 0
          %764 = vmatprep.subr.bf16.mxu0 0
          %765 = vmatpush1.bf16.xpose.msra.mxu0 0
          %766 = vmatprep.subr.bf16.mxu0 0
          %767 = vmatpush1.bf16.xpose.msra.mxu0 0
          %768 = vmatprep.subr.bf16.mxu0 0
          %769 = vmatpush1.bf16.xpose.msra.mxu0 0
          %770 = vmatprep.subr.bf16.mxu0 0
          %771 = vmatpush1.bf16.xpose.msra.mxu0 0
          %772 = vmatprep.subr.bf16.mxu0 0
          %773 = vmatpush1.bf16.xpose.msra.mxu0 0
          %774 = vmatprep.subr.bf16.mxu0 0
          %775 = vmatpush1.bf16.xpose.msra.mxu0 %v758
          %776 = vmatprep.subr.bf16.mxu0 0
          %777 = vmatpush2.bf16.xpose.msra.mxu0 0
          %778 = vmatprep.subr.bf16.mxu0 0
          %779 = vmatpush2.bf16.xpose.msra.mxu0 0
          %780 = vmatprep.subr.bf16.mxu0 0
          %781 = vmatpush2.bf16.xpose.msra.mxu0 0
          %782 = vmatprep.subr.bf16.mxu0 0
          %783 = vmatpush2.bf16.xpose.msra.mxu0 0
          %784 = vmatprep.subr.bf16.mxu0 0
          %785 = vmatpush2.bf16.xpose.msra.mxu0 0
          %786 = vmatprep.subr.bf16.mxu0 0
          %787 = vmatpush2.bf16.xpose.msra.mxu0 0
          %788 = vmatprep.subr.bf16.mxu0 0
          %789 = vmatpush2.bf16.xpose.msra.mxu0 0
          %790 = vmatprep.subr.bf16.mxu0 0
          %791 = vmatpush2.bf16.xpose.msra.mxu0 0
          %792 = vmatprep.mubr.bf16.mxu0 0
          %793 = vmatmul.mubr.bf16.gmra.mxu0 %v755
          %v794 = vpop.f32.mrf.mxu0
          %v795 = vadd.f32 0.0, %v794
          %v796 = vpop.f32.mrf.mxu0
          %v797 = vpop.f32.mrf.mxu0
          %v798 = vpop.f32.mrf.mxu0
          %799 = vdwg.mxu0
          %v801 = vsel %vm707, %v662, 0
          %v804 = vsel %vm707, %v675, 0
          %806 = vmatprep.subr.bf16.mxu0 0
          %807 = vmatpush1.bf16.xpose.msra.mxu0 0
          %808 = vmatprep.subr.bf16.mxu0 0
          %809 = vmatpush1.bf16.xpose.msra.mxu0 0
          %810 = vmatprep.subr.bf16.mxu0 0
          %811 = vmatpush1.bf16.xpose.msra.mxu0 0
          %812 = vmatprep.subr.bf16.mxu0 0
          %813 = vmatpush1.bf16.xpose.msra.mxu0 0
          %814 = vmatprep.subr.bf16.mxu0 0
          %815 = vmatpush1.bf16.xpose.msra.mxu0 0
          %816 = vmatprep.subr.bf16.mxu0 0
          %817 = vmatpush1.bf16.xpose.msra.mxu0 0
          %818 = vmatprep.subr.bf16.mxu0 0
          %819 = vmatpush1.bf16.xpose.msra.mxu0 0
          %820 = vmatprep.subr.bf16.mxu0 0
          %821 = vmatpush1.bf16.xpose.msra.mxu0 %v804
          %822 = vmatprep.subr.bf16.mxu0 0
          %823 = vmatpush2.bf16.xpose.msra.mxu0 0
          %824 = vmatprep.subr.bf16.mxu0 0
          %825 = vmatpush2.bf16.xpose.msra.mxu0 0
          %826 = vmatprep.subr.bf16.mxu0 0
          %827 = vmatpush2.bf16.xpose.msra.mxu0 0
          %828 = vmatprep.subr.bf16.mxu0 0
          %829 = vmatpush2.bf16.xpose.msra.mxu0 0
          %830 = vmatprep.subr.bf16.mxu0 0
          %831 = vmatpush2.bf16.xpose.msra.mxu0 0
          %832 = vmatprep.subr.bf16.mxu0 0
          %833 = vmatpush2.bf16.xpose.msra.mxu0 0
          %834 = vmatprep.subr.bf16.mxu0 0
          %835 = vmatpush2.bf16.xpose.msra.mxu0 0
          %836 = vmatprep.subr.bf16.mxu0 0
          %837 = vmatpush2.bf16.xpose.msra.mxu0 0
          %838 = vmatprep.mubr.bf16.mxu0 0
          %839 = vmatmul.mubr.bf16.gmra.mxu0 %v801
          %v840 = vpop.f32.mrf.mxu0
          %v841 = vadd.f32 0.0, %v840
          %v842 = vpop.f32.mrf.mxu0
          %v843 = vpop.f32.mrf.mxu0
          %v844 = vpop.f32.mrf.mxu0
          %845 = vdwg.mxu0
          %v847 = vsel %vm707, %v664, 0
          %v850 = vsel %vm707, %v678, 0
          %852 = vmatprep.subr.bf16.mxu0 0
          %853 = vmatpush1.bf16.xpose.msra.mxu0 0
          %854 = vmatprep.subr.bf16.mxu0 0
          %855 = vmatpush1.bf16.xpose.msra.mxu0 0
          %856 = vmatprep.subr.bf16.mxu0 0
          %857 = vmatpush1.bf16.xpose.msra.mxu0 0
          %858 = vmatprep.subr.bf16.mxu0 0
          %859 = vmatpush1.bf16.xpose.msra.mxu0 0
          %860 = vmatprep.subr.bf16.mxu0 0
          %861 = vmatpush1.bf16.xpose.msra.mxu0 0
          %862 = vmatprep.subr.bf16.mxu0 0
          %863 = vmatpush1.bf16.xpose.msra.mxu0 0
          %864 = vmatprep.subr.bf16.mxu0 0
          %865 = vmatpush1.bf16.xpose.msra.mxu0 0
          %866 = vmatprep.subr.bf16.mxu0 0
          %867 = vmatpush1.bf16.xpose.msra.mxu0 %v850
          %868 = vmatprep.subr.bf16.mxu0 0
          %869 = vmatpush2.bf16.xpose.msra.mxu0 0
          %870 = vmatprep.subr.bf16.mxu0 0
          %871 = vmatpush2.bf16.xpose.msra.mxu0 0
          %872 = vmatprep.subr.bf16.mxu0 0
          %873 = vmatpush2.bf16.xpose.msra.mxu0 0
          %874 = vmatprep.subr.bf16.mxu0 0
          %875 = vmatpush2.bf16.xpose.msra.mxu0 0
          %876 = vmatprep.subr.bf16.mxu0 0
          %877 = vmatpush2.bf16.xpose.msra.mxu0 0
          %878 = vmatprep.subr.bf16.mxu0 0
          %879 = vmatpush2.bf16.xpose.msra.mxu0 0
          %880 = vmatprep.subr.bf16.mxu0 0
          %881 = vmatpush2.bf16.xpose.msra.mxu0 0
          %882 = vmatprep.subr.bf16.mxu0 0
          %883 = vmatpush2.bf16.xpose.msra.mxu0 0
          %884 = vmatprep.mubr.bf16.mxu0 0
          %885 = vmatmul.mubr.bf16.gmra.mxu0 %v847
          %v886 = vpop.f32.mrf.mxu0
          %v887 = vadd.f32 0.0, %v886
          %v888 = vpop.f32.mrf.mxu0
          %v889 = vpop.f32.mrf.mxu0
          %v890 = vpop.f32.mrf.mxu0
          %891 = vdwg.mxu0
          %v893 = vsel %vm707, %v666, 0
          %v896 = vsel %vm707, %v680, 0
          %898 = vmatprep.subr.bf16.mxu0 0
          %899 = vmatpush1.bf16.xpose.msra.mxu0 0
          %900 = vmatprep.subr.bf16.mxu0 0
          %901 = vmatpush1.bf16.xpose.msra.mxu0 0
          %902 = vmatprep.subr.bf16.mxu0 0
          %903 = vmatpush1.bf16.xpose.msra.mxu0 0
          %904 = vmatprep.subr.bf16.mxu0 0
          %905 = vmatpush1.bf16.xpose.msra.mxu0 0
          %906 = vmatprep.subr.bf16.mxu0 0
          %907 = vmatpush1.bf16.xpose.msra.mxu0 0
          %908 = vmatprep.subr.bf16.mxu0 0
          %909 = vmatpush1.bf16.xpose.msra.mxu0 0
          %910 = vmatprep.subr.bf16.mxu0 0
          %911 = vmatpush1.bf16.xpose.msra.mxu0 0
          %912 = vmatprep.subr.bf16.mxu0 0
          %913 = vmatpush1.bf16.xpose.msra.mxu0 %v896
          %914 = vmatprep.subr.bf16.mxu0 0
          %915 = vmatpush2.bf16.xpose.msra.mxu0 0
          %916 = vmatprep.subr.bf16.mxu0 0
          %917 = vmatpush2.bf16.xpose.msra.mxu0 0
          %918 = vmatprep.subr.bf16.mxu0 0
          %919 = vmatpush2.bf16.xpose.msra.mxu0 0
          %920 = vmatprep.subr.bf16.mxu0 0
          %921 = vmatpush2.bf16.xpose.msra.mxu0 0
          %922 = vmatprep.subr.bf16.mxu0 0
          %923 = vmatpush2.bf16.xpose.msra.mxu0 0
          %924 = vmatprep.subr.bf16.mxu0 0
          %925 = vmatpush2.bf16.xpose.msra.mxu0 0
          %926 = vmatprep.subr.bf16.mxu0 0
          %927 = vmatpush2.bf16.xpose.msra.mxu0 0
          %928 = vmatprep.subr.bf16.mxu0 0
          %929 = vmatpush2.bf16.xpose.msra.mxu0 0
          %930 = vmatprep.mubr.bf16.mxu0 0
          %931 = vmatmul.mubr.bf16.gmra.mxu0 %v893
          %v932 = vpop.f32.mrf.mxu0
          %v933 = vadd.f32 0.0, %v932
          %v934 = vpop.f32.mrf.mxu0
          %v935 = vpop.f32.mrf.mxu0
          %v936 = vpop.f32.mrf.mxu0
          %937 = vdwg.mxu0
          %v939 = vsel %vm707, %v668, 0
          %v942 = vsel %vm707, %v682, 0
          %944 = vmatprep.subr.bf16.mxu0 0
          %945 = vmatpush1.bf16.xpose.msra.mxu0 0
          %946 = vmatprep.subr.bf16.mxu0 0
          %947 = vmatpush1.bf16.xpose.msra.mxu0 0
          %948 = vmatprep.subr.bf16.mxu0 0
          %949 = vmatpush1.bf16.xpose.msra.mxu0 0
          %950 = vmatprep.subr.bf16.mxu0 0
          %951 = vmatpush1.bf16.xpose.msra.mxu0 0
          %952 = vmatprep.subr.bf16.mxu0 0
          %953 = vmatpush1.bf16.xpose.msra.mxu0 0
          %954 = vmatprep.subr.bf16.mxu0 0
          %955 = vmatpush1.bf16.xpose.msra.mxu0 0
          %956 = vmatprep.subr.bf16.mxu0 0
          %957 = vmatpush1.bf16.xpose.msra.mxu0 0
          %958 = vmatprep.subr.bf16.mxu0 0
          %959 = vmatpush1.bf16.xpose.msra.mxu0 %v942
          %960 = vmatprep.subr.bf16.mxu0 0
          %961 = vmatpush2.bf16.xpose.msra.mxu0 0
          %962 = vmatprep.subr.bf16.mxu0 0
          %963 = vmatpush2.bf16.xpose.msra.mxu0 0
          %964 = vmatprep.subr.bf16.mxu0 0
          %965 = vmatpush2.bf16.xpose.msra.mxu0 0
          %966 = vmatprep.subr.bf16.mxu0 0
          %967 = vmatpush2.bf16.xpose.msra.mxu0 0
          %968 = vmatprep.subr.bf16.mxu0 0
          %969 = vmatpush2.bf16.xpose.msra.mxu0 0
          %970 = vmatprep.subr.bf16.mxu0 0
          %971 = vmatpush2.bf16.xpose.msra.mxu0 0
          %972 = vmatprep.subr.bf16.mxu0 0
          %973 = vmatpush2.bf16.xpose.msra.mxu0 0
          %974 = vmatprep.subr.bf16.mxu0 0
          %975 = vmatpush2.bf16.xpose.msra.mxu0 0
          %976 = vmatprep.mubr.bf16.mxu0 0
          %977 = vmatmul.mubr.bf16.gmra.mxu0 %v939
          %v978 = vpop.f32.mrf.mxu0
          %v979 = vadd.f32 0.0, %v978
          %v980 = vpop.f32.mrf.mxu0
          %v981 = vpop.f32.mrf.mxu0
          %v982 = vpop.f32.mrf.mxu0
          %983 = vdwg.mxu0
          %v985 = vsel %vm707, %v670, 0
          %v988 = vsel %vm707, %v684, 0
          %990 = vmatprep.subr.bf16.mxu0 0
          %991 = vmatpush1.bf16.xpose.msra.mxu0 0
          %992 = vmatprep.subr.bf16.mxu0 0
          %993 = vmatpush1.bf16.xpose.msra.mxu0 0
          %994 = vmatprep.subr.bf16.mxu0 0
          %995 = vmatpush1.bf16.xpose.msra.mxu0 0
          %996 = vmatprep.subr.bf16.mxu0 0
          %997 = vmatpush1.bf16.xpose.msra.mxu0 0
          %998 = vmatprep.subr.bf16.mxu0 0
          %999 = vmatpush1.bf16.xpose.msra.mxu0 0
          %1000 = vmatprep.subr.bf16.mxu0 0
          %1001 = vmatpush1.bf16.xpose.msra.mxu0 0
          %1002 = vmatprep.subr.bf16.mxu0 0
          %1003 = vmatpush1.bf16.xpose.msra.mxu0 0
          %1004 = vmatprep.subr.bf16.mxu0 0
          %1005 = vmatpush1.bf16.xpose.msra.mxu0 %v988
          %1006 = vmatprep.subr.bf16.mxu0 0
          %1007 = vmatpush2.bf16.xpose.msra.mxu0 0
          %1008 = vmatprep.subr.bf16.mxu0 0
          %1009 = vmatpush2.bf16.xpose.msra.mxu0 0
          %1010 = vmatprep.subr.bf16.mxu0 0
          %1011 = vmatpush2.bf16.xpose.msra.mxu0 0
          %1012 = vmatprep.subr.bf16.mxu0 0
          %1013 = vmatpush2.bf16.xpose.msra.mxu0 0
          %1014 = vmatprep.subr.bf16.mxu0 0
          %1015 = vmatpush2.bf16.xpose.msra.mxu0 0
          %1016 = vmatprep.subr.bf16.mxu0 0
          %1017 = vmatpush2.bf16.xpose.msra.mxu0 0
          %1018 = vmatprep.subr.bf16.mxu0 0
          %1019 = vmatpush2.bf16.xpose.msra.mxu0 0
          %1020 = vmatprep.subr.bf16.mxu0 0
          %1021 = vmatpush2.bf16.xpose.msra.mxu0 0
          %1022 = vmatprep.mubr.bf16.mxu0 0
          %1023 = vmatmul.mubr.bf16.gmra.mxu0 %v985
          %v1024 = vpop.f32.mrf.mxu0
          %v1025 = vadd.f32 0.0, %v1024
          %v1026 = vpop.f32.mrf.mxu0
          %v1027 = vpop.f32.mrf.mxu0
          %v1028 = vpop.f32.mrf.mxu0
          %1029 = vdwg.mxu0
          %v1031 = vsel %vm707, %v672, 0
          %v1034 = vsel %vm707, %v686, 0
          %1036 = vmatprep.subr.bf16.mxu0 0
          %1037 = vmatpush1.bf16.xpose.msra.mxu0 0
          %1038 = vmatprep.subr.bf16.mxu0 0
          %1039 = vmatpush1.bf16.xpose.msra.mxu0 0
          %1040 = vmatprep.subr.bf16.mxu0 0
          %1041 = vmatpush1.bf16.xpose.msra.mxu0 0
          %1042 = vmatprep.subr.bf16.mxu0 0
          %1043 = vmatpush1.bf16.xpose.msra.mxu0 0
          %1044 = vmatprep.subr.bf16.mxu0 0
          %1045 = vmatpush1.bf16.xpose.msra.mxu0 0
          %1046 = vmatprep.subr.bf16.mxu0 0
          %1047 = vmatpush1.bf16.xpose.msra.mxu0 0
          %1048 = vmatprep.subr.bf16.mxu0 0
          %1049 = vmatpush1.bf16.xpose.msra.mxu0 0
          %1050 = vmatprep.subr.bf16.mxu0 0
          %1051 = vmatpush1.bf16.xpose.msra.mxu0 %v1034
          %1052 = vmatprep.subr.bf16.mxu0 0
          %1053 = vmatpush2.bf16.xpose.msra.mxu0 0
          %1054 = vmatprep.subr.bf16.mxu0 0
          %1055 = vmatpush2.bf16.xpose.msra.mxu0 0
          %1056 = vmatprep.subr.bf16.mxu0 0
          %1057 = vmatpush2.bf16.xpose.msra.mxu0 0
          %1058 = vmatprep.subr.bf16.mxu0 0
          %1059 = vmatpush2.bf16.xpose.msra.mxu0 0
          %1060 = vmatprep.subr.bf16.mxu0 0
          %1061 = vmatpush2.bf16.xpose.msra.mxu0 0
          %1062 = vmatprep.subr.bf16.mxu0 0
          %1063 = vmatpush2.bf16.xpose.msra.mxu0 0
          %1064 = vmatprep.subr.bf16.mxu0 0
          %1065 = vmatpush2.bf16.xpose.msra.mxu0 0
          %1066 = vmatprep.subr.bf16.mxu0 0
          %1067 = vmatpush2.bf16.xpose.msra.mxu0 0
          %1068 = vmatprep.mubr.bf16.mxu0 0
          %1069 = vmatmul.mubr.bf16.gmra.mxu0 %v1031
          %v1070 = vpop.f32.mrf.mxu0
          %v1071 = vadd.f32 0.0, %v1070
          %v1072 = vpop.f32.mrf.mxu0
          %v1073 = vpop.f32.mrf.mxu0
          %v1074 = vpop.f32.mrf.mxu0
          %1075 = vdwg.mxu0
          %vm1076 = vcmask 130048
          %v1077 = vsel %vm1076, %v749, -inf
          %1078 = vmax.xlane.f32.xlu0 %v1077
          %v1079 = vpop.xlane.xlu0 %1078
          %v1080 = vsel %vm1076, %v795, -inf
          %1081 = vmax.xlane.f32.xlu0 %v1080
          %v1082 = vpop.xlane.xlu0 %1081
          %v1083 = vsel %vm1076, %v841, -inf
          %1084 = vmax.xlane.f32.xlu0 %v1083
          %v1085 = vpop.xlane.xlu0 %1084
          %v1086 = vsel %vm1076, %v887, -inf
          %1087 = vmax.xlane.f32.xlu0 %v1086
          %v1088 = vpop.xlane.xlu0 %1087
          %v1089 = vsel %vm1076, %v933, -inf
          %1090 = vmax.xlane.f32.xlu0 %v1089
          %v1091 = vpop.xlane.xlu0 %1090
          %v1092 = vsel %vm1076, %v979, -inf
          %1093 = vmax.xlane.f32.xlu0 %v1092
          %v1094 = vpop.xlane.xlu0 %1093
          %v1095 = vsel %vm1076, %v1025, -inf
          %1096 = vmax.xlane.f32.xlu0 %v1095
          %v1097 = vpop.xlane.xlu0 %1096
          %v1098 = vsel %vm1076, %v1071, -inf
          %1099 = vmax.xlane.f32.xlu0 %v1098
          %v1100 = vpop.xlane.xlu0 %1099
          %v1101 = vsub.f32 %v749, %v1079
          %v1102 = vsub.f32 %v795, %v1082
          %v1103 = vsub.f32 %v841, %v1085
          %v1104 = vsub.f32 %v887, %v1088
          %v1105 = vsub.f32 %v933, %v1091
          %v1106 = vsub.f32 %v979, %v1094
          %v1107 = vsub.f32 %v1025, %v1097
          %v1108 = vsub.f32 %v1071, %v1100
          %v1109 = vmul.f32 %v1101, 1.442695
          %v1110 = vpow.pop %v1109
          %v1111 = vmul.f32 %v1102, 1.442695
          %v1112 = vpow.pop %v1111
          %v1113 = vmul.f32 %v1103, 1.442695
          %v1114 = vpow.pop %v1113
          %v1115 = vmul.f32 %v1104, 1.442695
          %v1116 = vpow.pop %v1115
          %v1117 = vmul.f32 %v1105, 1.442695
          %v1118 = vpow.pop %v1117
          %v1119 = vmul.f32 %v1106, 1.442695
          %v1120 = vpow.pop %v1119
          %v1121 = vmul.f32 %v1107, 1.442695
          %v1122 = vpow.pop %v1121
          %v1123 = vmul.f32 %v1108, 1.442695
          %v1124 = vpow.pop %v1123
          %v1125 = vsel %vm1076, %v1110, 0.0
          %1126 = vadd.xlane.f32.xlu0 %v1125
          %v1127 = vpop.xlane.xlu0 %1126
          %v1128 = vsel %vm1076, %v1112, 0.0
          %1129 = vadd.xlane.f32.xlu0 %v1128
          %v1130 = vpop.xlane.xlu0 %1129
          %v1131 = vsel %vm1076, %v1114, 0.0
          %1132 = vadd.xlane.f32.xlu0 %v1131
          %v1133 = vpop.xlane.xlu0 %1132
          %v1134 = vsel %vm1076, %v1116, 0.0
          %1135 = vadd.xlane.f32.xlu0 %v1134
          %v1136 = vpop.xlane.xlu0 %1135
          %v1137 = vsel %vm1076, %v1118, 0.0
          %1138 = vadd.xlane.f32.xlu0 %v1137
          %v1139 = vpop.xlane.xlu0 %1138
          %v1140 = vsel %vm1076, %v1120, 0.0
          %1141 = vadd.xlane.f32.xlu0 %v1140
          %v1142 = vpop.xlane.xlu0 %1141
          %v1143 = vsel %vm1076, %v1122, 0.0
          %1144 = vadd.xlane.f32.xlu0 %v1143
          %v1145 = vpop.xlane.xlu0 %1144
          %v1146 = vsel %vm1076, %v1124, 0.0
          %1147 = vadd.xlane.f32.xlu0 %v1146
          %v1148 = vpop.xlane.xlu0 %1147
          %v1149 = vrcp.pop %v1127
          %v1150 = vrcp.pop %v1130
          %v1151 = vrcp.pop %v1133
          %v1152 = vrcp.pop %v1136
          %v1153 = vrcp.pop %v1139
          %v1154 = vrcp.pop %v1142
          %v1155 = vrcp.pop %v1145
          %v1156 = vrcp.pop %v1148
          %v1157 = vmul.f32 %v1110, %v1149
          %v1158 = vmul.f32 %v1112, %v1150
          %v1159 = vmul.f32 %v1114, %v1151
          %v1160 = vmul.f32 %v1116, %v1152
          %v1161 = vmul.f32 %v1118, %v1153
          %v1162 = vmul.f32 %v1120, %v1154
          %v1163 = vmul.f32 %v1122, %v1155
          %v1164 = vmul.f32 %v1124, %v1156
          %v1165 = vpack.c.bf16 %v1157, %v1157
          %v1166 = vpack.c.bf16 %v1158, %v1158
          %v1167 = vpack.c.bf16 %v1159, %v1159
          %v1168 = vpack.c.bf16 %v1160, %v1160
          %v1169 = vpack.c.bf16 %v1161, %v1161
          %v1170 = vpack.c.bf16 %v1162, %v1162
          %v1171 = vpack.c.bf16 %v1163, %v1163
          %v1172 = vpack.c.bf16 %v1164, %v1164
          %v1174 = vsel %vm1076, %v1165, 0
          %1176 = vmatprep.subr.bf16.mxu0 0
          %1177 = vmatpush1.bf16.msra.mxu0 0
          %1178 = vmatprep.subr.bf16.mxu0 0
          %1179 = vmatpush1.bf16.msra.mxu0 0
          %1180 = vmatprep.subr.bf16.mxu0 0
          %1181 = vmatpush1.bf16.msra.mxu0 0
          %1182 = vmatprep.subr.bf16.mxu0 0
          %1183 = vmatpush1.bf16.msra.mxu0 0
          %1184 = vmatprep.subr.bf16.mxu0 0
          %1185 = vmatpush1.bf16.msra.mxu0 0
          %1186 = vmatprep.subr.bf16.mxu0 0
          %1187 = vmatpush1.bf16.msra.mxu0 0
          %1188 = vmatprep.subr.bf16.mxu0 0
          %1189 = vmatpush1.bf16.msra.mxu0 0
          %1190 = vmatprep.subr.bf16.mxu0 0
          %1191 = vmatpush1.bf16.msra.mxu0 %v657
          %1192 = vmatprep.subr.bf16.mxu0 0
          %1193 = vmatpush2.bf16.msra.mxu0 0
          %1194 = vmatprep.subr.bf16.mxu0 0
          %1195 = vmatpush2.bf16.msra.mxu0 0
          %1196 = vmatprep.subr.bf16.mxu0 0
          %1197 = vmatpush2.bf16.msra.mxu0 0
          %1198 = vmatprep.subr.bf16.mxu0 0
          %1199 = vmatpush2.bf16.msra.mxu0 0
          %1200 = vmatprep.subr.bf16.mxu0 0
          %1201 = vmatpush2.bf16.msra.mxu0 0
          %1202 = vmatprep.subr.bf16.mxu0 0
          %1203 = vmatpush2.bf16.msra.mxu0 0
          %1204 = vmatprep.subr.bf16.mxu0 0
          %1205 = vmatpush2.bf16.msra.mxu0 0
          %1206 = vmatprep.subr.bf16.mxu0 0
          %1207 = vmatpush2.bf16.msra.mxu0 0
          %1208 = vmatprep.mubr.bf16.mxu0 0
          %1209 = vmatmul.mubr.bf16.gmra.mxu0 %v1174
          %v1210 = vpop.f32.mrf.mxu0
          %v1211 = vadd.f32 0.0, %v1210
          %v1212 = vpop.f32.mrf.mxu0
          %v1213 = vpop.f32.mrf.mxu0
          %v1214 = vpop.f32.mrf.mxu0
          %1215 = vdwg.mxu0
          %v1217 = vsel %vm1076, %v1166, 0
          %1219 = vmatprep.subr.bf16.mxu0 0
          %1220 = vmatpush1.bf16.msra.mxu0 0
          %1221 = vmatprep.subr.bf16.mxu0 0
          %1222 = vmatpush1.bf16.msra.mxu0 0
          %1223 = vmatprep.subr.bf16.mxu0 0
          %1224 = vmatpush1.bf16.msra.mxu0 0
          %1225 = vmatprep.subr.bf16.mxu0 0
          %1226 = vmatpush1.bf16.msra.mxu0 0
          %1227 = vmatprep.subr.bf16.mxu0 0
          %1228 = vmatpush1.bf16.msra.mxu0 0
          %1229 = vmatprep.subr.bf16.mxu0 0
          %1230 = vmatpush1.bf16.msra.mxu0 0
          %1231 = vmatprep.subr.bf16.mxu0 0
          %1232 = vmatpush1.bf16.msra.mxu0 0
          %1233 = vmatprep.subr.bf16.mxu0 0
          %1234 = vmatpush1.bf16.msra.mxu0 %v658
          %1235 = vmatprep.subr.bf16.mxu0 0
          %1236 = vmatpush2.bf16.msra.mxu0 0
          %1237 = vmatprep.subr.bf16.mxu0 0
          %1238 = vmatpush2.bf16.msra.mxu0 0
          %1239 = vmatprep.subr.bf16.mxu0 0
          %1240 = vmatpush2.bf16.msra.mxu0 0
          %1241 = vmatprep.subr.bf16.mxu0 0
          %1242 = vmatpush2.bf16.msra.mxu0 0
          %1243 = vmatprep.subr.bf16.mxu0 0
          %1244 = vmatpush2.bf16.msra.mxu0 0
          %1245 = vmatprep.subr.bf16.mxu0 0
          %1246 = vmatpush2.bf16.msra.mxu0 0
          %1247 = vmatprep.subr.bf16.mxu0 0
          %1248 = vmatpush2.bf16.msra.mxu0 0
          %1249 = vmatprep.subr.bf16.mxu0 0
          %1250 = vmatpush2.bf16.msra.mxu0 0
          %1251 = vmatprep.mubr.bf16.mxu0 0
          %1252 = vmatmul.mubr.bf16.gmra.mxu0 %v1217
          %v1253 = vpop.f32.mrf.mxu0
          %v1254 = vadd.f32 0.0, %v1253
          %v1255 = vpop.f32.mrf.mxu0
          %v1256 = vpop.f32.mrf.mxu0
          %v1257 = vpop.f32.mrf.mxu0
          %1258 = vdwg.mxu0
          %v1260 = vsel %vm1076, %v1167, 0
          %1262 = vmatprep.subr.bf16.mxu0 0
          %1263 = vmatpush1.bf16.msra.mxu0 0
          %1264 = vmatprep.subr.bf16.mxu0 0
          %1265 = vmatpush1.bf16.msra.mxu0 0
          %1266 = vmatprep.subr.bf16.mxu0 0
          %1267 = vmatpush1.bf16.msra.mxu0 0
          %1268 = vmatprep.subr.bf16.mxu0 0
          %1269 = vmatpush1.bf16.msra.mxu0 0
          %1270 = vmatprep.subr.bf16.mxu0 0
          %1271 = vmatpush1.bf16.msra.mxu0 0
          %1272 = vmatprep.subr.bf16.mxu0 0
          %1273 = vmatpush1.bf16.msra.mxu0 0
          %1274 = vmatprep.subr.bf16.mxu0 0
          %1275 = vmatpush1.bf16.msra.mxu0 0
          %1276 = vmatprep.subr.bf16.mxu0 0
          %1277 = vmatpush1.bf16.msra.mxu0 %v689
          %1278 = vmatprep.subr.bf16.mxu0 0
          %1279 = vmatpush2.bf16.msra.mxu0 0
          %1280 = vmatprep.subr.bf16.mxu0 0
          %1281 = vmatpush2.bf16.msra.mxu0 0
          %1282 = vmatprep.subr.bf16.mxu0 0
          %1283 = vmatpush2.bf16.msra.mxu0 0
          %1284 = vmatprep.subr.bf16.mxu0 0
          %1285 = vmatpush2.bf16.msra.mxu0 0
          %1286 = vmatprep.subr.bf16.mxu0 0
          %1287 = vmatpush2.bf16.msra.mxu0 0
          %1288 = vmatprep.subr.bf16.mxu0 0
          %1289 = vmatpush2.bf16.msra.mxu0 0
          %1290 = vmatprep.subr.bf16.mxu0 0
          %1291 = vmatpush2.bf16.msra.mxu0 0
          %1292 = vmatprep.subr.bf16.mxu0 0
          %1293 = vmatpush2.bf16.msra.mxu0 0
          %1294 = vmatprep.mubr.bf16.mxu0 0
          %1295 = vmatmul.mubr.bf16.gmra.mxu0 %v1260
          %v1296 = vpop.f32.mrf.mxu0
          %v1297 = vadd.f32 0.0, %v1296
          %v1298 = vpop.f32.mrf.mxu0
          %v1299 = vpop.f32.mrf.mxu0
          %v1300 = vpop.f32.mrf.mxu0
          %1301 = vdwg.mxu0
          %v1303 = vsel %vm1076, %v1168, 0
          %1305 = vmatprep.subr.bf16.mxu0 0
          %1306 = vmatpush1.bf16.msra.mxu0 0
          %1307 = vmatprep.subr.bf16.mxu0 0
          %1308 = vmatpush1.bf16.msra.mxu0 0
          %1309 = vmatprep.subr.bf16.mxu0 0
          %1310 = vmatpush1.bf16.msra.mxu0 0
          %1311 = vmatprep.subr.bf16.mxu0 0
          %1312 = vmatpush1.bf16.msra.mxu0 0
          %1313 = vmatprep.subr.bf16.mxu0 0
          %1314 = vmatpush1.bf16.msra.mxu0 0
          %1315 = vmatprep.subr.bf16.mxu0 0
          %1316 = vmatpush1.bf16.msra.mxu0 0
          %1317 = vmatprep.subr.bf16.mxu0 0
          %1318 = vmatpush1.bf16.msra.mxu0 0
          %1319 = vmatprep.subr.bf16.mxu0 0
          %1320 = vmatpush1.bf16.msra.mxu0 %v693
          %1321 = vmatprep.subr.bf16.mxu0 0
          %1322 = vmatpush2.bf16.msra.mxu0 0
          %1323 = vmatprep.subr.bf16.mxu0 0
          %1324 = vmatpush2.bf16.msra.mxu0 0
          %1325 = vmatprep.subr.bf16.mxu0 0
          %1326 = vmatpush2.bf16.msra.mxu0 0
          %1327 = vmatprep.subr.bf16.mxu0 0
          %1328 = vmatpush2.bf16.msra.mxu0 0
          %1329 = vmatprep.subr.bf16.mxu0 0
          %1330 = vmatpush2.bf16.msra.mxu0 0
          %1331 = vmatprep.subr.bf16.mxu0 0
          %1332 = vmatpush2.bf16.msra.mxu0 0
          %1333 = vmatprep.subr.bf16.mxu0 0
          %1334 = vmatpush2.bf16.msra.mxu0 0
          %1335 = vmatprep.subr.bf16.mxu0 0
          %1336 = vmatpush2.bf16.msra.mxu0 0
          %1337 = vmatprep.mubr.bf16.mxu0 0
          %1338 = vmatmul.mubr.bf16.gmra.mxu0 %v1303
          %v1339 = vpop.f32.mrf.mxu0
          %v1340 = vadd.f32 0.0, %v1339
          %v1341 = vpop.f32.mrf.mxu0
          %v1342 = vpop.f32.mrf.mxu0
          %v1343 = vpop.f32.mrf.mxu0
          %1344 = vdwg.mxu0
          %v1346 = vsel %vm1076, %v1169, 0
          %1348 = vmatprep.subr.bf16.mxu0 0
          %1349 = vmatpush1.bf16.msra.mxu0 0
          %1350 = vmatprep.subr.bf16.mxu0 0
          %1351 = vmatpush1.bf16.msra.mxu0 0
          %1352 = vmatprep.subr.bf16.mxu0 0
          %1353 = vmatpush1.bf16.msra.mxu0 0
          %1354 = vmatprep.subr.bf16.mxu0 0
          %1355 = vmatpush1.bf16.msra.mxu0 0
          %1356 = vmatprep.subr.bf16.mxu0 0
          %1357 = vmatpush1.bf16.msra.mxu0 0
          %1358 = vmatprep.subr.bf16.mxu0 0
          %1359 = vmatpush1.bf16.msra.mxu0 0
          %1360 = vmatprep.subr.bf16.mxu0 0
          %1361 = vmatpush1.bf16.msra.mxu0 0
          %1362 = vmatprep.subr.bf16.mxu0 0
          %1363 = vmatpush1.bf16.msra.mxu0 %v696
          %1364 = vmatprep.subr.bf16.mxu0 0
          %1365 = vmatpush2.bf16.msra.mxu0 0
          %1366 = vmatprep.subr.bf16.mxu0 0
          %1367 = vmatpush2.bf16.msra.mxu0 0
          %1368 = vmatprep.subr.bf16.mxu0 0
          %1369 = vmatpush2.bf16.msra.mxu0 0
          %1370 = vmatprep.subr.bf16.mxu0 0
          %1371 = vmatpush2.bf16.msra.mxu0 0
          %1372 = vmatprep.subr.bf16.mxu0 0
          %1373 = vmatpush2.bf16.msra.mxu0 0
          %1374 = vmatprep.subr.bf16.mxu0 0
          %1375 = vmatpush2.bf16.msra.mxu0 0
          %1376 = vmatprep.subr.bf16.mxu0 0
          %1377 = vmatpush2.bf16.msra.mxu0 0
          %1378 = vmatprep.subr.bf16.mxu0 0
          %1379 = vmatpush2.bf16.msra.mxu0 0
          %1380 = vmatprep.mubr.bf16.mxu0 0
          %1381 = vmatmul.mubr.bf16.gmra.mxu0 %v1346
          %v1382 = vpop.f32.mrf.mxu0
          %v1383 = vadd.f32 0.0, %v1382
          %v1384 = vpop.f32.mrf.mxu0
          %v1385 = vpop.f32.mrf.mxu0
          %v1386 = vpop.f32.mrf.mxu0
          %1387 = vdwg.mxu0
          %v1389 = vsel %vm1076, %v1170, 0
          %1391 = vmatprep.subr.bf16.mxu0 0
          %1392 = vmatpush1.bf16.msra.mxu0 0
          %1393 = vmatprep.subr.bf16.mxu0 0
          %1394 = vmatpush1.bf16.msra.mxu0 0
          %1395 = vmatprep.subr.bf16.mxu0 0
          %1396 = vmatpush1.bf16.msra.mxu0 0
          %1397 = vmatprep.subr.bf16.mxu0 0
          %1398 = vmatpush1.bf16.msra.mxu0 0
          %1399 = vmatprep.subr.bf16.mxu0 0
          %1400 = vmatpush1.bf16.msra.mxu0 0
          %1401 = vmatprep.subr.bf16.mxu0 0
          %1402 = vmatpush1.bf16.msra.mxu0 0
          %1403 = vmatprep.subr.bf16.mxu0 0
          %1404 = vmatpush1.bf16.msra.mxu0 0
          %1405 = vmatprep.subr.bf16.mxu0 0
          %1406 = vmatpush1.bf16.msra.mxu0 %v699
          %1407 = vmatprep.subr.bf16.mxu0 0
          %1408 = vmatpush2.bf16.msra.mxu0 0
          %1409 = vmatprep.subr.bf16.mxu0 0
          %1410 = vmatpush2.bf16.msra.mxu0 0
          %1411 = vmatprep.subr.bf16.mxu0 0
          %1412 = vmatpush2.bf16.msra.mxu0 0
          %1413 = vmatprep.subr.bf16.mxu0 0
          %1414 = vmatpush2.bf16.msra.mxu0 0
          %1415 = vmatprep.subr.bf16.mxu0 0
          %1416 = vmatpush2.bf16.msra.mxu0 0
          %1417 = vmatprep.subr.bf16.mxu0 0
          %1418 = vmatpush2.bf16.msra.mxu0 0
          %1419 = vmatprep.subr.bf16.mxu0 0
          %1420 = vmatpush2.bf16.msra.mxu0 0
          %1421 = vmatprep.subr.bf16.mxu0 0
          %1422 = vmatpush2.bf16.msra.mxu0 0
          %1423 = vmatprep.mubr.bf16.mxu0 0
          %1424 = vmatmul.mubr.bf16.gmra.mxu0 %v1389
          %v1425 = vpop.f32.mrf.mxu0
          %v1426 = vadd.f32 0.0, %v1425
          %v1427 = vpop.f32.mrf.mxu0
          %v1428 = vpop.f32.mrf.mxu0
          %v1429 = vpop.f32.mrf.mxu0
          %1430 = vdwg.mxu0
          %v1432 = vsel %vm1076, %v1171, 0
          %1434 = vmatprep.subr.bf16.mxu0 0
          %1435 = vmatpush1.bf16.msra.mxu0 0
          %1436 = vmatprep.subr.bf16.mxu0 0
          %1437 = vmatpush1.bf16.msra.mxu0 0
          %1438 = vmatprep.subr.bf16.mxu0 0
          %1439 = vmatpush1.bf16.msra.mxu0 0
          %1440 = vmatprep.subr.bf16.mxu0 0
          %1441 = vmatpush1.bf16.msra.mxu0 0
          %1442 = vmatprep.subr.bf16.mxu0 0
          %1443 = vmatpush1.bf16.msra.mxu0 0
          %1444 = vmatprep.subr.bf16.mxu0 0
          %1445 = vmatpush1.bf16.msra.mxu0 0
          %1446 = vmatprep.subr.bf16.mxu0 0
          %1447 = vmatpush1.bf16.msra.mxu0 0
          %1448 = vmatprep.subr.bf16.mxu0 0
          %1449 = vmatpush1.bf16.msra.mxu0 %v702
          %1450 = vmatprep.subr.bf16.mxu0 0
          %1451 = vmatpush2.bf16.msra.mxu0 0
          %1452 = vmatprep.subr.bf16.mxu0 0
          %1453 = vmatpush2.bf16.msra.mxu0 0
          %1454 = vmatprep.subr.bf16.mxu0 0
          %1455 = vmatpush2.bf16.msra.mxu0 0
          %1456 = vmatprep.subr.bf16.mxu0 0
          %1457 = vmatpush2.bf16.msra.mxu0 0
          %1458 = vmatprep.subr.bf16.mxu0 0
          %1459 = vmatpush2.bf16.msra.mxu0 0
          %1460 = vmatprep.subr.bf16.mxu0 0
          %1461 = vmatpush2.bf16.msra.mxu0 0
          %1462 = vmatprep.subr.bf16.mxu0 0
          %1463 = vmatpush2.bf16.msra.mxu0 0
          %1464 = vmatprep.subr.bf16.mxu0 0
          %1465 = vmatpush2.bf16.msra.mxu0 0
          %1466 = vmatprep.mubr.bf16.mxu0 0
          %1467 = vmatmul.mubr.bf16.gmra.mxu0 %v1432
          %v1468 = vpop.f32.mrf.mxu0
          %v1469 = vadd.f32 0.0, %v1468
          %v1470 = vpop.f32.mrf.mxu0
          %v1471 = vpop.f32.mrf.mxu0
          %v1472 = vpop.f32.mrf.mxu0
          %1473 = vdwg.mxu0
          %v1475 = vsel %vm1076, %v1172, 0
          %1477 = vmatprep.subr.bf16.mxu0 0
          %1478 = vmatpush1.bf16.msra.mxu0 0
          %1479 = vmatprep.subr.bf16.mxu0 0
          %1480 = vmatpush1.bf16.msra.mxu0 0
          %1481 = vmatprep.subr.bf16.mxu0 0
          %1482 = vmatpush1.bf16.msra.mxu0 0
          %1483 = vmatprep.subr.bf16.mxu0 0
          %1484 = vmatpush1.bf16.msra.mxu0 0
          %1485 = vmatprep.subr.bf16.mxu0 0
          %1486 = vmatpush1.bf16.msra.mxu0 0
          %1487 = vmatprep.subr.bf16.mxu0 0
          %1488 = vmatpush1.bf16.msra.mxu0 0
          %1489 = vmatprep.subr.bf16.mxu0 0
          %1490 = vmatpush1.bf16.msra.mxu0 0
          %1491 = vmatprep.subr.bf16.mxu0 0
          %1492 = vmatpush1.bf16.msra.mxu0 %v705
          %1493 = vmatprep.subr.bf16.mxu0 0
          %1494 = vmatpush2.bf16.msra.mxu0 0
          %1495 = vmatprep.subr.bf16.mxu0 0
          %1496 = vmatpush2.bf16.msra.mxu0 0
          %1497 = vmatprep.subr.bf16.mxu0 0
          %1498 = vmatpush2.bf16.msra.mxu0 0
          %1499 = vmatprep.subr.bf16.mxu0 0
          %1500 = vmatpush2.bf16.msra.mxu0 0
          %1501 = vmatprep.subr.bf16.mxu0 0
          %1502 = vmatpush2.bf16.msra.mxu0 0
          %1503 = vmatprep.subr.bf16.mxu0 0
          %1504 = vmatpush2.bf16.msra.mxu0 0
          %1505 = vmatprep.subr.bf16.mxu0 0
          %1506 = vmatpush2.bf16.msra.mxu0 0
          %1507 = vmatprep.subr.bf16.mxu0 0
          %1508 = vmatpush2.bf16.msra.mxu0 0
          %1509 = vmatprep.mubr.bf16.mxu0 0
          %1510 = vmatmul.mubr.bf16.gmra.mxu0 %v1475
          %v1511 = vpop.f32.mrf.mxu0
          %v1512 = vadd.f32 0.0, %v1511
          %v1513 = vpop.f32.mrf.mxu0
          %v1514 = vpop.f32.mrf.mxu0
          %v1515 = vpop.f32.mrf.mxu0
          %1516 = vdwg.mxu0
          %1519 = vrot.lane.b32.xlu0 %v1297, 32
          %v1520 = vpop.permute.xlu0 %1519
          %1521 = vrot.lane.b32.xlu0 %v1340, 32
          %v1522 = vpop.permute.xlu0 %1521
          %1527 = vrot.lane.b32.xlu0 %v1383, 64
          %v1528 = vpop.permute.xlu0 %1527
          %1529 = vrot.lane.b32.xlu0 %v1426, 64
          %v1530 = vpop.permute.xlu0 %1529
          %1535 = vrot.lane.b32.xlu0 %v1469, 96
          %v1536 = vpop.permute.xlu0 %1535
          %1537 = vrot.lane.b32.xlu0 %v1512, 96
          %v1538 = vpop.permute.xlu0 %1537
          %v1541 = vsel %vm707, %v1211, %v1520
          %v1542 = vsel %vm707, %v1254, %v1522
          %vm1543 = vcmask 523264
          %v1544 = vsel %vm1543, %v1541, %v1528
          %v1545 = vsel %vm1543, %v1542, %v1530
          %vm1546 = vcmask 785408
          %v1547 = vsel %vm1546, %v1544, %v1536
          %v1548 = vsel %vm1546, %v1545, %v1538
          %1549 = vst [vmem:[#allocation3] sm:$0xff] %v1547
          %1550 = vst [vmem:[#allocation3 + $0x8] sm:$0xff] %v1548
        $region68: #{tpu_custom_call.1} parent=39 // pred_fallthru
          _
        %p1551 = scmp.eq.s32.totalorder %s376, 0
        // Predicated region
        $region69: #{tpu_custom_call.1} parent=39 // pred_check
          %p1552 = pneg %p1551
        $region70: #{tpu_custom_call.1} parent=39 // pred_check_branch
          %1554 = sbr.rel (%p1552) target = $region72
        $region71: #{tpu_custom_call.1} parent=39 // pred_region
          %v1571 = vunpack.c.l.b16 %v380
          %v1572 = vunpack.c.h.b16 %v380
          %v1573 = vunpack.c.l.b16 %v381
          %v1574 = vunpack.c.h.b16 %v381
          %v1575 = vunpack.c.l.b16 %v382
          %v1576 = vunpack.c.h.b16 %v382
          %v1577 = vunpack.c.l.b16 %v383
          %v1578 = vunpack.c.h.b16 %v383
          %v1579 = vunpack.c.l.b16 %v384
          %v1580 = vunpack.c.h.b16 %v384
          %v1581 = vunpack.c.l.b16 %v385
          %v1582 = vunpack.c.h.b16 %v385
          %v1583 = vunpack.c.l.b16 %v386
          %v1584 = vunpack.c.h.b16 %v386
          %v1585 = vunpack.c.l.b16 %v387
          %v1586 = vunpack.c.h.b16 %v387
          %v1587 = vunpack.c.l.b16 %v388
          %v1588 = vunpack.c.h.b16 %v388
          %v1589 = vunpack.c.l.b16 %v389
          %v1590 = vunpack.c.h.b16 %v389
          %v1591 = vunpack.c.l.b16 %v390
          %v1592 = vunpack.c.h.b16 %v390
          %v1593 = vunpack.c.l.b16 %v391
          %v1594 = vunpack.c.h.b16 %v391
          %v1595 = vunpack.c.l.b16 %v392
          %v1596 = vunpack.c.h.b16 %v392
          %v1597 = vunpack.c.l.b16 %v393
          %v1598 = vunpack.c.h.b16 %v393
          %v1599 = vunpack.c.l.b16 %v394
          %v1600 = vunpack.c.h.b16 %v394
          %v1601 = vunpack.c.l.b16 %v395
          %v1602 = vunpack.c.h.b16 %v395
          %v1603 = vpack.c.b16 %v1573, %v1571
          %v1604 = vpack.c.b16 %v1574, %v1572
          %v1605 = vpack.c.b16 %v1577, %v1575
          %v1606 = vpack.c.b16 %v1578, %v1576
          %v1607 = vpack.c.b16 %v1581, %v1579
          %v1608 = vpack.c.b16 %v1582, %v1580
          %v1609 = vpack.c.b16 %v1585, %v1583
          %v1610 = vpack.c.b16 %v1586, %v1584
          %v1611 = vpack.c.b16 %v1589, %v1587
          %v1612 = vpack.c.b16 %v1590, %v1588
          %v1613 = vpack.c.b16 %v1593, %v1591
          %v1614 = vpack.c.b16 %v1594, %v1592
          %v1615 = vpack.c.b16 %v1597, %v1595
          %v1616 = vpack.c.b16 %v1598, %v1596
          %v1617 = vpack.c.b16 %v1601, %v1599
          %v1618 = vpack.c.b16 %v1602, %v1600
          %1635 = vmatprep.subr.bf16.mxu0 %v1618
          %1636 = vmatpush1.bf16.msra.mxu0 %v1617
          %1637 = vmatprep.subr.bf16.mxu0 %v1616
          %1638 = vmatpush1.bf16.msra.mxu0 %v1615
          %1639 = vmatprep.subr.bf16.mxu0 %v1614
          %1640 = vmatpush1.bf16.msra.mxu0 %v1613
          %1641 = vmatprep.subr.bf16.mxu0 %v1612
          %1642 = vmatpush1.bf16.msra.mxu0 %v1611
          %1643 = vmatprep.subr.bf16.mxu0 %v1610
          %1644 = vmatpush1.bf16.msra.mxu0 %v1609
          %1645 = vmatprep.subr.bf16.mxu0 %v1608
          %1646 = vmatpush1.bf16.msra.mxu0 %v1607
          %1647 = vmatprep.subr.bf16.mxu0 %v1606
          %1648 = vmatpush1.bf16.msra.mxu0 %v1605
          %1649 = vmatprep.subr.bf16.mxu0 %v1604
          %1650 = vmatpush1.bf16.msra.mxu0 %v1603
          %1651 = vmatprep.subr.bf16.mxu0 0
          %1652 = vmatpush2.bf16.msra.mxu0 0
          %1653 = vmatprep.subr.bf16.mxu0 0
          %1654 = vmatpush2.bf16.msra.mxu0 0
          %1655 = vmatprep.subr.bf16.mxu0 0
          %1656 = vmatpush2.bf16.msra.mxu0 0
          %1657 = vmatprep.subr.bf16.mxu0 0
          %1658 = vmatpush2.bf16.msra.mxu0 0
          %1659 = vmatprep.subr.bf16.mxu0 0
          %1660 = vmatpush2.bf16.msra.mxu0 0
          %1661 = vmatprep.subr.bf16.mxu0 0
          %1662 = vmatpush2.bf16.msra.mxu0 0
          %1663 = vmatprep.subr.bf16.mxu0 0
          %1664 = vmatpush2.bf16.msra.mxu0 0
          %1665 = vmatprep.subr.bf16.mxu0 0
          %1666 = vmatpush2.bf16.msra.mxu0 0
          %1667 = vmatprep.mubr.bf16.mxu0 0
          %1668 = vmatmul.mubr.bf16.gmra.mxu0 %v396
          %v1669 = vpop.f32.mrf.mxu0
          %v1670 = vadd.f32 0.0, %v1669
          %v1671 = vpop.f32.mrf.mxu0
          %v1672 = vadd.f32 0.0, %v1671
          %v1673 = vpop.f32.mrf.mxu0
          %v1674 = vadd.f32 0.0, %v1673
          %v1675 = vpop.f32.mrf.mxu0
          %v1676 = vadd.f32 0.0, %v1675
          %1677 = vdwg.mxu0
          %v1678 = vpack.c.bf16 %v499, %v496
          %v1679 = vpack.c.bf16 %v1674, %v1670
          %v1680 = vpack.c.bf16 %v1676, %v1672
          %v1682 = vrot.slane %v1678, 4
          %1683 = vrot.lane.b32.xlu0 %v1678, 96
          %v1684 = vpop.permute.xlu0 %1683
          %1685 = vrot.lane.b32.xlu0 %v1682, 96
          %v1686 = vpop.permute.xlu0 %1685
          %1687 = vrot.lane.b32.xlu0 %v1678, 64
          %v1688 = vpop.permute.xlu0 %1687
          %1689 = vrot.lane.b32.xlu0 %v1682, 64
          %v1690 = vpop.permute.xlu0 %1689
          %1691 = vrot.lane.b32.xlu0 %v1678, 32
          %v1692 = vpop.permute.xlu0 %1691
          %1693 = vrot.lane.b32.xlu0 %v1682, 32
          %v1694 = vpop.permute.xlu0 %1693
          %v1696 = vrot.slane %v1679, 4
          %1697 = vrot.lane.b32.xlu0 %v1679, 96
          %v1698 = vpop.permute.xlu0 %1697
          %1699 = vrot.lane.b32.xlu0 %v1696, 96
          %v1700 = vpop.permute.xlu0 %1699
          %1701 = vrot.lane.b32.xlu0 %v1679, 64
          %v1702 = vpop.permute.xlu0 %1701
          %1703 = vrot.lane.b32.xlu0 %v1696, 64
          %v1704 = vpop.permute.xlu0 %1703
          %1705 = vrot.lane.b32.xlu0 %v1679, 32
          %v1706 = vpop.permute.xlu0 %1705
          %1707 = vrot.lane.b32.xlu0 %v1696, 32
          %v1708 = vpop.permute.xlu0 %1707
          %v1710 = vrot.slane %v1680, 4
          %1711 = vrot.lane.b32.xlu0 %v1680, 96
          %v1712 = vpop.permute.xlu0 %1711
          %1713 = vrot.lane.b32.xlu0 %v1710, 96
          %v1714 = vpop.permute.xlu0 %1713
          %1715 = vrot.lane.b32.xlu0 %v1680, 64
          %v1716 = vpop.permute.xlu0 %1715
          %1717 = vrot.lane.b32.xlu0 %v1710, 64
          %v1718 = vpop.permute.xlu0 %1717
          %1719 = vrot.lane.b32.xlu0 %v1680, 32
          %v1720 = vpop.permute.xlu0 %1719
          %1721 = vrot.lane.b32.xlu0 %v1710, 32
          %v1722 = vpop.permute.xlu0 %1721
          %vm1723 = vcmask 261120
          %v1725 = vsel %vm1723, %v1678, 0
          %v1728 = vsel %vm1723, %v1679, 0
          %1730 = vmatprep.subr.bf16.mxu0 0
          %1731 = vmatpush1.bf16.xpose.msra.mxu0 0
          %1732 = vmatprep.subr.bf16.mxu0 0
          %1733 = vmatpush1.bf16.xpose.msra.mxu0 0
          %1734 = vmatprep.subr.bf16.mxu0 0
          %1735 = vmatpush1.bf16.xpose.msra.mxu0 0
          %1736 = vmatprep.subr.bf16.mxu0 0
          %1737 = vmatpush1.bf16.xpose.msra.mxu0 0
          %1738 = vmatprep.subr.bf16.mxu0 0
          %1739 = vmatpush1.bf16.xpose.msra.mxu0 0
          %1740 = vmatprep.subr.bf16.mxu0 0
          %1741 = vmatpush1.bf16.xpose.msra.mxu0 0
          %1742 = vmatprep.subr.bf16.mxu0 0
          %1743 = vmatpush1.bf16.xpose.msra.mxu0 0
          %1744 = vmatprep.subr.bf16.mxu0 0
          %1745 = vmatpush1.bf16.xpose.msra.mxu0 %v1728
          %1746 = vmatprep.subr.bf16.mxu0 0
          %1747 = vmatpush2.bf16.xpose.msra.mxu0 0
          %1748 = vmatprep.subr.bf16.mxu0 0
          %1749 = vmatpush2.bf16.xpose.msra.mxu0 0
          %1750 = vmatprep.subr.bf16.mxu0 0
          %1751 = vmatpush2.bf16.xpose.msra.mxu0 0
          %1752 = vmatprep.subr.bf16.mxu0 0
          %1753 = vmatpush2.bf16.xpose.msra.mxu0 0
          %1754 = vmatprep.subr.bf16.mxu0 0
          %1755 = vmatpush2.bf16.xpose.msra.mxu0 0
          %1756 = vmatprep.subr.bf16.mxu0 0
          %1757 = vmatpush2.bf16.xpose.msra.mxu0 0
          %1758 = vmatprep.subr.bf16.mxu0 0
          %1759 = vmatpush2.bf16.xpose.msra.mxu0 0
          %1760 = vmatprep.subr.bf16.mxu0 0
          %1761 = vmatpush2.bf16.xpose.msra.mxu0 0
          %1762 = vmatprep.mubr.bf16.mxu0 0
          %1763 = vmatmul.mubr.bf16.gmra.mxu0 %v1725
          %v1764 = vpop.f32.mrf.mxu0
          %v1765 = vadd.f32 0.0, %v1764
          %v1766 = vpop.f32.mrf.mxu0
          %v1767 = vpop.f32.mrf.mxu0
          %v1768 = vpop.f32.mrf.mxu0
          %1769 = vdwg.mxu0
          %v1771 = vsel %vm1723, %v1682, 0
          %v1774 = vsel %vm1723, %v1696, 0
          %1776 = vmatprep.subr.bf16.mxu0 0
          %1777 = vmatpush1.bf16.xpose.msra.mxu0 0
          %1778 = vmatprep.subr.bf16.mxu0 0
          %1779 = vmatpush1.bf16.xpose.msra.mxu0 0
          %1780 = vmatprep.subr.bf16.mxu0 0
          %1781 = vmatpush1.bf16.xpose.msra.mxu0 0
          %1782 = vmatprep.subr.bf16.mxu0 0
          %1783 = vmatpush1.bf16.xpose.msra.mxu0 0
          %1784 = vmatprep.subr.bf16.mxu0 0
          %1785 = vmatpush1.bf16.xpose.msra.mxu0 0
          %1786 = vmatprep.subr.bf16.mxu0 0
          %1787 = vmatpush1.bf16.xpose.msra.mxu0 0
          %1788 = vmatprep.subr.bf16.mxu0 0
          %1789 = vmatpush1.bf16.xpose.msra.mxu0 0
          %1790 = vmatprep.subr.bf16.mxu0 0
          %1791 = vmatpush1.bf16.xpose.msra.mxu0 %v1774
          %1792 = vmatprep.subr.bf16.mxu0 0
          %1793 = vmatpush2.bf16.xpose.msra.mxu0 0
          %1794 = vmatprep.subr.bf16.mxu0 0
          %1795 = vmatpush2.bf16.xpose.msra.mxu0 0
          %1796 = vmatprep.subr.bf16.mxu0 0
          %1797 = vmatpush2.bf16.xpose.msra.mxu0 0
          %1798 = vmatprep.subr.bf16.mxu0 0
          %1799 = vmatpush2.bf16.xpose.msra.mxu0 0
          %1800 = vmatprep.subr.bf16.mxu0 0
          %1801 = vmatpush2.bf16.xpose.msra.mxu0 0
          %1802 = vmatprep.subr.bf16.mxu0 0
          %1803 = vmatpush2.bf16.xpose.msra.mxu0 0
          %1804 = vmatprep.subr.bf16.mxu0 0
          %1805 = vmatpush2.bf16.xpose.msra.mxu0 0
          %1806 = vmatprep.subr.bf16.mxu0 0
          %1807 = vmatpush2.bf16.xpose.msra.mxu0 0
          %1808 = vmatprep.mubr.bf16.mxu0 0
          %1809 = vmatmul.mubr.bf16.gmra.mxu0 %v1771
          %v1810 = vpop.f32.mrf.mxu0
          %v1811 = vadd.f32 0.0, %v1810
          %v1812 = vpop.f32.mrf.mxu0
          %v1813 = vpop.f32.mrf.mxu0
          %v1814 = vpop.f32.mrf.mxu0
          %1815 = vdwg.mxu0
          %v1817 = vsel %vm1723, %v1684, 0
          %v1820 = vsel %vm1723, %v1698, 0
          %1822 = vmatprep.subr.bf16.mxu0 0
          %1823 = vmatpush1.bf16.xpose.msra.mxu0 0
          %1824 = vmatprep.subr.bf16.mxu0 0
          %1825 = vmatpush1.bf16.xpose.msra.mxu0 0
          %1826 = vmatprep.subr.bf16.mxu0 0
          %1827 = vmatpush1.bf16.xpose.msra.mxu0 0
          %1828 = vmatprep.subr.bf16.mxu0 0
          %1829 = vmatpush1.bf16.xpose.msra.mxu0 0
          %1830 = vmatprep.subr.bf16.mxu0 0
          %1831 = vmatpush1.bf16.xpose.msra.mxu0 0
          %1832 = vmatprep.subr.bf16.mxu0 0
          %1833 = vmatpush1.bf16.xpose.msra.mxu0 0
          %1834 = vmatprep.subr.bf16.mxu0 0
          %1835 = vmatpush1.bf16.xpose.msra.mxu0 0
          %1836 = vmatprep.subr.bf16.mxu0 0
          %1837 = vmatpush1.bf16.xpose.msra.mxu0 %v1820
          %1838 = vmatprep.subr.bf16.mxu0 0
          %1839 = vmatpush2.bf16.xpose.msra.mxu0 0
          %1840 = vmatprep.subr.bf16.mxu0 0
          %1841 = vmatpush2.bf16.xpose.msra.mxu0 0
          %1842 = vmatprep.subr.bf16.mxu0 0
          %1843 = vmatpush2.bf16.xpose.msra.mxu0 0
          %1844 = vmatprep.subr.bf16.mxu0 0
          %1845 = vmatpush2.bf16.xpose.msra.mxu0 0
          %1846 = vmatprep.subr.bf16.mxu0 0
          %1847 = vmatpush2.bf16.xpose.msra.mxu0 0
          %1848 = vmatprep.subr.bf16.mxu0 0
          %1849 = vmatpush2.bf16.xpose.msra.mxu0 0
          %1850 = vmatprep.subr.bf16.mxu0 0
          %1851 = vmatpush2.bf16.xpose.msra.mxu0 0
          %1852 = vmatprep.subr.bf16.mxu0 0
          %1853 = vmatpush2.bf16.xpose.msra.mxu0 0
          %1854 = vmatprep.mubr.bf16.mxu0 0
          %1855 = vmatmul.mubr.bf16.gmra.mxu0 %v1817
          %v1856 = vpop.f32.mrf.mxu0
          %v1857 = vadd.f32 0.0, %v1856
          %v1858 = vpop.f32.mrf.mxu0
          %v1859 = vpop.f32.mrf.mxu0
          %v1860 = vpop.f32.mrf.mxu0
          %1861 = vdwg.mxu0
          %v1863 = vsel %vm1723, %v1686, 0
          %v1866 = vsel %vm1723, %v1700, 0
          %1868 = vmatprep.subr.bf16.mxu0 0
          %1869 = vmatpush1.bf16.xpose.msra.mxu0 0
          %1870 = vmatprep.subr.bf16.mxu0 0
          %1871 = vmatpush1.bf16.xpose.msra.mxu0 0
          %1872 = vmatprep.subr.bf16.mxu0 0
          %1873 = vmatpush1.bf16.xpose.msra.mxu0 0
          %1874 = vmatprep.subr.bf16.mxu0 0
          %1875 = vmatpush1.bf16.xpose.msra.mxu0 0
          %1876 = vmatprep.subr.bf16.mxu0 0
          %1877 = vmatpush1.bf16.xpose.msra.mxu0 0
          %1878 = vmatprep.subr.bf16.mxu0 0
          %1879 = vmatpush1.bf16.xpose.msra.mxu0 0
          %1880 = vmatprep.subr.bf16.mxu0 0
          %1881 = vmatpush1.bf16.xpose.msra.mxu0 0
          %1882 = vmatprep.subr.bf16.mxu0 0
          %1883 = vmatpush1.bf16.xpose.msra.mxu0 %v1866
          %1884 = vmatprep.subr.bf16.mxu0 0
          %1885 = vmatpush2.bf16.xpose.msra.mxu0 0
          %1886 = vmatprep.subr.bf16.mxu0 0
          %1887 = vmatpush2.bf16.xpose.msra.mxu0 0
          %1888 = vmatprep.subr.bf16.mxu0 0
          %1889 = vmatpush2.bf16.xpose.msra.mxu0 0
          %1890 = vmatprep.subr.bf16.mxu0 0
          %1891 = vmatpush2.bf16.xpose.msra.mxu0 0
          %1892 = vmatprep.subr.bf16.mxu0 0
          %1893 = vmatpush2.bf16.xpose.msra.mxu0 0
          %1894 = vmatprep.subr.bf16.mxu0 0
          %1895 = vmatpush2.bf16.xpose.msra.mxu0 0
          %1896 = vmatprep.subr.bf16.mxu0 0
          %1897 = vmatpush2.bf16.xpose.msra.mxu0 0
          %1898 = vmatprep.subr.bf16.mxu0 0
          %1899 = vmatpush2.bf16.xpose.msra.mxu0 0
          %1900 = vmatprep.mubr.bf16.mxu0 0
          %1901 = vmatmul.mubr.bf16.gmra.mxu0 %v1863
          %v1902 = vpop.f32.mrf.mxu0
          %v1903 = vadd.f32 0.0, %v1902
          %v1904 = vpop.f32.mrf.mxu0
          %v1905 = vpop.f32.mrf.mxu0
          %v1906 = vpop.f32.mrf.mxu0
          %1907 = vdwg.mxu0
          %v1909 = vsel %vm1723, %v1688, 0
          %v1912 = vsel %vm1723, %v1702, 0
          %1914 = vmatprep.subr.bf16.mxu0 0
          %1915 = vmatpush1.bf16.xpose.msra.mxu0 0
          %1916 = vmatprep.subr.bf16.mxu0 0
          %1917 = vmatpush1.bf16.xpose.msra.mxu0 0
          %1918 = vmatprep.subr.bf16.mxu0 0
          %1919 = vmatpush1.bf16.xpose.msra.mxu0 0
          %1920 = vmatprep.subr.bf16.mxu0 0
          %1921 = vmatpush1.bf16.xpose.msra.mxu0 0
          %1922 = vmatprep.subr.bf16.mxu0 0
          %1923 = vmatpush1.bf16.xpose.msra.mxu0 0
          %1924 = vmatprep.subr.bf16.mxu0 0
          %1925 = vmatpush1.bf16.xpose.msra.mxu0 0
          %1926 = vmatprep.subr.bf16.mxu0 0
          %1927 = vmatpush1.bf16.xpose.msra.mxu0 0
          %1928 = vmatprep.subr.bf16.mxu0 0
          %1929 = vmatpush1.bf16.xpose.msra.mxu0 %v1912
          %1930 = vmatprep.subr.bf16.mxu0 0
          %1931 = vmatpush2.bf16.xpose.msra.mxu0 0
          %1932 = vmatprep.subr.bf16.mxu0 0
          %1933 = vmatpush2.bf16.xpose.msra.mxu0 0
          %1934 = vmatprep.subr.bf16.mxu0 0
          %1935 = vmatpush2.bf16.xpose.msra.mxu0 0
          %1936 = vmatprep.subr.bf16.mxu0 0
          %1937 = vmatpush2.bf16.xpose.msra.mxu0 0
          %1938 = vmatprep.subr.bf16.mxu0 0
          %1939 = vmatpush2.bf16.xpose.msra.mxu0 0
          %1940 = vmatprep.subr.bf16.mxu0 0
          %1941 = vmatpush2.bf16.xpose.msra.mxu0 0
          %1942 = vmatprep.subr.bf16.mxu0 0
          %1943 = vmatpush2.bf16.xpose.msra.mxu0 0
          %1944 = vmatprep.subr.bf16.mxu0 0
          %1945 = vmatpush2.bf16.xpose.msra.mxu0 0
          %1946 = vmatprep.mubr.bf16.mxu0 0
          %1947 = vmatmul.mubr.bf16.gmra.mxu0 %v1909
          %v1948 = vpop.f32.mrf.mxu0
          %v1949 = vadd.f32 0.0, %v1948
          %v1950 = vpop.f32.mrf.mxu0
          %v1951 = vpop.f32.mrf.mxu0
          %v1952 = vpop.f32.mrf.mxu0
          %1953 = vdwg.mxu0
          %v1955 = vsel %vm1723, %v1690, 0
          %v1958 = vsel %vm1723, %v1704, 0
          %1960 = vmatprep.subr.bf16.mxu0 0
          %1961 = vmatpush1.bf16.xpose.msra.mxu0 0
          %1962 = vmatprep.subr.bf16.mxu0 0
          %1963 = vmatpush1.bf16.xpose.msra.mxu0 0
          %1964 = vmatprep.subr.bf16.mxu0 0
          %1965 = vmatpush1.bf16.xpose.msra.mxu0 0
          %1966 = vmatprep.subr.bf16.mxu0 0
          %1967 = vmatpush1.bf16.xpose.msra.mxu0 0
          %1968 = vmatprep.subr.bf16.mxu0 0
          %1969 = vmatpush1.bf16.xpose.msra.mxu0 0
          %1970 = vmatprep.subr.bf16.mxu0 0
          %1971 = vmatpush1.bf16.xpose.msra.mxu0 0
          %1972 = vmatprep.subr.bf16.mxu0 0
          %1973 = vmatpush1.bf16.xpose.msra.mxu0 0
          %1974 = vmatprep.subr.bf16.mxu0 0
          %1975 = vmatpush1.bf16.xpose.msra.mxu0 %v1958
          %1976 = vmatprep.subr.bf16.mxu0 0
          %1977 = vmatpush2.bf16.xpose.msra.mxu0 0
          %1978 = vmatprep.subr.bf16.mxu0 0
          %1979 = vmatpush2.bf16.xpose.msra.mxu0 0
          %1980 = vmatprep.subr.bf16.mxu0 0
          %1981 = vmatpush2.bf16.xpose.msra.mxu0 0
          %1982 = vmatprep.subr.bf16.mxu0 0
          %1983 = vmatpush2.bf16.xpose.msra.mxu0 0
          %1984 = vmatprep.subr.bf16.mxu0 0
          %1985 = vmatpush2.bf16.xpose.msra.mxu0 0
          %1986 = vmatprep.subr.bf16.mxu0 0
          %1987 = vmatpush2.bf16.xpose.msra.mxu0 0
          %1988 = vmatprep.subr.bf16.mxu0 0
          %1989 = vmatpush2.bf16.xpose.msra.mxu0 0
          %1990 = vmatprep.subr.bf16.mxu0 0
          %1991 = vmatpush2.bf16.xpose.msra.mxu0 0
          %1992 = vmatprep.mubr.bf16.mxu0 0
          %1993 = vmatmul.mubr.bf16.gmra.mxu0 %v1955
          %v1994 = vpop.f32.mrf.mxu0
          %v1995 = vadd.f32 0.0, %v1994
          %v1996 = vpop.f32.mrf.mxu0
          %v1997 = vpop.f32.mrf.mxu0
          %v1998 = vpop.f32.mrf.mxu0
          %1999 = vdwg.mxu0
          %v2001 = vsel %vm1723, %v1692, 0
          %v2004 = vsel %vm1723, %v1706, 0
          %2006 = vmatprep.subr.bf16.mxu0 0
          %2007 = vmatpush1.bf16.xpose.msra.mxu0 0
          %2008 = vmatprep.subr.bf16.mxu0 0
          %2009 = vmatpush1.bf16.xpose.msra.mxu0 0
          %2010 = vmatprep.subr.bf16.mxu0 0
          %2011 = vmatpush1.bf16.xpose.msra.mxu0 0
          %2012 = vmatprep.subr.bf16.mxu0 0
          %2013 = vmatpush1.bf16.xpose.msra.mxu0 0
          %2014 = vmatprep.subr.bf16.mxu0 0
          %2015 = vmatpush1.bf16.xpose.msra.mxu0 0
          %2016 = vmatprep.subr.bf16.mxu0 0
          %2017 = vmatpush1.bf16.xpose.msra.mxu0 0
          %2018 = vmatprep.subr.bf16.mxu0 0
          %2019 = vmatpush1.bf16.xpose.msra.mxu0 0
          %2020 = vmatprep.subr.bf16.mxu0 0
          %2021 = vmatpush1.bf16.xpose.msra.mxu0 %v2004
          %2022 = vmatprep.subr.bf16.mxu0 0
          %2023 = vmatpush2.bf16.xpose.msra.mxu0 0
          %2024 = vmatprep.subr.bf16.mxu0 0
          %2025 = vmatpush2.bf16.xpose.msra.mxu0 0
          %2026 = vmatprep.subr.bf16.mxu0 0
          %2027 = vmatpush2.bf16.xpose.msra.mxu0 0
          %2028 = vmatprep.subr.bf16.mxu0 0
          %2029 = vmatpush2.bf16.xpose.msra.mxu0 0
          %2030 = vmatprep.subr.bf16.mxu0 0
          %2031 = vmatpush2.bf16.xpose.msra.mxu0 0
          %2032 = vmatprep.subr.bf16.mxu0 0
          %2033 = vmatpush2.bf16.xpose.msra.mxu0 0
          %2034 = vmatprep.subr.bf16.mxu0 0
          %2035 = vmatpush2.bf16.xpose.msra.mxu0 0
          %2036 = vmatprep.subr.bf16.mxu0 0
          %2037 = vmatpush2.bf16.xpose.msra.mxu0 0
          %2038 = vmatprep.mubr.bf16.mxu0 0
          %2039 = vmatmul.mubr.bf16.gmra.mxu0 %v2001
          %v2040 = vpop.f32.mrf.mxu0
          %v2041 = vadd.f32 0.0, %v2040
          %v2042 = vpop.f32.mrf.mxu0
          %v2043 = vpop.f32.mrf.mxu0
          %v2044 = vpop.f32.mrf.mxu0
          %2045 = vdwg.mxu0
          %v2047 = vsel %vm1723, %v1694, 0
          %v2050 = vsel %vm1723, %v1708, 0
          %2052 = vmatprep.subr.bf16.mxu0 0
          %2053 = vmatpush1.bf16.xpose.msra.mxu0 0
          %2054 = vmatprep.subr.bf16.mxu0 0
          %2055 = vmatpush1.bf16.xpose.msra.mxu0 0
          %2056 = vmatprep.subr.bf16.mxu0 0
          %2057 = vmatpush1.bf16.xpose.msra.mxu0 0
          %2058 = vmatprep.subr.bf16.mxu0 0
          %2059 = vmatpush1.bf16.xpose.msra.mxu0 0
          %2060 = vmatprep.subr.bf16.mxu0 0
          %2061 = vmatpush1.bf16.xpose.msra.mxu0 0
          %2062 = vmatprep.subr.bf16.mxu0 0
          %2063 = vmatpush1.bf16.xpose.msra.mxu0 0
          %2064 = vmatprep.subr.bf16.mxu0 0
          %2065 = vmatpush1.bf16.xpose.msra.mxu0 0
          %2066 = vmatprep.subr.bf16.mxu0 0
          %2067 = vmatpush1.bf16.xpose.msra.mxu0 %v2050
          %2068 = vmatprep.subr.bf16.mxu0 0
          %2069 = vmatpush2.bf16.xpose.msra.mxu0 0
          %2070 = vmatprep.subr.bf16.mxu0 0
          %2071 = vmatpush2.bf16.xpose.msra.mxu0 0
          %2072 = vmatprep.subr.bf16.mxu0 0
          %2073 = vmatpush2.bf16.xpose.msra.mxu0 0
          %2074 = vmatprep.subr.bf16.mxu0 0
          %2075 = vmatpush2.bf16.xpose.msra.mxu0 0
          %2076 = vmatprep.subr.bf16.mxu0 0
          %2077 = vmatpush2.bf16.xpose.msra.mxu0 0
          %2078 = vmatprep.subr.bf16.mxu0 0
          %2079 = vmatpush2.bf16.xpose.msra.mxu0 0
          %2080 = vmatprep.subr.bf16.mxu0 0
          %2081 = vmatpush2.bf16.xpose.msra.mxu0 0
          %2082 = vmatprep.subr.bf16.mxu0 0
          %2083 = vmatpush2.bf16.xpose.msra.mxu0 0
          %2084 = vmatprep.mubr.bf16.mxu0 0
          %2085 = vmatmul.mubr.bf16.gmra.mxu0 %v2047
          %v2086 = vpop.f32.mrf.mxu0
          %v2087 = vadd.f32 0.0, %v2086
          %v2088 = vpop.f32.mrf.mxu0
          %v2089 = vpop.f32.mrf.mxu0
          %v2090 = vpop.f32.mrf.mxu0
          %2091 = vdwg.mxu0
          %vm2092 = vcmask 64512
          %v2093 = vsel %vm2092, %v1765, -inf
          %2094 = vmax.xlane.f32.xlu0 %v2093
          %v2095 = vpop.xlane.xlu0 %2094
          %v2096 = vsel %vm2092, %v1811, -inf
          %2097 = vmax.xlane.f32.xlu0 %v2096
          %v2098 = vpop.xlane.xlu0 %2097
          %v2099 = vsel %vm2092, %v1857, -inf
          %2100 = vmax.xlane.f32.xlu0 %v2099
          %v2101 = vpop.xlane.xlu0 %2100
          %v2102 = vsel %vm2092, %v1903, -inf
          %2103 = vmax.xlane.f32.xlu0 %v2102
          %v2104 = vpop.xlane.xlu0 %2103
          %v2105 = vsel %vm2092, %v1949, -inf
          %2106 = vmax.xlane.f32.xlu0 %v2105
          %v2107 = vpop.xlane.xlu0 %2106
          %v2108 = vsel %vm2092, %v1995, -inf
          %2109 = vmax.xlane.f32.xlu0 %v2108
          %v2110 = vpop.xlane.xlu0 %2109
          %v2111 = vsel %vm2092, %v2041, -inf
          %2112 = vmax.xlane.f32.xlu0 %v2111
          %v2113 = vpop.xlane.xlu0 %2112
          %v2114 = vsel %vm2092, %v2087, -inf
          %2115 = vmax.xlane.f32.xlu0 %v2114
          %v2116 = vpop.xlane.xlu0 %2115
          %v2117 = vsub.f32 %v1765, %v2095
          %v2118 = vsub.f32 %v1811, %v2098
          %v2119 = vsub.f32 %v1857, %v2101
          %v2120 = vsub.f32 %v1903, %v2104
          %v2121 = vsub.f32 %v1949, %v2107
          %v2122 = vsub.f32 %v1995, %v2110
          %v2123 = vsub.f32 %v2041, %v2113
          %v2124 = vsub.f32 %v2087, %v2116
          %v2125 = vmul.f32 %v2117, 1.442695
          %v2126 = vpow.pop %v2125
          %v2127 = vmul.f32 %v2118, 1.442695
          %v2128 = vpow.pop %v2127
          %v2129 = vmul.f32 %v2119, 1.442695
          %v2130 = vpow.pop %v2129
          %v2131 = vmul.f32 %v2120, 1.442695
          %v2132 = vpow.pop %v2131
          %v2133 = vmul.f32 %v2121, 1.442695
          %v2134 = vpow.pop %v2133
          %v2135 = vmul.f32 %v2122, 1.442695
          %v2136 = vpow.pop %v2135
          %v2137 = vmul.f32 %v2123, 1.442695
          %v2138 = vpow.pop %v2137
          %v2139 = vmul.f32 %v2124, 1.442695
          %v2140 = vpow.pop %v2139
          %v2141 = vsel %vm2092, %v2126, 0.0
          %2142 = vadd.xlane.f32.xlu0 %v2141
          %v2143 = vpop.xlane.xlu0 %2142
          %v2144 = vsel %vm2092, %v2128, 0.0
          %2145 = vadd.xlane.f32.xlu0 %v2144
          %v2146 = vpop.xlane.xlu0 %2145
          %v2147 = vsel %vm2092, %v2130, 0.0
          %2148 = vadd.xlane.f32.xlu0 %v2147
          %v2149 = vpop.xlane.xlu0 %2148
          %v2150 = vsel %vm2092, %v2132, 0.0
          %2151 = vadd.xlane.f32.xlu0 %v2150
          %v2152 = vpop.xlane.xlu0 %2151
          %v2153 = vsel %vm2092, %v2134, 0.0
          %2154 = vadd.xlane.f32.xlu0 %v2153
          %v2155 = vpop.xlane.xlu0 %2154
          %v2156 = vsel %vm2092, %v2136, 0.0
          %2157 = vadd.xlane.f32.xlu0 %v2156
          %v2158 = vpop.xlane.xlu0 %2157
          %v2159 = vsel %vm2092, %v2138, 0.0
          %2160 = vadd.xlane.f32.xlu0 %v2159
          %v2161 = vpop.xlane.xlu0 %2160
          %v2162 = vsel %vm2092, %v2140, 0.0
          %2163 = vadd.xlane.f32.xlu0 %v2162
          %v2164 = vpop.xlane.xlu0 %2163
          %v2165 = vrcp.pop %v2143
          %v2166 = vrcp.pop %v2146
          %v2167 = vrcp.pop %v2149
          %v2168 = vrcp.pop %v2152
          %v2169 = vrcp.pop %v2155
          %v2170 = vrcp.pop %v2158
          %v2171 = vrcp.pop %v2161
          %v2172 = vrcp.pop %v2164
          %v2173 = vmul.f32 %v2126, %v2165
          %v2174 = vmul.f32 %v2128, %v2166
          %v2175 = vmul.f32 %v2130, %v2167
          %v2176 = vmul.f32 %v2132, %v2168
          %v2177 = vmul.f32 %v2134, %v2169
          %v2178 = vmul.f32 %v2136, %v2170
          %v2179 = vmul.f32 %v2138, %v2171
          %v2180 = vmul.f32 %v2140, %v2172
          %v2181 = vpack.c.bf16 %v2173, %v2173
          %v2182 = vpack.c.bf16 %v2174, %v2174
          %v2183 = vpack.c.bf16 %v2175, %v2175
          %v2184 = vpack.c.bf16 %v2176, %v2176
          %v2185 = vpack.c.bf16 %v2177, %v2177
          %v2186 = vpack.c.bf16 %v2178, %v2178
          %v2187 = vpack.c.bf16 %v2179, %v2179
          %v2188 = vpack.c.bf16 %v2180, %v2180
          %v2190 = vsel %vm2092, %v2181, 0
          %vm2192 = vcmask 1043456
          %v2194 = vsel %vm2192, %v1680, 0
          %2196 = vmatprep.subr.bf16.mxu0 0
          %2197 = vmatpush1.bf16.msra.mxu0 0
          %2198 = vmatprep.subr.bf16.mxu0 0
          %2199 = vmatpush1.bf16.msra.mxu0 0
          %2200 = vmatprep.subr.bf16.mxu0 0
          %2201 = vmatpush1.bf16.msra.mxu0 0
          %2202 = vmatprep.subr.bf16.mxu0 0
          %2203 = vmatpush1.bf16.msra.mxu0 0
          %2204 = vmatprep.subr.bf16.mxu0 0
          %2205 = vmatpush1.bf16.msra.mxu0 0
          %2206 = vmatprep.subr.bf16.mxu0 0
          %2207 = vmatpush1.bf16.msra.mxu0 0
          %2208 = vmatprep.subr.bf16.mxu0 0
          %2209 = vmatpush1.bf16.msra.mxu0 0
          %2210 = vmatprep.subr.bf16.mxu0 0
          %2211 = vmatpush1.bf16.msra.mxu0 %v2194
          %2212 = vmatprep.subr.bf16.mxu0 0
          %2213 = vmatpush2.bf16.msra.mxu0 0
          %2214 = vmatprep.subr.bf16.mxu0 0
          %2215 = vmatpush2.bf16.msra.mxu0 0
          %2216 = vmatprep.subr.bf16.mxu0 0
          %2217 = vmatpush2.bf16.msra.mxu0 0
          %2218 = vmatprep.subr.bf16.mxu0 0
          %2219 = vmatpush2.bf16.msra.mxu0 0
          %2220 = vmatprep.subr.bf16.mxu0 0
          %2221 = vmatpush2.bf16.msra.mxu0 0
          %2222 = vmatprep.subr.bf16.mxu0 0
          %2223 = vmatpush2.bf16.msra.mxu0 0
          %2224 = vmatprep.subr.bf16.mxu0 0
          %2225 = vmatpush2.bf16.msra.mxu0 0
          %2226 = vmatprep.subr.bf16.mxu0 0
          %2227 = vmatpush2.bf16.msra.mxu0 0
          %2228 = vmatprep.mubr.bf16.mxu0 0
          %2229 = vmatmul.mubr.bf16.gmra.mxu0 %v2190
          %v2230 = vpop.f32.mrf.mxu0
          %v2231 = vadd.f32 0.0, %v2230
          %v2232 = vpop.f32.mrf.mxu0
          %v2233 = vpop.f32.mrf.mxu0
          %v2234 = vpop.f32.mrf.mxu0
          %2235 = vdwg.mxu0
          %v2237 = vsel %vm2092, %v2182, 0
          %v2240 = vsel %vm2192, %v1710, 0
          %2242 = vmatprep.subr.bf16.mxu0 0
          %2243 = vmatpush1.bf16.msra.mxu0 0
          %2244 = vmatprep.subr.bf16.mxu0 0
          %2245 = vmatpush1.bf16.msra.mxu0 0
          %2246 = vmatprep.subr.bf16.mxu0 0
          %2247 = vmatpush1.bf16.msra.mxu0 0
          %2248 = vmatprep.subr.bf16.mxu0 0
          %2249 = vmatpush1.bf16.msra.mxu0 0
          %2250 = vmatprep.subr.bf16.mxu0 0
          %2251 = vmatpush1.bf16.msra.mxu0 0
          %2252 = vmatprep.subr.bf16.mxu0 0
          %2253 = vmatpush1.bf16.msra.mxu0 0
          %2254 = vmatprep.subr.bf16.mxu0 0
          %2255 = vmatpush1.bf16.msra.mxu0 0
          %2256 = vmatprep.subr.bf16.mxu0 0
          %2257 = vmatpush1.bf16.msra.mxu0 %v2240
          %2258 = vmatprep.subr.bf16.mxu0 0
          %2259 = vmatpush2.bf16.msra.mxu0 0
          %2260 = vmatprep.subr.bf16.mxu0 0
          %2261 = vmatpush2.bf16.msra.mxu0 0
          %2262 = vmatprep.subr.bf16.mxu0 0
          %2263 = vmatpush2.bf16.msra.mxu0 0
          %2264 = vmatprep.subr.bf16.mxu0 0
          %2265 = vmatpush2.bf16.msra.mxu0 0
          %2266 = vmatprep.subr.bf16.mxu0 0
          %2267 = vmatpush2.bf16.msra.mxu0 0
          %2268 = vmatprep.subr.bf16.mxu0 0
          %2269 = vmatpush2.bf16.msra.mxu0 0
          %2270 = vmatprep.subr.bf16.mxu0 0
          %2271 = vmatpush2.bf16.msra.mxu0 0
          %2272 = vmatprep.subr.bf16.mxu0 0
          %2273 = vmatpush2.bf16.msra.mxu0 0
          %2274 = vmatprep.mubr.bf16.mxu0 0
          %2275 = vmatmul.mubr.bf16.gmra.mxu0 %v2237
          %v2276 = vpop.f32.mrf.mxu0
          %v2277 = vadd.f32 0.0, %v2276
          %v2278 = vpop.f32.mrf.mxu0
          %v2279 = vpop.f32.mrf.mxu0
          %v2280 = vpop.f32.mrf.mxu0
          %2281 = vdwg.mxu0
          %v2283 = vsel %vm2092, %v2183, 0
          %v2286 = vsel %vm2192, %v1712, 0
          %2288 = vmatprep.subr.bf16.mxu0 0
          %2289 = vmatpush1.bf16.msra.mxu0 0
          %2290 = vmatprep.subr.bf16.mxu0 0
          %2291 = vmatpush1.bf16.msra.mxu0 0
          %2292 = vmatprep.subr.bf16.mxu0 0
          %2293 = vmatpush1.bf16.msra.mxu0 0
          %2294 = vmatprep.subr.bf16.mxu0 0
          %2295 = vmatpush1.bf16.msra.mxu0 0
          %2296 = vmatprep.subr.bf16.mxu0 0
          %2297 = vmatpush1.bf16.msra.mxu0 0
          %2298 = vmatprep.subr.bf16.mxu0 0
          %2299 = vmatpush1.bf16.msra.mxu0 0
          %2300 = vmatprep.subr.bf16.mxu0 0
          %2301 = vmatpush1.bf16.msra.mxu0 0
          %2302 = vmatprep.subr.bf16.mxu0 0
          %2303 = vmatpush1.bf16.msra.mxu0 %v2286
          %2304 = vmatprep.subr.bf16.mxu0 0
          %2305 = vmatpush2.bf16.msra.mxu0 0
          %2306 = vmatprep.subr.bf16.mxu0 0
          %2307 = vmatpush2.bf16.msra.mxu0 0
          %2308 = vmatprep.subr.bf16.mxu0 0
          %2309 = vmatpush2.bf16.msra.mxu0 0
          %2310 = vmatprep.subr.bf16.mxu0 0
          %2311 = vmatpush2.bf16.msra.mxu0 0
          %2312 = vmatprep.subr.bf16.mxu0 0
          %2313 = vmatpush2.bf16.msra.mxu0 0
          %2314 = vmatprep.subr.bf16.mxu0 0
          %2315 = vmatpush2.bf16.msra.mxu0 0
          %2316 = vmatprep.subr.bf16.mxu0 0
          %2317 = vmatpush2.bf16.msra.mxu0 0
          %2318 = vmatprep.subr.bf16.mxu0 0
          %2319 = vmatpush2.bf16.msra.mxu0 0
          %2320 = vmatprep.mubr.bf16.mxu0 0
          %2321 = vmatmul.mubr.bf16.gmra.mxu0 %v2283
          %v2322 = vpop.f32.mrf.mxu0
          %v2323 = vadd.f32 0.0, %v2322
          %v2324 = vpop.f32.mrf.mxu0
          %v2325 = vpop.f32.mrf.mxu0
          %v2326 = vpop.f32.mrf.mxu0
          %2327 = vdwg.mxu0
          %v2329 = vsel %vm2092, %v2184, 0
          %v2332 = vsel %vm2192, %v1714, 0
          %2334 = vmatprep.subr.bf16.mxu0 0
          %2335 = vmatpush1.bf16.msra.mxu0 0
          %2336 = vmatprep.subr.bf16.mxu0 0
          %2337 = vmatpush1.bf16.msra.mxu0 0
          %2338 = vmatprep.subr.bf16.mxu0 0
          %2339 = vmatpush1.bf16.msra.mxu0 0
          %2340 = vmatprep.subr.bf16.mxu0 0
          %2341 = vmatpush1.bf16.msra.mxu0 0
          %2342 = vmatprep.subr.bf16.mxu0 0
          %2343 = vmatpush1.bf16.msra.mxu0 0
          %2344 = vmatprep.subr.bf16.mxu0 0
          %2345 = vmatpush1.bf16.msra.mxu0 0
          %2346 = vmatprep.subr.bf16.mxu0 0
          %2347 = vmatpush1.bf16.msra.mxu0 0
          %2348 = vmatprep.subr.bf16.mxu0 0
          %2349 = vmatpush1.bf16.msra.mxu0 %v2332
          %2350 = vmatprep.subr.bf16.mxu0 0
          %2351 = vmatpush2.bf16.msra.mxu0 0
          %2352 = vmatprep.subr.bf16.mxu0 0
          %2353 = vmatpush2.bf16.msra.mxu0 0
          %2354 = vmatprep.subr.bf16.mxu0 0
          %2355 = vmatpush2.bf16.msra.mxu0 0
          %2356 = vmatprep.subr.bf16.mxu0 0
          %2357 = vmatpush2.bf16.msra.mxu0 0
          %2358 = vmatprep.subr.bf16.mxu0 0
          %2359 = vmatpush2.bf16.msra.mxu0 0
          %2360 = vmatprep.subr.bf16.mxu0 0
          %2361 = vmatpush2.bf16.msra.mxu0 0
          %2362 = vmatprep.subr.bf16.mxu0 0
          %2363 = vmatpush2.bf16.msra.mxu0 0
          %2364 = vmatprep.subr.bf16.mxu0 0
          %2365 = vmatpush2.bf16.msra.mxu0 0
          %2366 = vmatprep.mubr.bf16.mxu0 0
          %2367 = vmatmul.mubr.bf16.gmra.mxu0 %v2329
          %v2368 = vpop.f32.mrf.mxu0
          %v2369 = vadd.f32 0.0, %v2368
          %v2370 = vpop.f32.mrf.mxu0
          %v2371 = vpop.f32.mrf.mxu0
          %v2372 = vpop.f32.mrf.mxu0
          %2373 = vdwg.mxu0
          %v2375 = vsel %vm2092, %v2185, 0
          %v2378 = vsel %vm2192, %v1716, 0
          %2380 = vmatprep.subr.bf16.mxu0 0
          %2381 = vmatpush1.bf16.msra.mxu0 0
          %2382 = vmatprep.subr.bf16.mxu0 0
          %2383 = vmatpush1.bf16.msra.mxu0 0
          %2384 = vmatprep.subr.bf16.mxu0 0
          %2385 = vmatpush1.bf16.msra.mxu0 0
          %2386 = vmatprep.subr.bf16.mxu0 0
          %2387 = vmatpush1.bf16.msra.mxu0 0
          %2388 = vmatprep.subr.bf16.mxu0 0
          %2389 = vmatpush1.bf16.msra.mxu0 0
          %2390 = vmatprep.subr.bf16.mxu0 0
          %2391 = vmatpush1.bf16.msra.mxu0 0
          %2392 = vmatprep.subr.bf16.mxu0 0
          %2393 = vmatpush1.bf16.msra.mxu0 0
          %2394 = vmatprep.subr.bf16.mxu0 0
          %2395 = vmatpush1.bf16.msra.mxu0 %v2378
          %2396 = vmatprep.subr.bf16.mxu0 0
          %2397 = vmatpush2.bf16.msra.mxu0 0
          %2398 = vmatprep.subr.bf16.mxu0 0
          %2399 = vmatpush2.bf16.msra.mxu0 0
          %2400 = vmatprep.subr.bf16.mxu0 0
          %2401 = vmatpush2.bf16.msra.mxu0 0
          %2402 = vmatprep.subr.bf16.mxu0 0
          %2403 = vmatpush2.bf16.msra.mxu0 0
          %2404 = vmatprep.subr.bf16.mxu0 0
          %2405 = vmatpush2.bf16.msra.mxu0 0
          %2406 = vmatprep.subr.bf16.mxu0 0
          %2407 = vmatpush2.bf16.msra.mxu0 0
          %2408 = vmatprep.subr.bf16.mxu0 0
          %2409 = vmatpush2.bf16.msra.mxu0 0
          %2410 = vmatprep.subr.bf16.mxu0 0
          %2411 = vmatpush2.bf16.msra.mxu0 0
          %2412 = vmatprep.mubr.bf16.mxu0 0
          %2413 = vmatmul.mubr.bf16.gmra.mxu0 %v2375
          %v2414 = vpop.f32.mrf.mxu0
          %v2415 = vadd.f32 0.0, %v2414
          %v2416 = vpop.f32.mrf.mxu0
          %v2417 = vpop.f32.mrf.mxu0
          %v2418 = vpop.f32.mrf.mxu0
          %2419 = vdwg.mxu0
          %v2421 = vsel %vm2092, %v2186, 0
          %v2424 = vsel %vm2192, %v1718, 0
          %2426 = vmatprep.subr.bf16.mxu0 0
          %2427 = vmatpush1.bf16.msra.mxu0 0
          %2428 = vmatprep.subr.bf16.mxu0 0
          %2429 = vmatpush1.bf16.msra.mxu0 0
          %2430 = vmatprep.subr.bf16.mxu0 0
          %2431 = vmatpush1.bf16.msra.mxu0 0
          %2432 = vmatprep.subr.bf16.mxu0 0
          %2433 = vmatpush1.bf16.msra.mxu0 0
          %2434 = vmatprep.subr.bf16.mxu0 0
          %2435 = vmatpush1.bf16.msra.mxu0 0
          %2436 = vmatprep.subr.bf16.mxu0 0
          %2437 = vmatpush1.bf16.msra.mxu0 0
          %2438 = vmatprep.subr.bf16.mxu0 0
          %2439 = vmatpush1.bf16.msra.mxu0 0
          %2440 = vmatprep.subr.bf16.mxu0 0
          %2441 = vmatpush1.bf16.msra.mxu0 %v2424
          %2442 = vmatprep.subr.bf16.mxu0 0
          %2443 = vmatpush2.bf16.msra.mxu0 0
          %2444 = vmatprep.subr.bf16.mxu0 0
          %2445 = vmatpush2.bf16.msra.mxu0 0
          %2446 = vmatprep.subr.bf16.mxu0 0
          %2447 = vmatpush2.bf16.msra.mxu0 0
          %2448 = vmatprep.subr.bf16.mxu0 0
          %2449 = vmatpush2.bf16.msra.mxu0 0
          %2450 = vmatprep.subr.bf16.mxu0 0
          %2451 = vmatpush2.bf16.msra.mxu0 0
          %2452 = vmatprep.subr.bf16.mxu0 0
          %2453 = vmatpush2.bf16.msra.mxu0 0
          %2454 = vmatprep.subr.bf16.mxu0 0
          %2455 = vmatpush2.bf16.msra.mxu0 0
          %2456 = vmatprep.subr.bf16.mxu0 0
          %2457 = vmatpush2.bf16.msra.mxu0 0
          %2458 = vmatprep.mubr.bf16.mxu0 0
          %2459 = vmatmul.mubr.bf16.gmra.mxu0 %v2421
          %v2460 = vpop.f32.mrf.mxu0
          %v2461 = vadd.f32 0.0, %v2460
          %v2462 = vpop.f32.mrf.mxu0
          %v2463 = vpop.f32.mrf.mxu0
          %v2464 = vpop.f32.mrf.mxu0
          %2465 = vdwg.mxu0
          %v2467 = vsel %vm2092, %v2187, 0
          %v2470 = vsel %vm2192, %v1720, 0
          %2472 = vmatprep.subr.bf16.mxu0 0
          %2473 = vmatpush1.bf16.msra.mxu0 0
          %2474 = vmatprep.subr.bf16.mxu0 0
          %2475 = vmatpush1.bf16.msra.mxu0 0
          %2476 = vmatprep.subr.bf16.mxu0 0
          %2477 = vmatpush1.bf16.msra.mxu0 0
          %2478 = vmatprep.subr.bf16.mxu0 0
          %2479 = vmatpush1.bf16.msra.mxu0 0
          %2480 = vmatprep.subr.bf16.mxu0 0
          %2481 = vmatpush1.bf16.msra.mxu0 0
          %2482 = vmatprep.subr.bf16.mxu0 0
          %2483 = vmatpush1.bf16.msra.mxu0 0
          %2484 = vmatprep.subr.bf16.mxu0 0
          %2485 = vmatpush1.bf16.msra.mxu0 0
          %2486 = vmatprep.subr.bf16.mxu0 0
          %2487 = vmatpush1.bf16.msra.mxu0 %v2470
          %2488 = vmatprep.subr.bf16.mxu0 0
          %2489 = vmatpush2.bf16.msra.mxu0 0
          %2490 = vmatprep.subr.bf16.mxu0 0
          %2491 = vmatpush2.bf16.msra.mxu0 0
          %2492 = vmatprep.subr.bf16.mxu0 0
          %2493 = vmatpush2.bf16.msra.mxu0 0
          %2494 = vmatprep.subr.bf16.mxu0 0
          %2495 = vmatpush2.bf16.msra.mxu0 0
          %2496 = vmatprep.subr.bf16.mxu0 0
          %2497 = vmatpush2.bf16.msra.mxu0 0
          %2498 = vmatprep.subr.bf16.mxu0 0
          %2499 = vmatpush2.bf16.msra.mxu0 0
          %2500 = vmatprep.subr.bf16.mxu0 0
          %2501 = vmatpush2.bf16.msra.mxu0 0
          %2502 = vmatprep.subr.bf16.mxu0 0
          %2503 = vmatpush2.bf16.msra.mxu0 0
          %2504 = vmatprep.mubr.bf16.mxu0 0
          %2505 = vmatmul.mubr.bf16.gmra.mxu0 %v2467
          %v2506 = vpop.f32.mrf.mxu0
          %v2507 = vadd.f32 0.0, %v2506
          %v2508 = vpop.f32.mrf.mxu0
          %v2509 = vpop.f32.mrf.mxu0
          %v2510 = vpop.f32.mrf.mxu0
          %2511 = vdwg.mxu0
          %v2513 = vsel %vm2092, %v2188, 0
          %v2516 = vsel %vm2192, %v1722, 0
          %2518 = vmatprep.subr.bf16.mxu0 0
          %2519 = vmatpush1.bf16.msra.mxu0 0
          %2520 = vmatprep.subr.bf16.mxu0 0
          %2521 = vmatpush1.bf16.msra.mxu0 0
          %2522 = vmatprep.subr.bf16.mxu0 0
          %2523 = vmatpush1.bf16.msra.mxu0 0
          %2524 = vmatprep.subr.bf16.mxu0 0
          %2525 = vmatpush1.bf16.msra.mxu0 0
          %2526 = vmatprep.subr.bf16.mxu0 0
          %2527 = vmatpush1.bf16.msra.mxu0 0
          %2528 = vmatprep.subr.bf16.mxu0 0
          %2529 = vmatpush1.bf16.msra.mxu0 0
          %2530 = vmatprep.subr.bf16.mxu0 0
          %2531 = vmatpush1.bf16.msra.mxu0 0
          %2532 = vmatprep.subr.bf16.mxu0 0
          %2533 = vmatpush1.bf16.msra.mxu0 %v2516
          %2534 = vmatprep.subr.bf16.mxu0 0
          %2535 = vmatpush2.bf16.msra.mxu0 0
          %2536 = vmatprep.subr.bf16.mxu0 0
          %2537 = vmatpush2.bf16.msra.mxu0 0
          %2538 = vmatprep.subr.bf16.mxu0 0
          %2539 = vmatpush2.bf16.msra.mxu0 0
          %2540 = vmatprep.subr.bf16.mxu0 0
          %2541 = vmatpush2.bf16.msra.mxu0 0
          %2542 = vmatprep.subr.bf16.mxu0 0
          %2543 = vmatpush2.bf16.msra.mxu0 0
          %2544 = vmatprep.subr.bf16.mxu0 0
          %2545 = vmatpush2.bf16.msra.mxu0 0
          %2546 = vmatprep.subr.bf16.mxu0 0
          %2547 = vmatpush2.bf16.msra.mxu0 0
          %2548 = vmatprep.subr.bf16.mxu0 0
          %2549 = vmatpush2.bf16.msra.mxu0 0
          %2550 = vmatprep.mubr.bf16.mxu0 0
          %2551 = vmatmul.mubr.bf16.gmra.mxu0 %v2513
          %v2552 = vpop.f32.mrf.mxu0
          %v2553 = vadd.f32 0.0, %v2552
          %v2554 = vpop.f32.mrf.mxu0
          %v2555 = vpop.f32.mrf.mxu0
          %v2556 = vpop.f32.mrf.mxu0
          %2557 = vdwg.mxu0
          %2560 = vrot.lane.b32.xlu0 %v2323, 32
          %v2561 = vpop.permute.xlu0 %2560
          %2562 = vrot.lane.b32.xlu0 %v2369, 32
          %v2563 = vpop.permute.xlu0 %2562
          %2568 = vrot.lane.b32.xlu0 %v2415, 64
          %v2569 = vpop.permute.xlu0 %2568
          %2570 = vrot.lane.b32.xlu0 %v2461, 64
          %v2571 = vpop.permute.xlu0 %2570
          %2576 = vrot.lane.b32.xlu0 %v2507, 96
          %v2577 = vpop.permute.xlu0 %2576
          %2578 = vrot.lane.b32.xlu0 %v2553, 96
          %v2579 = vpop.permute.xlu0 %2578
          %v2582 = vsel %vm1723, %v2231, %v2561
          %v2583 = vsel %vm1723, %v2277, %v2563
          %vm2584 = vcmask 523264
          %v2585 = vsel %vm2584, %v2582, %v2569
          %v2586 = vsel %vm2584, %v2583, %v2571
          %vm2587 = vcmask 785408
          %v2588 = vsel %vm2587, %v2585, %v2577
          %v2589 = vsel %vm2587, %v2586, %v2579
          %2590 = vst [vmem:[#allocation3] sm:$0xff] %v2588
          %2591 = vst [vmem:[#allocation3 + $0x8] sm:$0xff] %v2589
        $region72: #{tpu_custom_call.1} parent=39 // pred_fallthru
          _
        %v2592 = vld [vmem:[%s335] sm:$0x3f]
        %v2593 = vld [vmem:[#allocation3] sm:$0xff]
        %v2594 = vld [vmem:[#allocation3 + $0x8] sm:$0xff]
        %v2595 = vpack.c.bf16 %v2594, %v2593
        %s2596 = scalar_lea.vmem %s326, 64 [#allocation12]
        %v2597 = vld [vmem:[%s2596] sm:$0xf]
        %v2598 = vld [vmem:[%s2596 + $0x4] sm:$0xf]
        %v2599 = vld [vmem:[%s2596 + $0x8] sm:$0xf]
        %v2600 = vld [vmem:[%s2596 + $0xc] sm:$0xf]
        %v2601 = vld [vmem:[%s2596 + $0x10] sm:$0xf]
        %v2602 = vld [vmem:[%s2596 + $0x14] sm:$0xf]
        %v2603 = vld [vmem:[%s2596 + $0x18] sm:$0xf]
        %v2604 = vld [vmem:[%s2596 + $0x1c] sm:$0xf]
        %v2605 = vld [vmem:[%s2596 + $0x20] sm:$0xf]
        %v2606 = vld [vmem:[%s2596 + $0x24] sm:$0xf]
        %v2607 = vld [vmem:[%s2596 + $0x28] sm:$0xf]
        %v2608 = vld [vmem:[%s2596 + $0x2c] sm:$0xf]
        %v2609 = vld [vmem:[%s2596 + $0x30] sm:$0xf]
        %v2610 = vld [vmem:[%s2596 + $0x34] sm:$0xf]
        %v2611 = vld [vmem:[%s2596 + $0x38] sm:$0xf]
        %v2612 = vld [vmem:[%s2596 + $0x3c] sm:$0xf]
        %v2629 = vunpack.c.l.b16 %v2597
        %v2630 = vunpack.c.l.b16 %v2598
        %v2631 = vunpack.c.l.b16 %v2599
        %v2632 = vunpack.c.l.b16 %v2600
        %v2633 = vunpack.c.l.b16 %v2601
        %v2634 = vunpack.c.l.b16 %v2602
        %v2635 = vunpack.c.l.b16 %v2603
        %v2636 = vunpack.c.l.b16 %v2604
        %v2637 = vunpack.c.l.b16 %v2605
        %v2638 = vunpack.c.l.b16 %v2606
        %v2639 = vunpack.c.l.b16 %v2607
        %v2640 = vunpack.c.l.b16 %v2608
        %v2641 = vunpack.c.l.b16 %v2609
        %v2642 = vunpack.c.l.b16 %v2610
        %v2643 = vunpack.c.l.b16 %v2611
        %v2644 = vunpack.c.l.b16 %v2612
        %v2645 = vpack.c.b16 %v2630, %v2629
        %v2646 = vpack.c.b16 %v2632, %v2631
        %v2647 = vpack.c.b16 %v2634, %v2633
        %v2648 = vpack.c.b16 %v2636, %v2635
        %v2649 = vpack.c.b16 %v2638, %v2637
        %v2650 = vpack.c.b16 %v2640, %v2639
        %v2651 = vpack.c.b16 %v2642, %v2641
        %v2652 = vpack.c.b16 %v2644, %v2643
        %2661 = vmatprep.subr.bf16.mxu0 0
        %2662 = vmatpush1.bf16.msra.mxu0 %v2652
        %2663 = vmatprep.subr.bf16.mxu0 0
        %2664 = vmatpush1.bf16.msra.mxu0 %v2651
        %2665 = vmatprep.subr.bf16.mxu0 0
        %2666 = vmatpush1.bf16.msra.mxu0 %v2650
        %2667 = vmatprep.subr.bf16.mxu0 0
        %2668 = vmatpush1.bf16.msra.mxu0 %v2649
        %2669 = vmatprep.subr.bf16.mxu0 0
        %2670 = vmatpush1.bf16.msra.mxu0 %v2648
        %2671 = vmatprep.subr.bf16.mxu0 0
        %2672 = vmatpush1.bf16.msra.mxu0 %v2647
        %2673 = vmatprep.subr.bf16.mxu0 0
        %2674 = vmatpush1.bf16.msra.mxu0 %v2646
        %2675 = vmatprep.subr.bf16.mxu0 0
        %2676 = vmatpush1.bf16.msra.mxu0 %v2645
        %2677 = vmatprep.subr.bf16.mxu0 0
        %2678 = vmatpush2.bf16.msra.mxu0 0
        %2679 = vmatprep.subr.bf16.mxu0 0
        %2680 = vmatpush2.bf16.msra.mxu0 0
        %2681 = vmatprep.subr.bf16.mxu0 0
        %2682 = vmatpush2.bf16.msra.mxu0 0
        %2683 = vmatprep.subr.bf16.mxu0 0
        %2684 = vmatpush2.bf16.msra.mxu0 0
        %2685 = vmatprep.subr.bf16.mxu0 0
        %2686 = vmatpush2.bf16.msra.mxu0 0
        %2687 = vmatprep.subr.bf16.mxu0 0
        %2688 = vmatpush2.bf16.msra.mxu0 0
        %2689 = vmatprep.subr.bf16.mxu0 0
        %2690 = vmatpush2.bf16.msra.mxu0 0
        %2691 = vmatprep.subr.bf16.mxu0 0
        %2692 = vmatpush2.bf16.msra.mxu0 0
        %2693 = vmatprep.mubr.bf16.mxu0 0
        %2694 = vmatmul.mubr.bf16.gmra.mxu0 %v2595
        %v2695 = vpop.f32.mrf.mxu0
        %v2696 = vadd.f32 0.0, %v2695
        %v2697 = vpop.f32.mrf.mxu0
        %v2698 = vpop.f32.mrf.mxu0
        %v2699 = vadd.f32 0.0, %v2698
        %v2700 = vpop.f32.mrf.mxu0
        %2701 = vdwg.mxu0
        %2702 = vadd.xlane.f32.xlu0 %v2696
        %v2703 = vpop.xlane.xlu0 %2702
        %2704 = vadd.xlane.f32.xlu0 %v2699
        %v2705 = vpop.xlane.xlu0 %2704
        %v2706 = vmul.f32 %v2703, 0.0078125
        %v2707 = vmul.f32 %v2705, 0.0078125
        %v2708 = vmul.f32 %v2696, %v2696
        %v2709 = vmul.f32 %v2699, %v2699
        %2710 = vadd.xlane.f32.xlu0 %v2708
        %v2711 = vpop.xlane.xlu0 %2710
        %2712 = vadd.xlane.f32.xlu0 %v2709
        %v2713 = vpop.xlane.xlu0 %2712
        %v2714 = vmul.f32 %v2711, 0.0078125
        %v2715 = vmul.f32 %v2713, 0.0078125
        %v2716 = vmul.f32 %v2706, %v2706
        %v2717 = vmul.f32 %v2707, %v2707
        %v2718 = vsub.f32 %v2714, %v2716
        %v2719 = vsub.f32 %v2715, %v2717
        %v2720 = vsub.f32 %v2696, %v2706
        %v2721 = vsub.f32 %v2699, %v2707
        %v2722 = vadd.f32 %v2718, 1e-05
        %v2723 = vadd.f32 %v2719, 1e-05
        %v2724 = vrsqrt.pop %v2722
        %v2725 = vrsqrt.pop %v2723
        %v2726 = vmul.f32 %v2720, %v2724
        %v2727 = vmul.f32 %v2721, %v2725
        %v2728 = vlaneseq
        %v2729 = vshrl.u32 %v2728, 7
        %v2730 = vsub.s32 0, %v2729
        %v2731 = vrot.slane %v2592, %v2730
        %v2732 = vmul.f32 %v2726, %v2731
        %v2733 = vmul.f32 %v2727, %v2731
        %v2734 = vlaneseq
        %v2735 = vshrl.u32 %v2734, 7
        %v2736 = vsub.s32 1, %v2735
        %v2737 = vrot.slane %v2592, %v2736
        %v2738 = vadd.f32 %v2732, %v2737
        %v2739 = vadd.f32 %v2733, %v2737
        %v2740 = vadd.f32 %v2738, %v378
        %v2741 = vadd.f32 %v2739, %v379
        %v2742 = vpack.c.bf16 %v2741, %v2740
        %s2743 = scalar_lea.vmem %s326, 128 [#allocation12]
        %v2744 = vld [vmem:[%s2743] sm:$0xf]
        %v2745 = vld [vmem:[%s2743 + $0x4] sm:$0xf]
        %v2746 = vld [vmem:[%s2743 + $0x8] sm:$0xf]
        %v2747 = vld [vmem:[%s2743 + $0xc] sm:$0xf]
        %v2748 = vld [vmem:[%s2743 + $0x10] sm:$0xf]
        %v2749 = vld [vmem:[%s2743 + $0x14] sm:$0xf]
        %v2750 = vld [vmem:[%s2743 + $0x18] sm:$0xf]
        %v2751 = vld [vmem:[%s2743 + $0x1c] sm:$0xf]
        %v2752 = vld [vmem:[%s2743 + $0x20] sm:$0xf]
        %v2753 = vld [vmem:[%s2743 + $0x24] sm:$0xf]
        %v2754 = vld [vmem:[%s2743 + $0x28] sm:$0xf]
        %v2755 = vld [vmem:[%s2743 + $0x2c] sm:$0xf]
        %v2756 = vld [vmem:[%s2743 + $0x30] sm:$0xf]
        %v2757 = vld [vmem:[%s2743 + $0x34] sm:$0xf]
        %v2758 = vld [vmem:[%s2743 + $0x38] sm:$0xf]
        %v2759 = vld [vmem:[%s2743 + $0x3c] sm:$0xf]
        %v2760 = vlaneseq
        %v2761 = vshrl.u32 %v2760, 7
        %v2762 = vsub.s32 2, %v2761
        %v2763 = vrot.slane %v2592, %v2762
        %v2780 = vunpack.c.l.b16 %v2744
        %v2781 = vunpack.c.l.b16 %v2745
        %v2782 = vunpack.c.l.b16 %v2746
        %v2783 = vunpack.c.l.b16 %v2747
        %v2784 = vunpack.c.l.b16 %v2748
        %v2785 = vunpack.c.l.b16 %v2749
        %v2786 = vunpack.c.l.b16 %v2750
        %v2787 = vunpack.c.l.b16 %v2751
        %v2788 = vunpack.c.l.b16 %v2752
        %v2789 = vunpack.c.l.b16 %v2753
        %v2790 = vunpack.c.l.b16 %v2754
        %v2791 = vunpack.c.l.b16 %v2755
        %v2792 = vunpack.c.l.b16 %v2756
        %v2793 = vunpack.c.l.b16 %v2757
        %v2794 = vunpack.c.l.b16 %v2758
        %v2795 = vunpack.c.l.b16 %v2759
        %v2796 = vpack.c.b16 %v2781, %v2780
        %v2797 = vpack.c.b16 %v2783, %v2782
        %v2798 = vpack.c.b16 %v2785, %v2784
        %v2799 = vpack.c.b16 %v2787, %v2786
        %v2800 = vpack.c.b16 %v2789, %v2788
        %v2801 = vpack.c.b16 %v2791, %v2790
        %v2802 = vpack.c.b16 %v2793, %v2792
        %v2803 = vpack.c.b16 %v2795, %v2794
        %2812 = vmatprep.subr.bf16.mxu0 0
        %2813 = vmatpush1.bf16.msra.mxu0 %v2803
        %2814 = vmatprep.subr.bf16.mxu0 0
        %2815 = vmatpush1.bf16.msra.mxu0 %v2802
        %2816 = vmatprep.subr.bf16.mxu0 0
        %2817 = vmatpush1.bf16.msra.mxu0 %v2801
        %2818 = vmatprep.subr.bf16.mxu0 0
        %2819 = vmatpush1.bf16.msra.mxu0 %v2800
        %2820 = vmatprep.subr.bf16.mxu0 0
        %2821 = vmatpush1.bf16.msra.mxu0 %v2799
        %2822 = vmatprep.subr.bf16.mxu0 0
        %2823 = vmatpush1.bf16.msra.mxu0 %v2798
        %2824 = vmatprep.subr.bf16.mxu0 0
        %2825 = vmatpush1.bf16.msra.mxu0 %v2797
        %2826 = vmatprep.subr.bf16.mxu0 0
        %2827 = vmatpush1.bf16.msra.mxu0 %v2796
        %2828 = vmatprep.subr.bf16.mxu0 0
        %2829 = vmatpush2.bf16.msra.mxu0 0
        %2830 = vmatprep.subr.bf16.mxu0 0
        %2831 = vmatpush2.bf16.msra.mxu0 0
        %2832 = vmatprep.subr.bf16.mxu0 0
        %2833 = vmatpush2.bf16.msra.mxu0 0
        %2834 = vmatprep.subr.bf16.mxu0 0
        %2835 = vmatpush2.bf16.msra.mxu0 0
        %2836 = vmatprep.subr.bf16.mxu0 0
        %2837 = vmatpush2.bf16.msra.mxu0 0
        %2838 = vmatprep.subr.bf16.mxu0 0
        %2839 = vmatpush2.bf16.msra.mxu0 0
        %2840 = vmatprep.subr.bf16.mxu0 0
        %2841 = vmatpush2.bf16.msra.mxu0 0
        %2842 = vmatprep.subr.bf16.mxu0 0
        %2843 = vmatpush2.bf16.msra.mxu0 0
        %2844 = vmatprep.mubr.bf16.mxu0 0
        %2845 = vmatmul.mubr.bf16.gmra.mxu0 %v2742
        %v2846 = vpop.f32.mrf.mxu0
        %v2847 = vadd.f32 %v2763, %v2846
        %v2848 = vpop.f32.mrf.mxu0
        %v2849 = vpop.f32.mrf.mxu0
        %v2850 = vadd.f32 %v2763, %v2849
        %v2851 = vpop.f32.mrf.mxu0
        %2852 = vdwg.mxu0
        %v2853 = vmul.f32 %v2847, %v2847
        %v2854 = vmul.f32 %v2850, %v2850
        %v2855 = vmul.f32 %v2847, %v2853
        %v2856 = vmul.f32 %v2850, %v2854
        %v2857 = vmul.f32 %v2855, 0.044715
        %v2858 = vmul.f32 %v2856, 0.044715
        %v2859 = vadd.f32 %v2847, %v2857
        %v2860 = vadd.f32 %v2850, %v2858
        %v2861 = vmul.f32 %v2859, 0.7978846
        %v2862 = vmul.f32 %v2860, 0.7978846
        %v2863 = vtanh.pop %v2861
        %v2864 = vtanh.pop %v2862
        %v2865 = vadd.f32 %v2863, 1.0
        %v2866 = vadd.f32 %v2864, 1.0
        %v2867 = vmul.f32 %v2865, 0.5
        %v2868 = vmul.f32 %v2866, 0.5
        %v2869 = vmul.f32 %v2847, %v2867
        %v2870 = vmul.f32 %v2850, %v2868
        %v2871 = vpack.c.bf16 %v2870, %v2869
        %s2872 = scalar_lea.vmem %s326, 192 [#allocation12]
        %v2873 = vld [vmem:[%s2872] sm:$0xf]
        %v2874 = vld [vmem:[%s2872 + $0x4] sm:$0xf]
        %v2875 = vld [vmem:[%s2872 + $0x8] sm:$0xf]
        %v2876 = vld [vmem:[%s2872 + $0xc] sm:$0xf]
        %v2877 = vld [vmem:[%s2872 + $0x10] sm:$0xf]
        %v2878 = vld [vmem:[%s2872 + $0x14] sm:$0xf]
        %v2879 = vld [vmem:[%s2872 + $0x18] sm:$0xf]
        %v2880 = vld [vmem:[%s2872 + $0x1c] sm:$0xf]
        %v2881 = vld [vmem:[%s2872 + $0x20] sm:$0xf]
        %v2882 = vld [vmem:[%s2872 + $0x24] sm:$0xf]
        %v2883 = vld [vmem:[%s2872 + $0x28] sm:$0xf]
        %v2884 = vld [vmem:[%s2872 + $0x2c] sm:$0xf]
        %v2885 = vld [vmem:[%s2872 + $0x30] sm:$0xf]
        %v2886 = vld [vmem:[%s2872 + $0x34] sm:$0xf]
        %v2887 = vld [vmem:[%s2872 + $0x38] sm:$0xf]
        %v2888 = vld [vmem:[%s2872 + $0x3c] sm:$0xf]
        %v2889 = vlaneseq
        %v2890 = vshrl.u32 %v2889, 7
        %v2891 = vsub.s32 3, %v2890
        %v2892 = vrot.slane %v2592, %v2891
        %v2909 = vunpack.c.l.b16 %v2873
        %v2910 = vunpack.c.l.b16 %v2874
        %v2911 = vunpack.c.l.b16 %v2875
        %v2912 = vunpack.c.l.b16 %v2876
        %v2913 = vunpack.c.l.b16 %v2877
        %v2914 = vunpack.c.l.b16 %v2878
        %v2915 = vunpack.c.l.b16 %v2879
        %v2916 = vunpack.c.l.b16 %v2880
        %v2917 = vunpack.c.l.b16 %v2881
        %v2918 = vunpack.c.l.b16 %v2882
        %v2919 = vunpack.c.l.b16 %v2883
        %v2920 = vunpack.c.l.b16 %v2884
        %v2921 = vunpack.c.l.b16 %v2885
        %v2922 = vunpack.c.l.b16 %v2886
        %v2923 = vunpack.c.l.b16 %v2887
        %v2924 = vunpack.c.l.b16 %v2888
        %v2925 = vpack.c.b16 %v2910, %v2909
        %v2926 = vpack.c.b16 %v2912, %v2911
        %v2927 = vpack.c.b16 %v2914, %v2913
        %v2928 = vpack.c.b16 %v2916, %v2915
        %v2929 = vpack.c.b16 %v2918, %v2917
        %v2930 = vpack.c.b16 %v2920, %v2919
        %v2931 = vpack.c.b16 %v2922, %v2921
        %v2932 = vpack.c.b16 %v2924, %v2923
        %2941 = vmatprep.subr.bf16.mxu0 0
        %2942 = vmatpush1.bf16.msra.mxu0 %v2932
        %2943 = vmatprep.subr.bf16.mxu0 0
        %2944 = vmatpush1.bf16.msra.mxu0 %v2931
        %2945 = vmatprep.subr.bf16.mxu0 0
        %2946 = vmatpush1.bf16.msra.mxu0 %v2930
        %2947 = vmatprep.subr.bf16.mxu0 0
        %2948 = vmatpush1.bf16.msra.mxu0 %v2929
        %2949 = vmatprep.subr.bf16.mxu0 0
        %2950 = vmatpush1.bf16.msra.mxu0 %v2928
        %2951 = vmatprep.subr.bf16.mxu0 0
        %2952 = vmatpush1.bf16.msra.mxu0 %v2927
        %2953 = vmatprep.subr.bf16.mxu0 0
        %2954 = vmatpush1.bf16.msra.mxu0 %v2926
        %2955 = vmatprep.subr.bf16.mxu0 0
        %2956 = vmatpush1.bf16.msra.mxu0 %v2925
        %2957 = vmatprep.subr.bf16.mxu0 0
        %2958 = vmatpush2.bf16.msra.mxu0 0
        %2959 = vmatprep.subr.bf16.mxu0 0
        %2960 = vmatpush2.bf16.msra.mxu0 0
        %2961 = vmatprep.subr.bf16.mxu0 0
        %2962 = vmatpush2.bf16.msra.mxu0 0
        %2963 = vmatprep.subr.bf16.mxu0 0
        %2964 = vmatpush2.bf16.msra.mxu0 0
        %2965 = vmatprep.subr.bf16.mxu0 0
        %2966 = vmatpush2.bf16.msra.mxu0 0
        %2967 = vmatprep.subr.bf16.mxu0 0
        %2968 = vmatpush2.bf16.msra.mxu0 0
        %2969 = vmatprep.subr.bf16.mxu0 0
        %2970 = vmatpush2.bf16.msra.mxu0 0
        %2971 = vmatprep.subr.bf16.mxu0 0
        %2972 = vmatpush2.bf16.msra.mxu0 0
        %2973 = vmatprep.mubr.bf16.mxu0 0
        %2974 = vmatmul.mubr.bf16.gmra.mxu0 %v2871
        %v2975 = vpop.f32.mrf.mxu0
        %v2976 = vadd.f32 %v2892, %v2975
        %v2977 = vpop.f32.mrf.mxu0
        %v2978 = vpop.f32.mrf.mxu0
        %v2979 = vadd.f32 %v2892, %v2978
        %v2980 = vpop.f32.mrf.mxu0
        %2981 = vdwg.mxu0
        %2982 = vadd.xlane.f32.xlu0 %v2976
        %v2983 = vpop.xlane.xlu0 %2982
        %2984 = vadd.xlane.f32.xlu0 %v2979
        %v2985 = vpop.xlane.xlu0 %2984
        %v2986 = vmul.f32 %v2983, 0.0078125
        %v2987 = vmul.f32 %v2985, 0.0078125
        %v2988 = vmul.f32 %v2976, %v2976
        %v2989 = vmul.f32 %v2979, %v2979
        %2990 = vadd.xlane.f32.xlu0 %v2988
        %v2991 = vpop.xlane.xlu0 %2990
        %2992 = vadd.xlane.f32.xlu0 %v2989
        %v2993 = vpop.xlane.xlu0 %2992
        %v2994 = vmul.f32 %v2991, 0.0078125
        %v2995 = vmul.f32 %v2993, 0.0078125
        %v2996 = vmul.f32 %v2986, %v2986
        %v2997 = vmul.f32 %v2987, %v2987
        %v2998 = vsub.f32 %v2994, %v2996
        %v2999 = vsub.f32 %v2995, %v2997
        %v3000 = vsub.f32 %v2976, %v2986
        %v3001 = vsub.f32 %v2979, %v2987
        %v3002 = vadd.f32 %v2998, 1e-05
        %v3003 = vadd.f32 %v2999, 1e-05
        %v3004 = vrsqrt.pop %v3002
        %v3005 = vrsqrt.pop %v3003
        %v3006 = vmul.f32 %v3000, %v3004
        %v3007 = vmul.f32 %v3001, %v3005
        %v3008 = vlaneseq
        %v3009 = vshrl.u32 %v3008, 7
        %v3010 = vsub.s32 4, %v3009
        %v3011 = vrot.slane %v2592, %v3010
        %v3012 = vmul.f32 %v3006, %v3011
        %v3013 = vmul.f32 %v3007, %v3011
        %v3014 = vlaneseq
        %v3015 = vshrl.u32 %v3014, 7
        %v3016 = vsub.s32 5, %v3015
        %v3017 = vrot.slane %v2592, %v3016
        %v3018 = vadd.f32 %v3012, %v3017
        %v3019 = vadd.f32 %v3013, %v3017
        %v3020 = vadd.f32 %v3018, %v2740
        %v3021 = vadd.f32 %v3019, %v2741
        %3022 = vst [vmem:[#allocation2] sm:$0xff] %v3020
        %3023 = vst [vmem:[#allocation2 + $0x8] sm:$0xff] %v3021
        %p3024 = scmp.eq.s32.totalorder %s29, 2
        // Predicated region
        $region73: #{tpu_custom_call.1} parent=39 // pred_check
          %p3025 = pneg %p3024
        $region74: #{tpu_custom_call.1} parent=39 // pred_check_branch
          %3027 = sbr.rel (%p3025) target = $region76
        $region75: #{tpu_custom_call.1} parent=39 // pred_region
          %3028 = vst [vmem:[#allocation14] sm:$0xff] %v3020
          %3029 = vst [vmem:[#allocation14 + $0x8] sm:$0xff] %v3021
        $region76: #{tpu_custom_call.1} parent=39 // pred_fallthru
          _
        // Predicated region
        $region77: #{tpu_custom_call.1} parent=39 // pred_check
          %p3030 = pneg %p184
        $region78: #{tpu_custom_call.1} parent=39 // pred_check_branch
          %3032 = sbr.rel (%p3030) target = $region80
        $region79: #{tpu_custom_call.1} parent=39 // pred_region
          %s3034 = ssub.s32 256, 256
          %3035 = vsyncadd [#allocation8], %s3034
          %s3036 = smul.addr %s28, 2
          %s3037 = smul.addr %s3036, 128
          %s3038 = scalar_lea.hbm %s6, %s3037
          %s3039 = sshll.u32 [#allocation14], 4
          %s3040 = int_to_ptr.vmem [resolvable:$true] %s3039
          %3045 = dma.vmem_to_hbm [thread:$0]  %s3040, 256, %s3038, [#allocation8], 128, 128, 8
        $region80: #{tpu_custom_call.1} parent=39 // pred_fallthru
          _
        // Predicated region
        $region81: #{tpu_custom_call.1} parent=39 // pred_check
          %p3046 = pneg %p184
        $region82: #{tpu_custom_call.1} parent=39 // pred_check_branch
          %3048 = sbr.rel (%p3046) target = $region84
        $region83: #{tpu_custom_call.1} parent=39 // pred_region
          %3049 = dma.done [#allocation8], 256
        $region84: #{tpu_custom_call.1} parent=39 // pred_fallthru
          _
      $region40: #{tpu_custom_call.1} parent=5 // pred_fallthru
        _
      %p3050 = scmp.le.s32.totalorder 2, %s19
      // Predicated region
      $region85: #{tpu_custom_call.1} parent=5 // pred_check
        %p3051 = pneg %p3050
      $region86: #{tpu_custom_call.1} parent=5 // pred_check_branch
        %3053 = sbr.rel (%p3051) target = $region88
      $region87: #{tpu_custom_call.1} parent=5 // pred_region
        %s3054 = ssub.s32 %s19, 2
      $region88: #{tpu_custom_call.1} parent=5 // pred_fallthru
        _
    $region6: #{tpu_custom_call.1} parent=1 // loop_footer
      %s23 = sadd.s32 1, %s19
    $region7: #{tpu_custom_call.1} parent=1 // loop_footer_branch
      %18 = sbr.rel target = $region3
    $region8: #{tpu_custom_call.1} parent=1 // loop_exit
      _
    %3055 = vsyncpa [#allocation7], 1
    %s3056 = scalar_lea.sflag [#allocation7], 1
    %3057 = vsyncpa %s3056, 1
    %3058 = vsyncpa [#allocation10], 1
    %3059 = vsyncpa [#allocation8], 1
    %s3060 = scalar_lea.sflag [#allocation8], 1
    %3061 = vsyncpa %s3060, 1

</llo_original>
